<compile_context>
chip_gen: v7x
topology: tpu7x:2x2x1
jax: 0.10.0
libtpu: 0.0.40
codegen_flags: <defaults>
</compile_context>

<pallas_src>
import jax
import jax.numpy as jnp
from jax.experimental import pallas as pl
from jax.experimental.pallas import tpu as pltpu


_SMEM_SPEC = pl.BlockSpec(memory_space=pltpu.MemorySpace.SMEM)


# ---------------------------------------------------------------------------
# Fused kernel: 4 PDCBlocks + fc head, activation resident in VMEM scratch
# ---------------------------------------------------------------------------
def _make_net_kernel(nb, C, H, W, num_blocks, Cout):
    def kernel(x_ref, wdw_ref, wpw_ref, wfc_ref, bfc_ref, o_ref, xpad_ref):
        # x_ref   : (nb, C, H, W)        VMEM
        # wdw_ref : (num_blocks*C*9,)    SMEM  depthwise 3x3 weights (flat)
        # wpw_ref : (num_blocks*C*C,)    SMEM  1x1 pointwise weights (flat)
        # wfc_ref : (Cout*C*9,)          SMEM  fc 3x3 weights (flat)
        # bfc_ref : (Cout,)              SMEM  fc bias
        # o_ref   : (nb, Cout, H, W)     VMEM
        # xpad_ref: (nb, C, H+2, W+2)    VMEM scratch (padded activation slab)

        # ---- in-kernel halo padding: zero the slab once, write interior ----
        xpad_ref[...] = jnp.zeros_like(xpad_ref)
        for n in range(nb):
            for c in range(C):
                xpad_ref[n, c, 1:1 + H, 1:1 + W] = x_ref[n, c, :, :]

        # ---- 4 fused PDCBlocks (depthwise 3x3 -> ReLU -> 1x1 -> +residual) --
        for blk in range(num_blocks):
            for n in range(nb):
                ys = []
                centers = []
                for c in range(C):
                    xc = xpad_ref[n, c]                          # (H+2, W+2)
                    # 3 lane-shifted slabs, reused across the 3 kh offsets
                    sh = [xc[:, kw:kw + W] for kw in range(3)]   # (H+2, W)
                    centers.append(sh[1][1:1 + H, :])            # residual x
                    acc = jnp.zeros((H, W), jnp.float32)
                    for kh in range(3):
                        for kw in range(3):
                            wv = wdw_ref[(blk * C + c) * 9 + kh * 3 + kw]
                            acc = acc + sh[kw][kh:kh + H, :] * wv
                    ys.append(jnp.maximum(acc, 0.0))
                # pointwise 1x1 conv + residual add (Cout == C by construction)
                new_acts = []
                for co in range(C):
                    out = centers[co]
                    for ci in range(C):
                        out = out + ys[ci] * wpw_ref[(blk * C + co) * C + ci]
                    new_acts.append(out)
                # write the new activation back into the (still zero-haloed)
                # VMEM slab; next layer reads it directly (no HBM traffic)
                for co in range(C):
                    xpad_ref[n, co, 1:1 + H, 1:1 + W] = new_acts[co]

        # ---- fc head: dense 3x3 conv (pad=1) + bias ----
        for n in range(nb):
            for co in range(Cout):
                acc = jnp.zeros((H, W), jnp.float32)
                for ci in range(C):
                    xc = xpad_ref[n, ci]
                    sh = [xc[:, kw:kw + W] for kw in range(3)]
                    for kh in range(3):
                        for kw in range(3):
                            wv = wfc_ref[((co * C + ci) * 3 + kh) * 3 + kw]
                            acc = acc + sh[kw][kh:kh + H, :] * wv
                o_ref[n, co, :, :] = (acc + bfc_ref[co]).astype(o_ref.dtype)

    return kernel


# ---------------------------------------------------------------------------
# Wrapper: weight flattening, grid/batch choice, one pallas_call total
# ---------------------------------------------------------------------------
def net_forward(params, img):
    N, C, H, W = img.shape
    blocks = params["blocks"]
    num_blocks = len(blocks)

    # stride=1 PDCBlock residual requires cout == cin per block; block0's
    # input has 3 channels, so C (== inplane) must be 3.
    for bp in blocks:
        assert bp["w_dw"].shape == (C, 3, 3), bp["w_dw"].shape
        assert bp["w_pw"].shape == (C, C), bp["w_pw"].shape
    Cout = params["fc"]["w"].shape[0]
    assert params["fc"]["w"].shape == (Cout, C, 3, 3)
    assert params["fc"]["b"].shape == (Cout,)

    # Flatten all weights to 1-D for SMEM (no (8,128) padding waste).
    w_dw = jnp.concatenate([bp["w_dw"].reshape(-1) for bp in blocks])
    w_pw = jnp.concatenate([bp["w_pw"].reshape(-1) for bp in blocks])
    w_fc = params["fc"]["w"].reshape(-1)
    b_fc = params["fc"]["b"].reshape(-1)

    # Batch images per grid step, but keep >=2 grid steps when the batch
    # splits evenly so both v7x TensorCores get work (no-op on v5e/v6e).
    if N >= 2 and N % 2 == 0:
        nb = N // 2
    else:
        nb = 1
    grid = (N // nb,)

    kernel = _make_net_kernel(nb, C, H, W, num_blocks, Cout)
    return pl.pallas_call(
        kernel,
        out_shape=jax.ShapeDtypeStruct((N, Cout, H, W), img.dtype),
        grid_spec=pltpu.PrefetchScalarGridSpec(
            num_scalar_prefetch=0,
            grid=grid,
            in_specs=[
                pl.BlockSpec((nb, C, H, W), lambda n: (n, 0, 0, 0)),
                _SMEM_SPEC,   # w_dw (flat)
                _SMEM_SPEC,   # w_pw (flat)
                _SMEM_SPEC,   # w_fc (flat)
                _SMEM_SPEC,   # b_fc
            ],
            out_specs=pl.BlockSpec((nb, Cout, H, W), lambda n: (n, 0, 0, 0)),
            scratch_shapes=[pltpu.VMEM((nb, C, H + 2, W + 2), jnp.float32)],
        ),
        compiler_params=pltpu.CompilerParams(
            dimension_semantics=("parallel",)),
    )(img, w_dw, w_pw, w_fc, b_fc)


# ---------------------------------------------------------------------------
# Deterministic parameter init (kaiming_uniform(a=sqrt(5)) == U(+-1/sqrt(fan_in)))
# ---------------------------------------------------------------------------
def init_params(key, inplane=3):
    # NOTE: with stride=1 the PyTorch block0 adds a 3-channel residual to an
    # `inplane`-channel output, which only type-checks when inplane == 3.
    def unif(k, shape, fan_in):
        bound = 1.0 / (fan_in ** 0.5)
        return jax.random.uniform(k, shape, jnp.float32, -bound, bound)

    keys = jax.random.split(key, 10)
    chans = [(3, inplane), (inplane, inplane), (inplane, inplane), (inplane, inplane)]
    blocks = []
    for i, (cin, cout) in enumerate(chans):
        k_dw, k_pw = jax.random.split(keys[i])
        blocks.append({
            # torch depthwise weight (cin, 1, 3, 3) stored as (cin, 3, 3)
            "w_dw": unif(k_dw, (cin, 3, 3), 1 * 3 * 3),
            # torch 1x1 weight (cout, cin, 1, 1) stored as (cout, cin)
            "w_pw": unif(k_pw, (cout, cin), cin * 1 * 1),
        })
    k_w, k_b = jax.random.split(keys[9])
    fc = {
        "w": unif(k_w, (3, inplane, 3, 3), inplane * 3 * 3),
        "b": unif(k_b, (3,), inplane * 3 * 3),
    }
    return {"blocks": blocks, "fc": fc}


# ---------------------------------------------------------------------------
# Pure-JAX reference (correctness check of the fused Pallas kernel)
# ---------------------------------------------------------------------------
def _ref_net(params, img):
    dn = ("NCHW", "OIHW", "NCHW")
    x = img
    for bp in params["blocks"]:
        C = x.shape[1]
        y = jax.lax.conv_general_dilated(
            x, bp["w_dw"][:, None, :, :], (1, 1), ((1, 1), (1, 1)),
            feature_group_count=C, dimension_numbers=dn)
        y = jax.nn.relu(y)
        y = jax.lax.conv_general_dilated(
            y, bp["w_pw"][:, :, None, None], (1, 1), ((0, 0), (0, 0)),
            dimension_numbers=dn)
        x = y + x
    y = jax.lax.conv_general_dilated(
        x, params["fc"]["w"], (1, 1), ((1, 1), (1, 1)), dimension_numbers=dn)
    return y + params["fc"]["b"][None, :, None, None]


if __name__ == "__main__":
    key = jax.random.PRNGKey(0)
    k_img, k_par = jax.random.split(key)

    inplane = 3                               # forced by the stride=1 residual
    img = jax.random.normal(k_img, (2, 3, 16, 16), jnp.float32)  # NCHW
    params = init_params(k_par, inplane)

    out = jax.jit(net_forward)(params, img)
    out = jax.block_until_ready(out)
    assert out.shape == (2, 3, 16, 16)

    ref = _ref_net(params, img)
    max_err = float(jnp.max(jnp.abs(out - ref)))
    assert max_err < 1e-4, f"mismatch vs reference: {max_err}"

    print("KERNEL_OK")
</pallas_src>

<mosaic_0001>
module attributes {stable_mosaic.version = 11 : i64} {
  func.func @kernel(%arg0: i32, %arg1: memref<1x3x16x16xf32, #tpu.memory_space<vmem>>, %arg2: memref<108xf32, #tpu.memory_space<smem>>, %arg3: memref<36xf32, #tpu.memory_space<smem>>, %arg4: memref<81xf32, #tpu.memory_space<smem>>, %arg5: memref<3xf32, #tpu.memory_space<smem>>, %arg6: memref<1x3x16x16xf32, #tpu.memory_space<vmem>>, %arg7: memref<1x3x18x18xf32, #tpu.memory_space<vmem>>) attributes {dimension_semantics = [#tpu.dimension_semantics<parallel>], iteration_bounds = array<i64: 2>, scalar_prefetch = 0 : i64, scratch_operands = 1 : i64, tpu.core_type = #tpu.core_type<tc>, window_params = [{transform_indices = @transform_0, window_bounds = array<i64: 1, 3, 16, 16>}, {transform_indices = @transform_1, window_bounds = array<i64: 108>}, {transform_indices = @transform_2, window_bounds = array<i64: 36>}, {transform_indices = @transform_3, window_bounds = array<i64: 81>}, {transform_indices = @transform_4, window_bounds = array<i64: 3>}, {transform_indices = @transform_5, window_bounds = array<i64: 1, 3, 16, 16>}]} {
    %cst = arith.constant 0.000000e+00 : f32
    %0 = vector.broadcast %cst : f32 to vector<1x3x18x18xf32>
    %c0 = arith.constant 0 : index
    %c0_0 = arith.constant 0 : index
    %c0_1 = arith.constant 0 : index
    %c0_2 = arith.constant 0 : index
    %1 = vector.load %arg7[%c0, %c0_0, %c0_1, %c0_2] : memref<1x3x18x18xf32, #tpu.memory_space<vmem>>, vector<1x3x18x18xf32>
    tpu.vector_store %arg7[%c0, %c0_0, %c0_1, %c0_2], %0 {strides = array<i32>} : memref<1x3x18x18xf32, #tpu.memory_space<vmem>>, vector<1x3x18x18xf32>,
    %c0_3 = arith.constant 0 : index
    %c0_4 = arith.constant 0 : index
    %c0_5 = arith.constant 0 : index
    %c0_6 = arith.constant 0 : index
    %2 = vector.load %arg1[%c0_3, %c0_4, %c0_5, %c0_6] : memref<1x3x16x16xf32, #tpu.memory_space<vmem>>, vector<1x1x16x16xf32>
    %3 = vector.shape_cast %2 : vector<1x1x16x16xf32> to vector<16x16xf32>
    %c0_7 = arith.constant 0 : index
    %c0_8 = arith.constant 0 : index
    %c1 = arith.constant 1 : index
    %c1_9 = arith.constant 1 : index
    %4 = vector.load %arg7[%c0_7, %c0_8, %c1, %c1_9] : memref<1x3x18x18xf32, #tpu.memory_space<vmem>>, vector<1x1x16x16xf32>
    %5 = vector.shape_cast %4 : vector<1x1x16x16xf32> to vector<16x16xf32>
    %6 = vector.shape_cast %3 : vector<16x16xf32> to vector<1x1x16x16xf32>
    tpu.vector_store %arg7[%c0_7, %c0_8, %c1, %c1_9], %6 {strides = array<i32>} : memref<1x3x18x18xf32, #tpu.memory_space<vmem>>, vector<1x1x16x16xf32>,
    %c0_10 = arith.constant 0 : index
    %c1_11 = arith.constant 1 : index
    %c0_12 = arith.constant 0 : index
    %c0_13 = arith.constant 0 : index
    %7 = vector.load %arg1[%c0_10, %c1_11, %c0_12, %c0_13] : memref<1x3x16x16xf32, #tpu.memory_space<vmem>>, vector<1x1x16x16xf32>
    %8 = vector.shape_cast %7 : vector<1x1x16x16xf32> to vector<16x16xf32>
    %c0_14 = arith.constant 0 : index
    %c1_15 = arith.constant 1 : index
    %c1_16 = arith.constant 1 : index
    %c1_17 = arith.constant 1 : index
    %9 = vector.load %arg7[%c0_14, %c1_15, %c1_16, %c1_17] : memref<1x3x18x18xf32, #tpu.memory_space<vmem>>, vector<1x1x16x16xf32>
    %10 = vector.shape_cast %9 : vector<1x1x16x16xf32> to vector<16x16xf32>
    %11 = vector.shape_cast %8 : vector<16x16xf32> to vector<1x1x16x16xf32>
    tpu.vector_store %arg7[%c0_14, %c1_15, %c1_16, %c1_17], %11 {strides = array<i32>} : memref<1x3x18x18xf32, #tpu.memory_space<vmem>>, vector<1x1x16x16xf32>,
    %c0_18 = arith.constant 0 : index
    %c2 = arith.constant 2 : index
    %c0_19 = arith.constant 0 : index
    %c0_20 = arith.constant 0 : index
    %12 = vector.load %arg1[%c0_18, %c2, %c0_19, %c0_20] : memref<1x3x16x16xf32, #tpu.memory_space<vmem>>, vector<1x1x16x16xf32>
    %13 = vector.shape_cast %12 : vector<1x1x16x16xf32> to vector<16x16xf32>
    %c0_21 = arith.constant 0 : index
    %c2_22 = arith.constant 2 : index
    %c1_23 = arith.constant 1 : index
    %c1_24 = arith.constant 1 : index
    %14 = vector.load %arg7[%c0_21, %c2_22, %c1_23, %c1_24] : memref<1x3x18x18xf32, #tpu.memory_space<vmem>>, vector<1x1x16x16xf32>
    %15 = vector.shape_cast %14 : vector<1x1x16x16xf32> to vector<16x16xf32>
    %16 = vector.shape_cast %13 : vector<16x16xf32> to vector<1x1x16x16xf32>
    tpu.vector_store %arg7[%c0_21, %c2_22, %c1_23, %c1_24], %16 {strides = array<i32>} : memref<1x3x18x18xf32, #tpu.memory_space<vmem>>, vector<1x1x16x16xf32>,
    %c0_25 = arith.constant 0 : index
    %c0_26 = arith.constant 0 : index
    %c0_27 = arith.constant 0 : index
    %c0_28 = arith.constant 0 : index
    %17 = vector.load %arg7[%c0_25, %c0_26, %c0_27, %c0_28] : memref<1x3x18x18xf32, #tpu.memory_space<vmem>>, vector<1x1x18x18xf32>
    %18 = vector.shape_cast %17 : vector<1x1x18x18xf32> to vector<18x18xf32>
    %19 = vector.extract_strided_slice %18 {offsets = [0, 0], sizes = [18, 16], strides = [1, 1]} : vector<18x18xf32> to vector<18x16xf32>
    %20 = vector.extract_strided_slice %18 {offsets = [0, 1], sizes = [18, 16], strides = [1, 1]} : vector<18x18xf32> to vector<18x16xf32>
    %21 = vector.extract_strided_slice %18 {offsets = [0, 2], sizes = [18, 16], strides = [1, 1]} : vector<18x18xf32> to vector<18x16xf32>
    %22 = vector.extract_strided_slice %20 {offsets = [1, 0], sizes = [16, 16], strides = [1, 1]} : vector<18x16xf32> to vector<16x16xf32>
    %cst_29 = arith.constant 0.000000e+00 : f32
    %23 = vector.broadcast %cst_29 : f32 to vector<16x16xf32>
    %c0_30 = arith.constant 0 : index
    %24 = memref.load %arg2[%c0_30] : memref<108xf32, #tpu.memory_space<smem>>
    %25 = vector.extract_strided_slice %19 {offsets = [0, 0], sizes = [16, 16], strides = [1, 1]} : vector<18x16xf32> to vector<16x16xf32>
    %26 = vector.broadcast %24 : f32 to vector<16x16xf32>
    %27 = arith.mulf %25, %26 : vector<16x16xf32>
    %28 = arith.addf %23, %27 : vector<16x16xf32>
    %c1_31 = arith.constant 1 : index
    %29 = memref.load %arg2[%c1_31] : memref<108xf32, #tpu.memory_space<smem>>
    %30 = vector.extract_strided_slice %20 {offsets = [0, 0], sizes = [16, 16], strides = [1, 1]} : vector<18x16xf32> to vector<16x16xf32>
    %31 = vector.broadcast %29 : f32 to vector<16x16xf32>
    %32 = arith.mulf %30, %31 : vector<16x16xf32>
    %33 = arith.addf %28, %32 : vector<16x16xf32>
    %c2_32 = arith.constant 2 : index
    %34 = memref.load %arg2[%c2_32] : memref<108xf32, #tpu.memory_space<smem>>
    %35 = vector.extract_strided_slice %21 {offsets = [0, 0], sizes = [16, 16], strides = [1, 1]} : vector<18x16xf32> to vector<16x16xf32>
    %36 = vector.broadcast %34 : f32 to vector<16x16xf32>
    %37 = arith.mulf %35, %36 : vector<16x16xf32>
    %38 = arith.addf %33, %37 : vector<16x16xf32>
    %c3 = arith.constant 3 : index
    %39 = memref.load %arg2[%c3] : memref<108xf32, #tpu.memory_space<smem>>
    %40 = vector.extract_strided_slice %19 {offsets = [1, 0], sizes = [16, 16], strides = [1, 1]} : vector<18x16xf32> to vector<16x16xf32>
    %41 = vector.broadcast %39 : f32 to vector<16x16xf32>
    %42 = arith.mulf %40, %41 : vector<16x16xf32>
    %43 = arith.addf %38, %42 : vector<16x16xf32>
    %c4 = arith.constant 4 : index
    %44 = memref.load %arg2[%c4] : memref<108xf32, #tpu.memory_space<smem>>
    %45 = vector.extract_strided_slice %20 {offsets = [1, 0], sizes = [16, 16], strides = [1, 1]} : vector<18x16xf32> to vector<16x16xf32>
    %46 = vector.broadcast %44 : f32 to vector<16x16xf32>
    %47 = arith.mulf %45, %46 : vector<16x16xf32>
    %48 = arith.addf %43, %47 : vector<16x16xf32>
    %c5 = arith.constant 5 : index
    %49 = memref.load %arg2[%c5] : memref<108xf32, #tpu.memory_space<smem>>
    %50 = vector.extract_strided_slice %21 {offsets = [1, 0], sizes = [16, 16], strides = [1, 1]} : vector<18x16xf32> to vector<16x16xf32>
    %51 = vector.broadcast %49 : f32 to vector<16x16xf32>
    %52 = arith.mulf %50, %51 : vector<16x16xf32>
    %53 = arith.addf %48, %52 : vector<16x16xf32>
    %c6 = arith.constant 6 : index
    %54 = memref.load %arg2[%c6] : memref<108xf32, #tpu.memory_space<smem>>
    %55 = vector.extract_strided_slice %19 {offsets = [2, 0], sizes = [16, 16], strides = [1, 1]} : vector<18x16xf32> to vector<16x16xf32>
    %56 = vector.broadcast %54 : f32 to vector<16x16xf32>
    %57 = arith.mulf %55, %56 : vector<16x16xf32>
    %58 = arith.addf %53, %57 : vector<16x16xf32>
    %c7 = arith.constant 7 : index
    %59 = memref.load %arg2[%c7] : memref<108xf32, #tpu.memory_space<smem>>
    %60 = vector.extract_strided_slice %20 {offsets = [2, 0], sizes = [16, 16], strides = [1, 1]} : vector<18x16xf32> to vector<16x16xf32>
    %61 = vector.broadcast %59 : f32 to vector<16x16xf32>
    %62 = arith.mulf %60, %61 : vector<16x16xf32>
    %63 = arith.addf %58, %62 : vector<16x16xf32>
    %c8 = arith.constant 8 : index
    %64 = memref.load %arg2[%c8] : memref<108xf32, #tpu.memory_space<smem>>
    %65 = vector.extract_strided_slice %21 {offsets = [2, 0], sizes = [16, 16], strides = [1, 1]} : vector<18x16xf32> to vector<16x16xf32>
    %66 = vector.broadcast %64 : f32 to vector<16x16xf32>
    %67 = arith.mulf %65, %66 : vector<16x16xf32>
    %68 = arith.addf %63, %67 : vector<16x16xf32>
    %cst_33 = arith.constant 0.000000e+00 : f32
    %69 = vector.broadcast %cst_33 : f32 to vector<16x16xf32>
    %70 = arith.maximumf %68, %69 : vector<16x16xf32>
    %c0_34 = arith.constant 0 : index
    %c1_35 = arith.constant 1 : index
    %c0_36 = arith.constant 0 : index
    %c0_37 = arith.constant 0 : index
    %71 = vector.load %arg7[%c0_34, %c1_35, %c0_36, %c0_37] : memref<1x3x18x18xf32, #tpu.memory_space<vmem>>, vector<1x1x18x18xf32>
    %72 = vector.shape_cast %71 : vector<1x1x18x18xf32> to vector<18x18xf32>
    %73 = vector.extract_strided_slice %72 {offsets = [0, 0], sizes = [18, 16], strides = [1, 1]} : vector<18x18xf32> to vector<18x16xf32>
    %74 = vector.extract_strided_slice %72 {offsets = [0, 1], sizes = [18, 16], strides = [1, 1]} : vector<18x18xf32> to vector<18x16xf32>
    %75 = vector.extract_strided_slice %72 {offsets = [0, 2], sizes = [18, 16], strides = [1, 1]} : vector<18x18xf32> to vector<18x16xf32>
    %76 = vector.extract_strided_slice %74 {offsets = [1, 0], sizes = [16, 16], strides = [1, 1]} : vector<18x16xf32> to vector<16x16xf32>
    %cst_38 = arith.constant 0.000000e+00 : f32
    %77 = vector.broadcast %cst_38 : f32 to vector<16x16xf32>
    %c9 = arith.constant 9 : index
    %78 = memref.load %arg2[%c9] : memref<108xf32, #tpu.memory_space<smem>>
    %79 = vector.extract_strided_slice %73 {offsets = [0, 0], sizes = [16, 16], strides = [1, 1]} : vector<18x16xf32> to vector<16x16xf32>
    %80 = vector.broadcast %78 : f32 to vector<16x16xf32>
    %81 = arith.mulf %79, %80 : vector<16x16xf32>
    %82 = arith.addf %77, %81 : vector<16x16xf32>
    %c10 = arith.constant 10 : index
    %83 = memref.load %arg2[%c10] : memref<108xf32, #tpu.memory_space<smem>>
    %84 = vector.extract_strided_slice %74 {offsets = [0, 0], sizes = [16, 16], strides = [1, 1]} : vector<18x16xf32> to vector<16x16xf32>
    %85 = vector.broadcast %83 : f32 to vector<16x16xf32>
    %86 = arith.mulf %84, %85 : vector<16x16xf32>
    %87 = arith.addf %82, %86 : vector<16x16xf32>
    %c11 = arith.constant 11 : index
    %88 = memref.load %arg2[%c11] : memref<108xf32, #tpu.memory_space<smem>>
    %89 = vector.extract_strided_slice %75 {offsets = [0, 0], sizes = [16, 16], strides = [1, 1]} : vector<18x16xf32> to vector<16x16xf32>
    %90 = vector.broadcast %88 : f32 to vector<16x16xf32>
    %91 = arith.mulf %89, %90 : vector<16x16xf32>
    %92 = arith.addf %87, %91 : vector<16x16xf32>
    %c12 = arith.constant 12 : index
    %93 = memref.load %arg2[%c12] : memref<108xf32, #tpu.memory_space<smem>>
    %94 = vector.extract_strided_slice %73 {offsets = [1, 0], sizes = [16, 16], strides = [1, 1]} : vector<18x16xf32> to vector<16x16xf32>
    %95 = vector.broadcast %93 : f32 to vector<16x16xf32>
    %96 = arith.mulf %94, %95 : vector<16x16xf32>
    %97 = arith.addf %92, %96 : vector<16x16xf32>
    %c13 = arith.constant 13 : index
    %98 = memref.load %arg2[%c13] : memref<108xf32, #tpu.memory_space<smem>>
    %99 = vector.extract_strided_slice %74 {offsets = [1, 0], sizes = [16, 16], strides = [1, 1]} : vector<18x16xf32> to vector<16x16xf32>
    %100 = vector.broadcast %98 : f32 to vector<16x16xf32>
    %101 = arith.mulf %99, %100 : vector<16x16xf32>
    %102 = arith.addf %97, %101 : vector<16x16xf32>
    %c14 = arith.constant 14 : index
    %103 = memref.load %arg2[%c14] : memref<108xf32, #tpu.memory_space<smem>>
    %104 = vector.extract_strided_slice %75 {offsets = [1, 0], sizes = [16, 16], strides = [1, 1]} : vector<18x16xf32> to vector<16x16xf32>
    %105 = vector.broadcast %103 : f32 to vector<16x16xf32>
    %106 = arith.mulf %104, %105 : vector<16x16xf32>
    %107 = arith.addf %102, %106 : vector<16x16xf32>
    %c15 = arith.constant 15 : index
    %108 = memref.load %arg2[%c15] : memref<108xf32, #tpu.memory_space<smem>>
    %109 = vector.extract_strided_slice %73 {offsets = [2, 0], sizes = [16, 16], strides = [1, 1]} : vector<18x16xf32> to vector<16x16xf32>
    %110 = vector.broadcast %108 : f32 to vector<16x16xf32>
    %111 = arith.mulf %109, %110 : vector<16x16xf32>
    %112 = arith.addf %107, %111 : vector<16x16xf32>
    %c16 = arith.constant 16 : index
    %113 = memref.load %arg2[%c16] : memref<108xf32, #tpu.memory_space<smem>>
    %114 = vector.extract_strided_slice %74 {offsets = [2, 0], sizes = [16, 16], strides = [1, 1]} : vector<18x16xf32> to vector<16x16xf32>
    %115 = vector.broadcast %113 : f32 to vector<16x16xf32>
    %116 = arith.mulf %114, %115 : vector<16x16xf32>
    %117 = arith.addf %112, %116 : vector<16x16xf32>
    %c17 = arith.constant 17 : index
    %118 = memref.load %arg2[%c17] : memref<108xf32, #tpu.memory_space<smem>>
    %119 = vector.extract_strided_slice %75 {offsets = [2, 0], sizes = [16, 16], strides = [1, 1]} : vector<18x16xf32> to vector<16x16xf32>
    %120 = vector.broadcast %118 : f32 to vector<16x16xf32>
    %121 = arith.mulf %119, %120 : vector<16x16xf32>
    %122 = arith.addf %117, %121 : vector<16x16xf32>
    %cst_39 = arith.constant 0.000000e+00 : f32
    %123 = vector.broadcast %cst_39 : f32 to vector<16x16xf32>
    %124 = arith.maximumf %122, %123 : vector<16x16xf32>
    %c0_40 = arith.constant 0 : index
    %c2_41 = arith.constant 2 : index
    %c0_42 = arith.constant 0 : index
    %c0_43 = arith.constant 0 : index
    %125 = vector.load %arg7[%c0_40, %c2_41, %c0_42, %c0_43] : memref<1x3x18x18xf32, #tpu.memory_space<vmem>>, vector<1x1x18x18xf32>
    %126 = vector.shape_cast %125 : vector<1x1x18x18xf32> to vector<18x18xf32>
    %127 = vector.extract_strided_slice %126 {offsets = [0, 0], sizes = [18, 16], strides = [1, 1]} : vector<18x18xf32> to vector<18x16xf32>
    %128 = vector.extract_strided_slice %126 {offsets = [0, 1], sizes = [18, 16], strides = [1, 1]} : vector<18x18xf32> to vector<18x16xf32>
    %129 = vector.extract_strided_slice %126 {offsets = [0, 2], sizes = [18, 16], strides = [1, 1]} : vector<18x18xf32> to vector<18x16xf32>
    %130 = vector.extract_strided_slice %128 {offsets = [1, 0], sizes = [16, 16], strides = [1, 1]} : vector<18x16xf32> to vector<16x16xf32>
    %cst_44 = arith.constant 0.000000e+00 : f32
    %131 = vector.broadcast %cst_44 : f32 to vector<16x16xf32>
    %c18 = arith.constant 18 : index
    %132 = memref.load %arg2[%c18] : memref<108xf32, #tpu.memory_space<smem>>
    %133 = vector.extract_strided_slice %127 {offsets = [0, 0], sizes = [16, 16], strides = [1, 1]} : vector<18x16xf32> to vector<16x16xf32>
    %134 = vector.broadcast %132 : f32 to vector<16x16xf32>
    %135 = arith.mulf %133, %134 : vector<16x16xf32>
    %136 = arith.addf %131, %135 : vector<16x16xf32>
    %c19 = arith.constant 19 : index
    %137 = memref.load %arg2[%c19] : memref<108xf32, #tpu.memory_space<smem>>
    %138 = vector.extract_strided_slice %128 {offsets = [0, 0], sizes = [16, 16], strides = [1, 1]} : vector<18x16xf32> to vector<16x16xf32>
    %139 = vector.broadcast %137 : f32 to vector<16x16xf32>
    %140 = arith.mulf %138, %139 : vector<16x16xf32>
    %141 = arith.addf %136, %140 : vector<16x16xf32>
    %c20 = arith.constant 20 : index
    %142 = memref.load %arg2[%c20] : memref<108xf32, #tpu.memory_space<smem>>
    %143 = vector.extract_strided_slice %129 {offsets = [0, 0], sizes = [16, 16], strides = [1, 1]} : vector<18x16xf32> to vector<16x16xf32>
    %144 = vector.broadcast %142 : f32 to vector<16x16xf32>
    %145 = arith.mulf %143, %144 : vector<16x16xf32>
    %146 = arith.addf %141, %145 : vector<16x16xf32>
    %c21 = arith.constant 21 : index
    %147 = memref.load %arg2[%c21] : memref<108xf32, #tpu.memory_space<smem>>
    %148 = vector.extract_strided_slice %127 {offsets = [1, 0], sizes = [16, 16], strides = [1, 1]} : vector<18x16xf32> to vector<16x16xf32>
    %149 = vector.broadcast %147 : f32 to vector<16x16xf32>
    %150 = arith.mulf %148, %149 : vector<16x16xf32>
    %151 = arith.addf %146, %150 : vector<16x16xf32>
    %c22 = arith.constant 22 : index
    %152 = memref.load %arg2[%c22] : memref<108xf32, #tpu.memory_space<smem>>
    %153 = vector.extract_strided_slice %128 {offsets = [1, 0], sizes = [16, 16], strides = [1, 1]} : vector<18x16xf32> to vector<16x16xf32>
    %154 = vector.broadcast %152 : f32 to vector<16x16xf32>
    %155 = arith.mulf %153, %154 : vector<16x16xf32>
    %156 = arith.addf %151, %155 : vector<16x16xf32>
    %c23 = arith.constant 23 : index
    %157 = memref.load %arg2[%c23] : memref<108xf32, #tpu.memory_space<smem>>
    %158 = vector.extract_strided_slice %129 {offsets = [1, 0], sizes = [16, 16], strides = [1, 1]} : vector<18x16xf32> to vector<16x16xf32>
    %159 = vector.broadcast %157 : f32 to vector<16x16xf32>
    %160 = arith.mulf %158, %159 : vector<16x16xf32>
    %161 = arith.addf %156, %160 : vector<16x16xf32>
    %c24 = arith.constant 24 : index
    %162 = memref.load %arg2[%c24] : memref<108xf32, #tpu.memory_space<smem>>
    %163 = vector.extract_strided_slice %127 {offsets = [2, 0], sizes = [16, 16], strides = [1, 1]} : vector<18x16xf32> to vector<16x16xf32>
    %164 = vector.broadcast %162 : f32 to vector<16x16xf32>
    %165 = arith.mulf %163, %164 : vector<16x16xf32>
    %166 = arith.addf %161, %165 : vector<16x16xf32>
    %c25 = arith.constant 25 : index
    %167 = memref.load %arg2[%c25] : memref<108xf32, #tpu.memory_space<smem>>
    %168 = vector.extract_strided_slice %128 {offsets = [2, 0], sizes = [16, 16], strides = [1, 1]} : vector<18x16xf32> to vector<16x16xf32>
    %169 = vector.broadcast %167 : f32 to vector<16x16xf32>
    %170 = arith.mulf %168, %169 : vector<16x16xf32>
    %171 = arith.addf %166, %170 : vector<16x16xf32>
    %c26 = arith.constant 26 : index
    %172 = memref.load %arg2[%c26] : memref<108xf32, #tpu.memory_space<smem>>
    %173 = vector.extract_strided_slice %129 {offsets = [2, 0], sizes = [16, 16], strides = [1, 1]} : vector<18x16xf32> to vector<16x16xf32>
    %174 = vector.broadcast %172 : f32 to vector<16x16xf32>
    %175 = arith.mulf %173, %174 : vector<16x16xf32>
    %176 = arith.addf %171, %175 : vector<16x16xf32>
    %cst_45 = arith.constant 0.000000e+00 : f32
    %177 = vector.broadcast %cst_45 : f32 to vector<16x16xf32>
    %178 = arith.maximumf %176, %177 : vector<16x16xf32>
    %c0_46 = arith.constant 0 : index
    %179 = memref.load %arg3[%c0_46] : memref<36xf32, #tpu.memory_space<smem>>
    %180 = vector.broadcast %179 : f32 to vector<16x16xf32>
    %181 = arith.mulf %70, %180 : vector<16x16xf32>
    %182 = arith.addf %22, %181 : vector<16x16xf32>
    %c1_47 = arith.constant 1 : index
    %183 = memref.load %arg3[%c1_47] : memref<36xf32, #tpu.memory_space<smem>>
    %184 = vector.broadcast %183 : f32 to vector<16x16xf32>
    %185 = arith.mulf %124, %184 : vector<16x16xf32>
    %186 = arith.addf %182, %185 : vector<16x16xf32>
    %c2_48 = arith.constant 2 : index
    %187 = memref.load %arg3[%c2_48] : memref<36xf32, #tpu.memory_space<smem>>
    %188 = vector.broadcast %187 : f32 to vector<16x16xf32>
    %189 = arith.mulf %178, %188 : vector<16x16xf32>
    %190 = arith.addf %186, %189 : vector<16x16xf32>
    %c3_49 = arith.constant 3 : index
    %191 = memref.load %arg3[%c3_49] : memref<36xf32, #tpu.memory_space<smem>>
    %192 = vector.broadcast %191 : f32 to vector<16x16xf32>
    %193 = arith.mulf %70, %192 : vector<16x16xf32>
    %194 = arith.addf %76, %193 : vector<16x16xf32>
    %c4_50 = arith.constant 4 : index
    %195 = memref.load %arg3[%c4_50] : memref<36xf32, #tpu.memory_space<smem>>
    %196 = vector.broadcast %195 : f32 to vector<16x16xf32>
    %197 = arith.mulf %124, %196 : vector<16x16xf32>
    %198 = arith.addf %194, %197 : vector<16x16xf32>
    %c5_51 = arith.constant 5 : index
    %199 = memref.load %arg3[%c5_51] : memref<36xf32, #tpu.memory_space<smem>>
    %200 = vector.broadcast %199 : f32 to vector<16x16xf32>
    %201 = arith.mulf %178, %200 : vector<16x16xf32>
    %202 = arith.addf %198, %201 : vector<16x16xf32>
    %c6_52 = arith.constant 6 : index
    %203 = memref.load %arg3[%c6_52] : memref<36xf32, #tpu.memory_space<smem>>
    %204 = vector.broadcast %203 : f32 to vector<16x16xf32>
    %205 = arith.mulf %70, %204 : vector<16x16xf32>
    %206 = arith.addf %130, %205 : vector<16x16xf32>
    %c7_53 = arith.constant 7 : index
    %207 = memref.load %arg3[%c7_53] : memref<36xf32, #tpu.memory_space<smem>>
    %208 = vector.broadcast %207 : f32 to vector<16x16xf32>
    %209 = arith.mulf %124, %208 : vector<16x16xf32>
    %210 = arith.addf %206, %209 : vector<16x16xf32>
    %c8_54 = arith.constant 8 : index
    %211 = memref.load %arg3[%c8_54] : memref<36xf32, #tpu.memory_space<smem>>
    %212 = vector.broadcast %211 : f32 to vector<16x16xf32>
    %213 = arith.mulf %178, %212 : vector<16x16xf32>
    %214 = arith.addf %210, %213 : vector<16x16xf32>
    %c0_55 = arith.constant 0 : index
    %c0_56 = arith.constant 0 : index
    %c1_57 = arith.constant 1 : index
    %c1_58 = arith.constant 1 : index
    %215 = vector.load %arg7[%c0_55, %c0_56, %c1_57, %c1_58] : memref<1x3x18x18xf32, #tpu.memory_space<vmem>>, vector<1x1x16x16xf32>
    %216 = vector.shape_cast %215 : vector<1x1x16x16xf32> to vector<16x16xf32>
    %217 = vector.shape_cast %190 : vector<16x16xf32> to vector<1x1x16x16xf32>
    tpu.vector_store %arg7[%c0_55, %c0_56, %c1_57, %c1_58], %217 {strides = array<i32>} : memref<1x3x18x18xf32, #tpu.memory_space<vmem>>, vector<1x1x16x16xf32>,
    %c0_59 = arith.constant 0 : index
    %c1_60 = arith.constant 1 : index
    %c1_61 = arith.constant 1 : index
    %c1_62 = arith.constant 1 : index
    %218 = vector.load %arg7[%c0_59, %c1_60, %c1_61, %c1_62] : memref<1x3x18x18xf32, #tpu.memory_space<vmem>>, vector<1x1x16x16xf32>
    %219 = vector.shape_cast %218 : vector<1x1x16x16xf32> to vector<16x16xf32>
    %220 = vector.shape_cast %202 : vector<16x16xf32> to vector<1x1x16x16xf32>
    tpu.vector_store %arg7[%c0_59, %c1_60, %c1_61, %c1_62], %220 {strides = array<i32>} : memref<1x3x18x18xf32, #tpu.memory_space<vmem>>, vector<1x1x16x16xf32>,
    %c0_63 = arith.constant 0 : index
    %c2_64 = arith.constant 2 : index
    %c1_65 = arith.constant 1 : index
    %c1_66 = arith.constant 1 : index
    %221 = vector.load %arg7[%c0_63, %c2_64, %c1_65, %c1_66] : memref<1x3x18x18xf32, #tpu.memory_space<vmem>>, vector<1x1x16x16xf32>
    %222 = vector.shape_cast %221 : vector<1x1x16x16xf32> to vector<16x16xf32>
    %223 = vector.shape_cast %214 : vector<16x16xf32> to vector<1x1x16x16xf32>
    tpu.vector_store %arg7[%c0_63, %c2_64, %c1_65, %c1_66], %223 {strides = array<i32>} : memref<1x3x18x18xf32, #tpu.memory_space<vmem>>, vector<1x1x16x16xf32>,
    %c0_67 = arith.constant 0 : index
    %c0_68 = arith.constant 0 : index
    %c0_69 = arith.constant 0 : index
    %c0_70 = arith.constant 0 : index
    %224 = vector.load %arg7[%c0_67, %c0_68, %c0_69, %c0_70] : memref<1x3x18x18xf32, #tpu.memory_space<vmem>>, vector<1x1x18x18xf32>
    %225 = vector.shape_cast %224 : vector<1x1x18x18xf32> to vector<18x18xf32>
    %226 = vector.extract_strided_slice %225 {offsets = [0, 0], sizes = [18, 16], strides = [1, 1]} : vector<18x18xf32> to vector<18x16xf32>
    %227 = vector.extract_strided_slice %225 {offsets = [0, 1], sizes = [18, 16], strides = [1, 1]} : vector<18x18xf32> to vector<18x16xf32>
    %228 = vector.extract_strided_slice %225 {offsets = [0, 2], sizes = [18, 16], strides = [1, 1]} : vector<18x18xf32> to vector<18x16xf32>
    %229 = vector.extract_strided_slice %227 {offsets = [1, 0], sizes = [16, 16], strides = [1, 1]} : vector<18x16xf32> to vector<16x16xf32>
    %cst_71 = arith.constant 0.000000e+00 : f32
    %230 = vector.broadcast %cst_71 : f32 to vector<16x16xf32>
    %c27 = arith.constant 27 : index
    %231 = memref.load %arg2[%c27] : memref<108xf32, #tpu.memory_space<smem>>
    %232 = vector.extract_strided_slice %226 {offsets = [0, 0], sizes = [16, 16], strides = [1, 1]} : vector<18x16xf32> to vector<16x16xf32>
    %233 = vector.broadcast %231 : f32 to vector<16x16xf32>
    %234 = arith.mulf %232, %233 : vector<16x16xf32>
    %235 = arith.addf %230, %234 : vector<16x16xf32>
    %c28 = arith.constant 28 : index
    %236 = memref.load %arg2[%c28] : memref<108xf32, #tpu.memory_space<smem>>
    %237 = vector.extract_strided_slice %227 {offsets = [0, 0], sizes = [16, 16], strides = [1, 1]} : vector<18x16xf32> to vector<16x16xf32>
    %238 = vector.broadcast %236 : f32 to vector<16x16xf32>
    %239 = arith.mulf %237, %238 : vector<16x16xf32>
    %240 = arith.addf %235, %239 : vector<16x16xf32>
    %c29 = arith.constant 29 : index
    %241 = memref.load %arg2[%c29] : memref<108xf32, #tpu.memory_space<smem>>
    %242 = vector.extract_strided_slice %228 {offsets = [0, 0], sizes = [16, 16], strides = [1, 1]} : vector<18x16xf32> to vector<16x16xf32>
    %243 = vector.broadcast %241 : f32 to vector<16x16xf32>
    %244 = arith.mulf %242, %243 : vector<16x16xf32>
    %245 = arith.addf %240, %244 : vector<16x16xf32>
    %c30 = arith.constant 30 : index
    %246 = memref.load %arg2[%c30] : memref<108xf32, #tpu.memory_space<smem>>
    %247 = vector.extract_strided_slice %226 {offsets = [1, 0], sizes = [16, 16], strides = [1, 1]} : vector<18x16xf32> to vector<16x16xf32>
    %248 = vector.broadcast %246 : f32 to vector<16x16xf32>
    %249 = arith.mulf %247, %248 : vector<16x16xf32>
    %250 = arith.addf %245, %249 : vector<16x16xf32>
    %c31 = arith.constant 31 : index
    %251 = memref.load %arg2[%c31] : memref<108xf32, #tpu.memory_space<smem>>
    %252 = vector.extract_strided_slice %227 {offsets = [1, 0], sizes = [16, 16], strides = [1, 1]} : vector<18x16xf32> to vector<16x16xf32>
    %253 = vector.broadcast %251 : f32 to vector<16x16xf32>
    %254 = arith.mulf %252, %253 : vector<16x16xf32>
    %255 = arith.addf %250, %254 : vector<16x16xf32>
    %c32 = arith.constant 32 : index
    %256 = memref.load %arg2[%c32] : memref<108xf32, #tpu.memory_space<smem>>
    %257 = vector.extract_strided_slice %228 {offsets = [1, 0], sizes = [16, 16], strides = [1, 1]} : vector<18x16xf32> to vector<16x16xf32>
    %258 = vector.broadcast %256 : f32 to vector<16x16xf32>
    %259 = arith.mulf %257, %258 : vector<16x16xf32>
    %260 = arith.addf %255, %259 : vector<16x16xf32>
    %c33 = arith.constant 33 : index
    %261 = memref.load %arg2[%c33] : memref<108xf32, #tpu.memory_space<smem>>
    %262 = vector.extract_strided_slice %226 {offsets = [2, 0], sizes = [16, 16], strides = [1, 1]} : vector<18x16xf32> to vector<16x16xf32>
    %263 = vector.broadcast %261 : f32 to vector<16x16xf32>
    %264 = arith.mulf %262, %263 : vector<16x16xf32>
    %265 = arith.addf %260, %264 : vector<16x16xf32>
    %c34 = arith.constant 34 : index
    %266 = memref.load %arg2[%c34] : memref<108xf32, #tpu.memory_space<smem>>
    %267 = vector.extract_strided_slice %227 {offsets = [2, 0], sizes = [16, 16], strides = [1, 1]} : vector<18x16xf32> to vector<16x16xf32>
    %268 = vector.broadcast %266 : f32 to vector<16x16xf32>
    %269 = arith.mulf %267, %268 : vector<16x16xf32>
    %270 = arith.addf %265, %269 : vector<16x16xf32>
    %c35 = arith.constant 35 : index
    %271 = memref.load %arg2[%c35] : memref<108xf32, #tpu.memory_space<smem>>
    %272 = vector.extract_strided_slice %228 {offsets = [2, 0], sizes = [16, 16], strides = [1, 1]} : vector<18x16xf32> to vector<16x16xf32>
    %273 = vector.broadcast %271 : f32 to vector<16x16xf32>
    %274 = arith.mulf %272, %273 : vector<16x16xf32>
    %275 = arith.addf %270, %274 : vector<16x16xf32>
    %cst_72 = arith.constant 0.000000e+00 : f32
    %276 = vector.broadcast %cst_72 : f32 to vector<16x16xf32>
    %277 = arith.maximumf %275, %276 : vector<16x16xf32>
    %c0_73 = arith.constant 0 : index
    %c1_74 = arith.constant 1 : index
    %c0_75 = arith.constant 0 : index
    %c0_76 = arith.constant 0 : index
    %278 = vector.load %arg7[%c0_73, %c1_74, %c0_75, %c0_76] : memref<1x3x18x18xf32, #tpu.memory_space<vmem>>, vector<1x1x18x18xf32>
    %279 = vector.shape_cast %278 : vector<1x1x18x18xf32> to vector<18x18xf32>
    %280 = vector.extract_strided_slice %279 {offsets = [0, 0], sizes = [18, 16], strides = [1, 1]} : vector<18x18xf32> to vector<18x16xf32>
    %281 = vector.extract_strided_slice %279 {offsets = [0, 1], sizes = [18, 16], strides = [1, 1]} : vector<18x18xf32> to vector<18x16xf32>
    %282 = vector.extract_strided_slice %279 {offsets = [0, 2], sizes = [18, 16], strides = [1, 1]} : vector<18x18xf32> to vector<18x16xf32>
    %283 = vector.extract_strided_slice %281 {offsets = [1, 0], sizes = [16, 16], strides = [1, 1]} : vector<18x16xf32> to vector<16x16xf32>
    %cst_77 = arith.constant 0.000000e+00 : f32
    %284 = vector.broadcast %cst_77 : f32 to vector<16x16xf32>
    %c36 = arith.constant 36 : index
    %285 = memref.load %arg2[%c36] : memref<108xf32, #tpu.memory_space<smem>>
    %286 = vector.extract_strided_slice %280 {offsets = [0, 0], sizes = [16, 16], strides = [1, 1]} : vector<18x16xf32> to vector<16x16xf32>
    %287 = vector.broadcast %285 : f32 to vector<16x16xf32>
    %288 = arith.mulf %286, %287 : vector<16x16xf32>
    %289 = arith.addf %284, %288 : vector<16x16xf32>
    %c37 = arith.constant 37 : index
    %290 = memref.load %arg2[%c37] : memref<108xf32, #tpu.memory_space<smem>>
    %291 = vector.extract_strided_slice %281 {offsets = [0, 0], sizes = [16, 16], strides = [1, 1]} : vector<18x16xf32> to vector<16x16xf32>
    %292 = vector.broadcast %290 : f32 to vector<16x16xf32>
    %293 = arith.mulf %291, %292 : vector<16x16xf32>
    %294 = arith.addf %289, %293 : vector<16x16xf32>
    %c38 = arith.constant 38 : index
    %295 = memref.load %arg2[%c38] : memref<108xf32, #tpu.memory_space<smem>>
    %296 = vector.extract_strided_slice %282 {offsets = [0, 0], sizes = [16, 16], strides = [1, 1]} : vector<18x16xf32> to vector<16x16xf32>
    %297 = vector.broadcast %295 : f32 to vector<16x16xf32>
    %298 = arith.mulf %296, %297 : vector<16x16xf32>
    %299 = arith.addf %294, %298 : vector<16x16xf32>
    %c39 = arith.constant 39 : index
    %300 = memref.load %arg2[%c39] : memref<108xf32, #tpu.memory_space<smem>>
    %301 = vector.extract_strided_slice %280 {offsets = [1, 0], sizes = [16, 16], strides = [1, 1]} : vector<18x16xf32> to vector<16x16xf32>
    %302 = vector.broadcast %300 : f32 to vector<16x16xf32>
    %303 = arith.mulf %301, %302 : vector<16x16xf32>
    %304 = arith.addf %299, %303 : vector<16x16xf32>
    %c40 = arith.constant 40 : index
    %305 = memref.load %arg2[%c40] : memref<108xf32, #tpu.memory_space<smem>>
    %306 = vector.extract_strided_slice %281 {offsets = [1, 0], sizes = [16, 16], strides = [1, 1]} : vector<18x16xf32> to vector<16x16xf32>
    %307 = vector.broadcast %305 : f32 to vector<16x16xf32>
    %308 = arith.mulf %306, %307 : vector<16x16xf32>
    %309 = arith.addf %304, %308 : vector<16x16xf32>
    %c41 = arith.constant 41 : index
    %310 = memref.load %arg2[%c41] : memref<108xf32, #tpu.memory_space<smem>>
    %311 = vector.extract_strided_slice %282 {offsets = [1, 0], sizes = [16, 16], strides = [1, 1]} : vector<18x16xf32> to vector<16x16xf32>
    %312 = vector.broadcast %310 : f32 to vector<16x16xf32>
    %313 = arith.mulf %311, %312 : vector<16x16xf32>
    %314 = arith.addf %309, %313 : vector<16x16xf32>
    %c42 = arith.constant 42 : index
    %315 = memref.load %arg2[%c42] : memref<108xf32, #tpu.memory_space<smem>>
    %316 = vector.extract_strided_slice %280 {offsets = [2, 0], sizes = [16, 16], strides = [1, 1]} : vector<18x16xf32> to vector<16x16xf32>
    %317 = vector.broadcast %315 : f32 to vector<16x16xf32>
    %318 = arith.mulf %316, %317 : vector<16x16xf32>
    %319 = arith.addf %314, %318 : vector<16x16xf32>
    %c43 = arith.constant 43 : index
    %320 = memref.load %arg2[%c43] : memref<108xf32, #tpu.memory_space<smem>>
    %321 = vector.extract_strided_slice %281 {offsets = [2, 0], sizes = [16, 16], strides = [1, 1]} : vector<18x16xf32> to vector<16x16xf32>
    %322 = vector.broadcast %320 : f32 to vector<16x16xf32>
    %323 = arith.mulf %321, %322 : vector<16x16xf32>
    %324 = arith.addf %319, %323 : vector<16x16xf32>
    %c44 = arith.constant 44 : index
    %325 = memref.load %arg2[%c44] : memref<108xf32, #tpu.memory_space<smem>>
    %326 = vector.extract_strided_slice %282 {offsets = [2, 0], sizes = [16, 16], strides = [1, 1]} : vector<18x16xf32> to vector<16x16xf32>
    %327 = vector.broadcast %325 : f32 to vector<16x16xf32>
    %328 = arith.mulf %326, %327 : vector<16x16xf32>
    %329 = arith.addf %324, %328 : vector<16x16xf32>
    %cst_78 = arith.constant 0.000000e+00 : f32
    %330 = vector.broadcast %cst_78 : f32 to vector<16x16xf32>
    %331 = arith.maximumf %329, %330 : vector<16x16xf32>
    %c0_79 = arith.constant 0 : index
    %c2_80 = arith.constant 2 : index
    %c0_81 = arith.constant 0 : index
    %c0_82 = arith.constant 0 : index
    %332 = vector.load %arg7[%c0_79, %c2_80, %c0_81, %c0_82] : memref<1x3x18x18xf32, #tpu.memory_space<vmem>>, vector<1x1x18x18xf32>
    %333 = vector.shape_cast %332 : vector<1x1x18x18xf32> to vector<18x18xf32>
    %334 = vector.extract_strided_slice %333 {offsets = [0, 0], sizes = [18, 16], strides = [1, 1]} : vector<18x18xf32> to vector<18x16xf32>
    %335 = vector.extract_strided_slice %333 {offsets = [0, 1], sizes = [18, 16], strides = [1, 1]} : vector<18x18xf32> to vector<18x16xf32>
    %336 = vector.extract_strided_slice %333 {offsets = [0, 2], sizes = [18, 16], strides = [1, 1]} : vector<18x18xf32> to vector<18x16xf32>
    %337 = vector.extract_strided_slice %335 {offsets = [1, 0], sizes = [16, 16], strides = [1, 1]} : vector<18x16xf32> to vector<16x16xf32>
    %cst_83 = arith.constant 0.000000e+00 : f32
    %338 = vector.broadcast %cst_83 : f32 to vector<16x16xf32>
    %c45 = arith.constant 45 : index
    %339 = memref.load %arg2[%c45] : memref<108xf32, #tpu.memory_space<smem>>
    %340 = vector.extract_strided_slice %334 {offsets = [0, 0], sizes = [16, 16], strides = [1, 1]} : vector<18x16xf32> to vector<16x16xf32>
    %341 = vector.broadcast %339 : f32 to vector<16x16xf32>
    %342 = arith.mulf %340, %341 : vector<16x16xf32>
    %343 = arith.addf %338, %342 : vector<16x16xf32>
    %c46 = arith.constant 46 : index
    %344 = memref.load %arg2[%c46] : memref<108xf32, #tpu.memory_space<smem>>
    %345 = vector.extract_strided_slice %335 {offsets = [0, 0], sizes = [16, 16], strides = [1, 1]} : vector<18x16xf32> to vector<16x16xf32>
    %346 = vector.broadcast %344 : f32 to vector<16x16xf32>
    %347 = arith.mulf %345, %346 : vector<16x16xf32>
    %348 = arith.addf %343, %347 : vector<16x16xf32>
    %c47 = arith.constant 47 : index
    %349 = memref.load %arg2[%c47] : memref<108xf32, #tpu.memory_space<smem>>
    %350 = vector.extract_strided_slice %336 {offsets = [0, 0], sizes = [16, 16], strides = [1, 1]} : vector<18x16xf32> to vector<16x16xf32>
    %351 = vector.broadcast %349 : f32 to vector<16x16xf32>
    %352 = arith.mulf %350, %351 : vector<16x16xf32>
    %353 = arith.addf %348, %352 : vector<16x16xf32>
    %c48 = arith.constant 48 : index
    %354 = memref.load %arg2[%c48] : memref<108xf32, #tpu.memory_space<smem>>
    %355 = vector.extract_strided_slice %334 {offsets = [1, 0], sizes = [16, 16], strides = [1, 1]} : vector<18x16xf32> to vector<16x16xf32>
    %356 = vector.broadcast %354 : f32 to vector<16x16xf32>
    %357 = arith.mulf %355, %356 : vector<16x16xf32>
    %358 = arith.addf %353, %357 : vector<16x16xf32>
    %c49 = arith.constant 49 : index
    %359 = memref.load %arg2[%c49] : memref<108xf32, #tpu.memory_space<smem>>
    %360 = vector.extract_strided_slice %335 {offsets = [1, 0], sizes = [16, 16], strides = [1, 1]} : vector<18x16xf32> to vector<16x16xf32>
    %361 = vector.broadcast %359 : f32 to vector<16x16xf32>
    %362 = arith.mulf %360, %361 : vector<16x16xf32>
    %363 = arith.addf %358, %362 : vector<16x16xf32>
    %c50 = arith.constant 50 : index
    %364 = memref.load %arg2[%c50] : memref<108xf32, #tpu.memory_space<smem>>
    %365 = vector.extract_strided_slice %336 {offsets = [1, 0], sizes = [16, 16], strides = [1, 1]} : vector<18x16xf32> to vector<16x16xf32>
    %366 = vector.broadcast %364 : f32 to vector<16x16xf32>
    %367 = arith.mulf %365, %366 : vector<16x16xf32>
    %368 = arith.addf %363, %367 : vector<16x16xf32>
    %c51 = arith.constant 51 : index
    %369 = memref.load %arg2[%c51] : memref<108xf32, #tpu.memory_space<smem>>
    %370 = vector.extract_strided_slice %334 {offsets = [2, 0], sizes = [16, 16], strides = [1, 1]} : vector<18x16xf32> to vector<16x16xf32>
    %371 = vector.broadcast %369 : f32 to vector<16x16xf32>
    %372 = arith.mulf %370, %371 : vector<16x16xf32>
    %373 = arith.addf %368, %372 : vector<16x16xf32>
    %c52 = arith.constant 52 : index
    %374 = memref.load %arg2[%c52] : memref<108xf32, #tpu.memory_space<smem>>
    %375 = vector.extract_strided_slice %335 {offsets = [2, 0], sizes = [16, 16], strides = [1, 1]} : vector<18x16xf32> to vector<16x16xf32>
    %376 = vector.broadcast %374 : f32 to vector<16x16xf32>
    %377 = arith.mulf %375, %376 : vector<16x16xf32>
    %378 = arith.addf %373, %377 : vector<16x16xf32>
    %c53 = arith.constant 53 : index
    %379 = memref.load %arg2[%c53] : memref<108xf32, #tpu.memory_space<smem>>
    %380 = vector.extract_strided_slice %336 {offsets = [2, 0], sizes = [16, 16], strides = [1, 1]} : vector<18x16xf32> to vector<16x16xf32>
    %381 = vector.broadcast %379 : f32 to vector<16x16xf32>
    %382 = arith.mulf %380, %381 : vector<16x16xf32>
    %383 = arith.addf %378, %382 : vector<16x16xf32>
    %cst_84 = arith.constant 0.000000e+00 : f32
    %384 = vector.broadcast %cst_84 : f32 to vector<16x16xf32>
    %385 = arith.maximumf %383, %384 : vector<16x16xf32>
    %c9_85 = arith.constant 9 : index
    %386 = memref.load %arg3[%c9_85] : memref<36xf32, #tpu.memory_space<smem>>
    %387 = vector.broadcast %386 : f32 to vector<16x16xf32>
    %388 = arith.mulf %277, %387 : vector<16x16xf32>
    %389 = arith.addf %229, %388 : vector<16x16xf32>
    %c10_86 = arith.constant 10 : index
    %390 = memref.load %arg3[%c10_86] : memref<36xf32, #tpu.memory_space<smem>>
    %391 = vector.broadcast %390 : f32 to vector<16x16xf32>
    %392 = arith.mulf %331, %391 : vector<16x16xf32>
    %393 = arith.addf %389, %392 : vector<16x16xf32>
    %c11_87 = arith.constant 11 : index
    %394 = memref.load %arg3[%c11_87] : memref<36xf32, #tpu.memory_space<smem>>
    %395 = vector.broadcast %394 : f32 to vector<16x16xf32>
    %396 = arith.mulf %385, %395 : vector<16x16xf32>
    %397 = arith.addf %393, %396 : vector<16x16xf32>
    %c12_88 = arith.constant 12 : index
    %398 = memref.load %arg3[%c12_88] : memref<36xf32, #tpu.memory_space<smem>>
    %399 = vector.broadcast %398 : f32 to vector<16x16xf32>
    %400 = arith.mulf %277, %399 : vector<16x16xf32>
    %401 = arith.addf %283, %400 : vector<16x16xf32>
    %c13_89 = arith.constant 13 : index
    %402 = memref.load %arg3[%c13_89] : memref<36xf32, #tpu.memory_space<smem>>
    %403 = vector.broadcast %402 : f32 to vector<16x16xf32>
    %404 = arith.mulf %331, %403 : vector<16x16xf32>
    %405 = arith.addf %401, %404 : vector<16x16xf32>
    %c14_90 = arith.constant 14 : index
    %406 = memref.load %arg3[%c14_90] : memref<36xf32, #tpu.memory_space<smem>>
    %407 = vector.broadcast %406 : f32 to vector<16x16xf32>
    %408 = arith.mulf %385, %407 : vector<16x16xf32>
    %409 = arith.addf %405, %408 : vector<16x16xf32>
    %c15_91 = arith.constant 15 : index
    %410 = memref.load %arg3[%c15_91] : memref<36xf32, #tpu.memory_space<smem>>
    %411 = vector.broadcast %410 : f32 to vector<16x16xf32>
    %412 = arith.mulf %277, %411 : vector<16x16xf32>
    %413 = arith.addf %337, %412 : vector<16x16xf32>
    %c16_92 = arith.constant 16 : index
    %414 = memref.load %arg3[%c16_92] : memref<36xf32, #tpu.memory_space<smem>>
    %415 = vector.broadcast %414 : f32 to vector<16x16xf32>
    %416 = arith.mulf %331, %415 : vector<16x16xf32>
    %417 = arith.addf %413, %416 : vector<16x16xf32>
    %c17_93 = arith.constant 17 : index
    %418 = memref.load %arg3[%c17_93] : memref<36xf32, #tpu.memory_space<smem>>
    %419 = vector.broadcast %418 : f32 to vector<16x16xf32>
    %420 = arith.mulf %385, %419 : vector<16x16xf32>
    %421 = arith.addf %417, %420 : vector<16x16xf32>
    %c0_94 = arith.constant 0 : index
    %c0_95 = arith.constant 0 : index
    %c1_96 = arith.constant 1 : index
    %c1_97 = arith.constant 1 : index
    %422 = vector.load %arg7[%c0_94, %c0_95, %c1_96, %c1_97] : memref<1x3x18x18xf32, #tpu.memory_space<vmem>>, vector<1x1x16x16xf32>
    %423 = vector.shape_cast %422 : vector<1x1x16x16xf32> to vector<16x16xf32>
    %424 = vector.shape_cast %397 : vector<16x16xf32> to vector<1x1x16x16xf32>
    tpu.vector_store %arg7[%c0_94, %c0_95, %c1_96, %c1_97], %424 {strides = array<i32>} : memref<1x3x18x18xf32, #tpu.memory_space<vmem>>, vector<1x1x16x16xf32>,
    %c0_98 = arith.constant 0 : index
    %c1_99 = arith.constant 1 : index
    %c1_100 = arith.constant 1 : index
    %c1_101 = arith.constant 1 : index
    %425 = vector.load %arg7[%c0_98, %c1_99, %c1_100, %c1_101] : memref<1x3x18x18xf32, #tpu.memory_space<vmem>>, vector<1x1x16x16xf32>
    %426 = vector.shape_cast %425 : vector<1x1x16x16xf32> to vector<16x16xf32>
    %427 = vector.shape_cast %409 : vector<16x16xf32> to vector<1x1x16x16xf32>
    tpu.vector_store %arg7[%c0_98, %c1_99, %c1_100, %c1_101], %427 {strides = array<i32>} : memref<1x3x18x18xf32, #tpu.memory_space<vmem>>, vector<1x1x16x16xf32>,
    %c0_102 = arith.constant 0 : index
    %c2_103 = arith.constant 2 : index
    %c1_104 = arith.constant 1 : index
    %c1_105 = arith.constant 1 : index
    %428 = vector.load %arg7[%c0_102, %c2_103, %c1_104, %c1_105] : memref<1x3x18x18xf32, #tpu.memory_space<vmem>>, vector<1x1x16x16xf32>
    %429 = vector.shape_cast %428 : vector<1x1x16x16xf32> to vector<16x16xf32>
    %430 = vector.shape_cast %421 : vector<16x16xf32> to vector<1x1x16x16xf32>
    tpu.vector_store %arg7[%c0_102, %c2_103, %c1_104, %c1_105], %430 {strides = array<i32>} : memref<1x3x18x18xf32, #tpu.memory_space<vmem>>, vector<1x1x16x16xf32>,
    %c0_106 = arith.constant 0 : index
    %c0_107 = arith.constant 0 : index
    %c0_108 = arith.constant 0 : index
    %c0_109 = arith.constant 0 : index
    %431 = vector.load %arg7[%c0_106, %c0_107, %c0_108, %c0_109] : memref<1x3x18x18xf32, #tpu.memory_space<vmem>>, vector<1x1x18x18xf32>
    %432 = vector.shape_cast %431 : vector<1x1x18x18xf32> to vector<18x18xf32>
    %433 = vector.extract_strided_slice %432 {offsets = [0, 0], sizes = [18, 16], strides = [1, 1]} : vector<18x18xf32> to vector<18x16xf32>
    %434 = vector.extract_strided_slice %432 {offsets = [0, 1], sizes = [18, 16], strides = [1, 1]} : vector<18x18xf32> to vector<18x16xf32>
    %435 = vector.extract_strided_slice %432 {offsets = [0, 2], sizes = [18, 16], strides = [1, 1]} : vector<18x18xf32> to vector<18x16xf32>
    %436 = vector.extract_strided_slice %434 {offsets = [1, 0], sizes = [16, 16], strides = [1, 1]} : vector<18x16xf32> to vector<16x16xf32>
    %cst_110 = arith.constant 0.000000e+00 : f32
    %437 = vector.broadcast %cst_110 : f32 to vector<16x16xf32>
    %c54 = arith.constant 54 : index
    %438 = memref.load %arg2[%c54] : memref<108xf32, #tpu.memory_space<smem>>
    %439 = vector.extract_strided_slice %433 {offsets = [0, 0], sizes = [16, 16], strides = [1, 1]} : vector<18x16xf32> to vector<16x16xf32>
    %440 = vector.broadcast %438 : f32 to vector<16x16xf32>
    %441 = arith.mulf %439, %440 : vector<16x16xf32>
    %442 = arith.addf %437, %441 : vector<16x16xf32>
    %c55 = arith.constant 55 : index
    %443 = memref.load %arg2[%c55] : memref<108xf32, #tpu.memory_space<smem>>
    %444 = vector.extract_strided_slice %434 {offsets = [0, 0], sizes = [16, 16], strides = [1, 1]} : vector<18x16xf32> to vector<16x16xf32>
    %445 = vector.broadcast %443 : f32 to vector<16x16xf32>
    %446 = arith.mulf %444, %445 : vector<16x16xf32>
    %447 = arith.addf %442, %446 : vector<16x16xf32>
    %c56 = arith.constant 56 : index
    %448 = memref.load %arg2[%c56] : memref<108xf32, #tpu.memory_space<smem>>
    %449 = vector.extract_strided_slice %435 {offsets = [0, 0], sizes = [16, 16], strides = [1, 1]} : vector<18x16xf32> to vector<16x16xf32>
    %450 = vector.broadcast %448 : f32 to vector<16x16xf32>
    %451 = arith.mulf %449, %450 : vector<16x16xf32>
    %452 = arith.addf %447, %451 : vector<16x16xf32>
    %c57 = arith.constant 57 : index
    %453 = memref.load %arg2[%c57] : memref<108xf32, #tpu.memory_space<smem>>
    %454 = vector.extract_strided_slice %433 {offsets = [1, 0], sizes = [16, 16], strides = [1, 1]} : vector<18x16xf32> to vector<16x16xf32>
    %455 = vector.broadcast %453 : f32 to vector<16x16xf32>
    %456 = arith.mulf %454, %455 : vector<16x16xf32>
    %457 = arith.addf %452, %456 : vector<16x16xf32>
    %c58 = arith.constant 58 : index
    %458 = memref.load %arg2[%c58] : memref<108xf32, #tpu.memory_space<smem>>
    %459 = vector.extract_strided_slice %434 {offsets = [1, 0], sizes = [16, 16], strides = [1, 1]} : vector<18x16xf32> to vector<16x16xf32>
    %460 = vector.broadcast %458 : f32 to vector<16x16xf32>
    %461 = arith.mulf %459, %460 : vector<16x16xf32>
    %462 = arith.addf %457, %461 : vector<16x16xf32>
    %c59 = arith.constant 59 : index
    %463 = memref.load %arg2[%c59] : memref<108xf32, #tpu.memory_space<smem>>
    %464 = vector.extract_strided_slice %435 {offsets = [1, 0], sizes = [16, 16], strides = [1, 1]} : vector<18x16xf32> to vector<16x16xf32>
    %465 = vector.broadcast %463 : f32 to vector<16x16xf32>
    %466 = arith.mulf %464, %465 : vector<16x16xf32>
    %467 = arith.addf %462, %466 : vector<16x16xf32>
    %c60 = arith.constant 60 : index
    %468 = memref.load %arg2[%c60] : memref<108xf32, #tpu.memory_space<smem>>
    %469 = vector.extract_strided_slice %433 {offsets = [2, 0], sizes = [16, 16], strides = [1, 1]} : vector<18x16xf32> to vector<16x16xf32>
    %470 = vector.broadcast %468 : f32 to vector<16x16xf32>
    %471 = arith.mulf %469, %470 : vector<16x16xf32>
    %472 = arith.addf %467, %471 : vector<16x16xf32>
    %c61 = arith.constant 61 : index
    %473 = memref.load %arg2[%c61] : memref<108xf32, #tpu.memory_space<smem>>
    %474 = vector.extract_strided_slice %434 {offsets = [2, 0], sizes = [16, 16], strides = [1, 1]} : vector<18x16xf32> to vector<16x16xf32>
    %475 = vector.broadcast %473 : f32 to vector<16x16xf32>
    %476 = arith.mulf %474, %475 : vector<16x16xf32>
    %477 = arith.addf %472, %476 : vector<16x16xf32>
    %c62 = arith.constant 62 : index
    %478 = memref.load %arg2[%c62] : memref<108xf32, #tpu.memory_space<smem>>
    %479 = vector.extract_strided_slice %435 {offsets = [2, 0], sizes = [16, 16], strides = [1, 1]} : vector<18x16xf32> to vector<16x16xf32>
    %480 = vector.broadcast %478 : f32 to vector<16x16xf32>
    %481 = arith.mulf %479, %480 : vector<16x16xf32>
    %482 = arith.addf %477, %481 : vector<16x16xf32>
    %cst_111 = arith.constant 0.000000e+00 : f32
    %483 = vector.broadcast %cst_111 : f32 to vector<16x16xf32>
    %484 = arith.maximumf %482, %483 : vector<16x16xf32>
    %c0_112 = arith.constant 0 : index
    %c1_113 = arith.constant 1 : index
    %c0_114 = arith.constant 0 : index
    %c0_115 = arith.constant 0 : index
    %485 = vector.load %arg7[%c0_112, %c1_113, %c0_114, %c0_115] : memref<1x3x18x18xf32, #tpu.memory_space<vmem>>, vector<1x1x18x18xf32>
    %486 = vector.shape_cast %485 : vector<1x1x18x18xf32> to vector<18x18xf32>
    %487 = vector.extract_strided_slice %486 {offsets = [0, 0], sizes = [18, 16], strides = [1, 1]} : vector<18x18xf32> to vector<18x16xf32>
    %488 = vector.extract_strided_slice %486 {offsets = [0, 1], sizes = [18, 16], strides = [1, 1]} : vector<18x18xf32> to vector<18x16xf32>
    %489 = vector.extract_strided_slice %486 {offsets = [0, 2], sizes = [18, 16], strides = [1, 1]} : vector<18x18xf32> to vector<18x16xf32>
    %490 = vector.extract_strided_slice %488 {offsets = [1, 0], sizes = [16, 16], strides = [1, 1]} : vector<18x16xf32> to vector<16x16xf32>
    %cst_116 = arith.constant 0.000000e+00 : f32
    %491 = vector.broadcast %cst_116 : f32 to vector<16x16xf32>
    %c63 = arith.constant 63 : index
    %492 = memref.load %arg2[%c63] : memref<108xf32, #tpu.memory_space<smem>>
    %493 = vector.extract_strided_slice %487 {offsets = [0, 0], sizes = [16, 16], strides = [1, 1]} : vector<18x16xf32> to vector<16x16xf32>
    %494 = vector.broadcast %492 : f32 to vector<16x16xf32>
    %495 = arith.mulf %493, %494 : vector<16x16xf32>
    %496 = arith.addf %491, %495 : vector<16x16xf32>
    %c64 = arith.constant 64 : index
    %497 = memref.load %arg2[%c64] : memref<108xf32, #tpu.memory_space<smem>>
    %498 = vector.extract_strided_slice %488 {offsets = [0, 0], sizes = [16, 16], strides = [1, 1]} : vector<18x16xf32> to vector<16x16xf32>
    %499 = vector.broadcast %497 : f32 to vector<16x16xf32>
    %500 = arith.mulf %498, %499 : vector<16x16xf32>
    %501 = arith.addf %496, %500 : vector<16x16xf32>
    %c65 = arith.constant 65 : index
    %502 = memref.load %arg2[%c65] : memref<108xf32, #tpu.memory_space<smem>>
    %503 = vector.extract_strided_slice %489 {offsets = [0, 0], sizes = [16, 16], strides = [1, 1]} : vector<18x16xf32> to vector<16x16xf32>
    %504 = vector.broadcast %502 : f32 to vector<16x16xf32>
    %505 = arith.mulf %503, %504 : vector<16x16xf32>
    %506 = arith.addf %501, %505 : vector<16x16xf32>
    %c66 = arith.constant 66 : index
    %507 = memref.load %arg2[%c66] : memref<108xf32, #tpu.memory_space<smem>>
    %508 = vector.extract_strided_slice %487 {offsets = [1, 0], sizes = [16, 16], strides = [1, 1]} : vector<18x16xf32> to vector<16x16xf32>
    %509 = vector.broadcast %507 : f32 to vector<16x16xf32>
    %510 = arith.mulf %508, %509 : vector<16x16xf32>
    %511 = arith.addf %506, %510 : vector<16x16xf32>
    %c67 = arith.constant 67 : index
    %512 = memref.load %arg2[%c67] : memref<108xf32, #tpu.memory_space<smem>>
    %513 = vector.extract_strided_slice %488 {offsets = [1, 0], sizes = [16, 16], strides = [1, 1]} : vector<18x16xf32> to vector<16x16xf32>
    %514 = vector.broadcast %512 : f32 to vector<16x16xf32>
    %515 = arith.mulf %513, %514 : vector<16x16xf32>
    %516 = arith.addf %511, %515 : vector<16x16xf32>
    %c68 = arith.constant 68 : index
    %517 = memref.load %arg2[%c68] : memref<108xf32, #tpu.memory_space<smem>>
    %518 = vector.extract_strided_slice %489 {offsets = [1, 0], sizes = [16, 16], strides = [1, 1]} : vector<18x16xf32> to vector<16x16xf32>
    %519 = vector.broadcast %517 : f32 to vector<16x16xf32>
    %520 = arith.mulf %518, %519 : vector<16x16xf32>
    %521 = arith.addf %516, %520 : vector<16x16xf32>
    %c69 = arith.constant 69 : index
    %522 = memref.load %arg2[%c69] : memref<108xf32, #tpu.memory_space<smem>>
    %523 = vector.extract_strided_slice %487 {offsets = [2, 0], sizes = [16, 16], strides = [1, 1]} : vector<18x16xf32> to vector<16x16xf32>
    %524 = vector.broadcast %522 : f32 to vector<16x16xf32>
    %525 = arith.mulf %523, %524 : vector<16x16xf32>
    %526 = arith.addf %521, %525 : vector<16x16xf32>
    %c70 = arith.constant 70 : index
    %527 = memref.load %arg2[%c70] : memref<108xf32, #tpu.memory_space<smem>>
    %528 = vector.extract_strided_slice %488 {offsets = [2, 0], sizes = [16, 16], strides = [1, 1]} : vector<18x16xf32> to vector<16x16xf32>
    %529 = vector.broadcast %527 : f32 to vector<16x16xf32>
    %530 = arith.mulf %528, %529 : vector<16x16xf32>
    %531 = arith.addf %526, %530 : vector<16x16xf32>
    %c71 = arith.constant 71 : index
    %532 = memref.load %arg2[%c71] : memref<108xf32, #tpu.memory_space<smem>>
    %533 = vector.extract_strided_slice %489 {offsets = [2, 0], sizes = [16, 16], strides = [1, 1]} : vector<18x16xf32> to vector<16x16xf32>
    %534 = vector.broadcast %532 : f32 to vector<16x16xf32>
    %535 = arith.mulf %533, %534 : vector<16x16xf32>
    %536 = arith.addf %531, %535 : vector<16x16xf32>
    %cst_117 = arith.constant 0.000000e+00 : f32
    %537 = vector.broadcast %cst_117 : f32 to vector<16x16xf32>
    %538 = arith.maximumf %536, %537 : vector<16x16xf32>
    %c0_118 = arith.constant 0 : index
    %c2_119 = arith.constant 2 : index
    %c0_120 = arith.constant 0 : index
    %c0_121 = arith.constant 0 : index
    %539 = vector.load %arg7[%c0_118, %c2_119, %c0_120, %c0_121] : memref<1x3x18x18xf32, #tpu.memory_space<vmem>>, vector<1x1x18x18xf32>
    %540 = vector.shape_cast %539 : vector<1x1x18x18xf32> to vector<18x18xf32>
    %541 = vector.extract_strided_slice %540 {offsets = [0, 0], sizes = [18, 16], strides = [1, 1]} : vector<18x18xf32> to vector<18x16xf32>
    %542 = vector.extract_strided_slice %540 {offsets = [0, 1], sizes = [18, 16], strides = [1, 1]} : vector<18x18xf32> to vector<18x16xf32>
    %543 = vector.extract_strided_slice %540 {offsets = [0, 2], sizes = [18, 16], strides = [1, 1]} : vector<18x18xf32> to vector<18x16xf32>
    %544 = vector.extract_strided_slice %542 {offsets = [1, 0], sizes = [16, 16], strides = [1, 1]} : vector<18x16xf32> to vector<16x16xf32>
    %cst_122 = arith.constant 0.000000e+00 : f32
    %545 = vector.broadcast %cst_122 : f32 to vector<16x16xf32>
    %c72 = arith.constant 72 : index
    %546 = memref.load %arg2[%c72] : memref<108xf32, #tpu.memory_space<smem>>
    %547 = vector.extract_strided_slice %541 {offsets = [0, 0], sizes = [16, 16], strides = [1, 1]} : vector<18x16xf32> to vector<16x16xf32>
    %548 = vector.broadcast %546 : f32 to vector<16x16xf32>
    %549 = arith.mulf %547, %548 : vector<16x16xf32>
    %550 = arith.addf %545, %549 : vector<16x16xf32>
    %c73 = arith.constant 73 : index
    %551 = memref.load %arg2[%c73] : memref<108xf32, #tpu.memory_space<smem>>
    %552 = vector.extract_strided_slice %542 {offsets = [0, 0], sizes = [16, 16], strides = [1, 1]} : vector<18x16xf32> to vector<16x16xf32>
    %553 = vector.broadcast %551 : f32 to vector<16x16xf32>
    %554 = arith.mulf %552, %553 : vector<16x16xf32>
    %555 = arith.addf %550, %554 : vector<16x16xf32>
    %c74 = arith.constant 74 : index
    %556 = memref.load %arg2[%c74] : memref<108xf32, #tpu.memory_space<smem>>
    %557 = vector.extract_strided_slice %543 {offsets = [0, 0], sizes = [16, 16], strides = [1, 1]} : vector<18x16xf32> to vector<16x16xf32>
    %558 = vector.broadcast %556 : f32 to vector<16x16xf32>
    %559 = arith.mulf %557, %558 : vector<16x16xf32>
    %560 = arith.addf %555, %559 : vector<16x16xf32>
    %c75 = arith.constant 75 : index
    %561 = memref.load %arg2[%c75] : memref<108xf32, #tpu.memory_space<smem>>
    %562 = vector.extract_strided_slice %541 {offsets = [1, 0], sizes = [16, 16], strides = [1, 1]} : vector<18x16xf32> to vector<16x16xf32>
    %563 = vector.broadcast %561 : f32 to vector<16x16xf32>
    %564 = arith.mulf %562, %563 : vector<16x16xf32>
    %565 = arith.addf %560, %564 : vector<16x16xf32>
    %c76 = arith.constant 76 : index
    %566 = memref.load %arg2[%c76] : memref<108xf32, #tpu.memory_space<smem>>
    %567 = vector.extract_strided_slice %542 {offsets = [1, 0], sizes = [16, 16], strides = [1, 1]} : vector<18x16xf32> to vector<16x16xf32>
    %568 = vector.broadcast %566 : f32 to vector<16x16xf32>
    %569 = arith.mulf %567, %568 : vector<16x16xf32>
    %570 = arith.addf %565, %569 : vector<16x16xf32>
    %c77 = arith.constant 77 : index
    %571 = memref.load %arg2[%c77] : memref<108xf32, #tpu.memory_space<smem>>
    %572 = vector.extract_strided_slice %543 {offsets = [1, 0], sizes = [16, 16], strides = [1, 1]} : vector<18x16xf32> to vector<16x16xf32>
    %573 = vector.broadcast %571 : f32 to vector<16x16xf32>
    %574 = arith.mulf %572, %573 : vector<16x16xf32>
    %575 = arith.addf %570, %574 : vector<16x16xf32>
    %c78 = arith.constant 78 : index
    %576 = memref.load %arg2[%c78] : memref<108xf32, #tpu.memory_space<smem>>
    %577 = vector.extract_strided_slice %541 {offsets = [2, 0], sizes = [16, 16], strides = [1, 1]} : vector<18x16xf32> to vector<16x16xf32>
    %578 = vector.broadcast %576 : f32 to vector<16x16xf32>
    %579 = arith.mulf %577, %578 : vector<16x16xf32>
    %580 = arith.addf %575, %579 : vector<16x16xf32>
    %c79 = arith.constant 79 : index
    %581 = memref.load %arg2[%c79] : memref<108xf32, #tpu.memory_space<smem>>
    %582 = vector.extract_strided_slice %542 {offsets = [2, 0], sizes = [16, 16], strides = [1, 1]} : vector<18x16xf32> to vector<16x16xf32>
    %583 = vector.broadcast %581 : f32 to vector<16x16xf32>
    %584 = arith.mulf %582, %583 : vector<16x16xf32>
    %585 = arith.addf %580, %584 : vector<16x16xf32>
    %c80 = arith.constant 80 : index
    %586 = memref.load %arg2[%c80] : memref<108xf32, #tpu.memory_space<smem>>
    %587 = vector.extract_strided_slice %543 {offsets = [2, 0], sizes = [16, 16], strides = [1, 1]} : vector<18x16xf32> to vector<16x16xf32>
    %588 = vector.broadcast %586 : f32 to vector<16x16xf32>
    %589 = arith.mulf %587, %588 : vector<16x16xf32>
    %590 = arith.addf %585, %589 : vector<16x16xf32>
    %cst_123 = arith.constant 0.000000e+00 : f32
    %591 = vector.broadcast %cst_123 : f32 to vector<16x16xf32>
    %592 = arith.maximumf %590, %591 : vector<16x16xf32>
    %c18_124 = arith.constant 18 : index
    %593 = memref.load %arg3[%c18_124] : memref<36xf32, #tpu.memory_space<smem>>
    %594 = vector.broadcast %593 : f32 to vector<16x16xf32>
    %595 = arith.mulf %484, %594 : vector<16x16xf32>
    %596 = arith.addf %436, %595 : vector<16x16xf32>
    %c19_125 = arith.constant 19 : index
    %597 = memref.load %arg3[%c19_125] : memref<36xf32, #tpu.memory_space<smem>>
    %598 = vector.broadcast %597 : f32 to vector<16x16xf32>
    %599 = arith.mulf %538, %598 : vector<16x16xf32>
    %600 = arith.addf %596, %599 : vector<16x16xf32>
    %c20_126 = arith.constant 20 : index
    %601 = memref.load %arg3[%c20_126] : memref<36xf32, #tpu.memory_space<smem>>
    %602 = vector.broadcast %601 : f32 to vector<16x16xf32>
    %603 = arith.mulf %592, %602 : vector<16x16xf32>
    %604 = arith.addf %600, %603 : vector<16x16xf32>
    %c21_127 = arith.constant 21 : index
    %605 = memref.load %arg3[%c21_127] : memref<36xf32, #tpu.memory_space<smem>>
    %606 = vector.broadcast %605 : f32 to vector<16x16xf32>
    %607 = arith.mulf %484, %606 : vector<16x16xf32>
    %608 = arith.addf %490, %607 : vector<16x16xf32>
    %c22_128 = arith.constant 22 : index
    %609 = memref.load %arg3[%c22_128] : memref<36xf32, #tpu.memory_space<smem>>
    %610 = vector.broadcast %609 : f32 to vector<16x16xf32>
    %611 = arith.mulf %538, %610 : vector<16x16xf32>
    %612 = arith.addf %608, %611 : vector<16x16xf32>
    %c23_129 = arith.constant 23 : index
    %613 = memref.load %arg3[%c23_129] : memref<36xf32, #tpu.memory_space<smem>>
    %614 = vector.broadcast %613 : f32 to vector<16x16xf32>
    %615 = arith.mulf %592, %614 : vector<16x16xf32>
    %616 = arith.addf %612, %615 : vector<16x16xf32>
    %c24_130 = arith.constant 24 : index
    %617 = memref.load %arg3[%c24_130] : memref<36xf32, #tpu.memory_space<smem>>
    %618 = vector.broadcast %617 : f32 to vector<16x16xf32>
    %619 = arith.mulf %484, %618 : vector<16x16xf32>
    %620 = arith.addf %544, %619 : vector<16x16xf32>
    %c25_131 = arith.constant 25 : index
    %621 = memref.load %arg3[%c25_131] : memref<36xf32, #tpu.memory_space<smem>>
    %622 = vector.broadcast %621 : f32 to vector<16x16xf32>
    %623 = arith.mulf %538, %622 : vector<16x16xf32>
    %624 = arith.addf %620, %623 : vector<16x16xf32>
    %c26_132 = arith.constant 26 : index
    %625 = memref.load %arg3[%c26_132] : memref<36xf32, #tpu.memory_space<smem>>
    %626 = vector.broadcast %625 : f32 to vector<16x16xf32>
    %627 = arith.mulf %592, %626 : vector<16x16xf32>
    %628 = arith.addf %624, %627 : vector<16x16xf32>
    %c0_133 = arith.constant 0 : index
    %c0_134 = arith.constant 0 : index
    %c1_135 = arith.constant 1 : index
    %c1_136 = arith.constant 1 : index
    %629 = vector.load %arg7[%c0_133, %c0_134, %c1_135, %c1_136] : memref<1x3x18x18xf32, #tpu.memory_space<vmem>>, vector<1x1x16x16xf32>
    %630 = vector.shape_cast %629 : vector<1x1x16x16xf32> to vector<16x16xf32>
    %631 = vector.shape_cast %604 : vector<16x16xf32> to vector<1x1x16x16xf32>
    tpu.vector_store %arg7[%c0_133, %c0_134, %c1_135, %c1_136], %631 {strides = array<i32>} : memref<1x3x18x18xf32, #tpu.memory_space<vmem>>, vector<1x1x16x16xf32>,
    %c0_137 = arith.constant 0 : index
    %c1_138 = arith.constant 1 : index
    %c1_139 = arith.constant 1 : index
    %c1_140 = arith.constant 1 : index
    %632 = vector.load %arg7[%c0_137, %c1_138, %c1_139, %c1_140] : memref<1x3x18x18xf32, #tpu.memory_space<vmem>>, vector<1x1x16x16xf32>
    %633 = vector.shape_cast %632 : vector<1x1x16x16xf32> to vector<16x16xf32>
    %634 = vector.shape_cast %616 : vector<16x16xf32> to vector<1x1x16x16xf32>
    tpu.vector_store %arg7[%c0_137, %c1_138, %c1_139, %c1_140], %634 {strides = array<i32>} : memref<1x3x18x18xf32, #tpu.memory_space<vmem>>, vector<1x1x16x16xf32>,
    %c0_141 = arith.constant 0 : index
    %c2_142 = arith.constant 2 : index
    %c1_143 = arith.constant 1 : index
    %c1_144 = arith.constant 1 : index
    %635 = vector.load %arg7[%c0_141, %c2_142, %c1_143, %c1_144] : memref<1x3x18x18xf32, #tpu.memory_space<vmem>>, vector<1x1x16x16xf32>
    %636 = vector.shape_cast %635 : vector<1x1x16x16xf32> to vector<16x16xf32>
    %637 = vector.shape_cast %628 : vector<16x16xf32> to vector<1x1x16x16xf32>
    tpu.vector_store %arg7[%c0_141, %c2_142, %c1_143, %c1_144], %637 {strides = array<i32>} : memref<1x3x18x18xf32, #tpu.memory_space<vmem>>, vector<1x1x16x16xf32>,
    %c0_145 = arith.constant 0 : index
    %c0_146 = arith.constant 0 : index
    %c0_147 = arith.constant 0 : index
    %c0_148 = arith.constant 0 : index
    %638 = vector.load %arg7[%c0_145, %c0_146, %c0_147, %c0_148] : memref<1x3x18x18xf32, #tpu.memory_space<vmem>>, vector<1x1x18x18xf32>
    %639 = vector.shape_cast %638 : vector<1x1x18x18xf32> to vector<18x18xf32>
    %640 = vector.extract_strided_slice %639 {offsets = [0, 0], sizes = [18, 16], strides = [1, 1]} : vector<18x18xf32> to vector<18x16xf32>
    %641 = vector.extract_strided_slice %639 {offsets = [0, 1], sizes = [18, 16], strides = [1, 1]} : vector<18x18xf32> to vector<18x16xf32>
    %642 = vector.extract_strided_slice %639 {offsets = [0, 2], sizes = [18, 16], strides = [1, 1]} : vector<18x18xf32> to vector<18x16xf32>
    %643 = vector.extract_strided_slice %641 {offsets = [1, 0], sizes = [16, 16], strides = [1, 1]} : vector<18x16xf32> to vector<16x16xf32>
    %cst_149 = arith.constant 0.000000e+00 : f32
    %644 = vector.broadcast %cst_149 : f32 to vector<16x16xf32>
    %c81 = arith.constant 81 : index
    %645 = memref.load %arg2[%c81] : memref<108xf32, #tpu.memory_space<smem>>
    %646 = vector.extract_strided_slice %640 {offsets = [0, 0], sizes = [16, 16], strides = [1, 1]} : vector<18x16xf32> to vector<16x16xf32>
    %647 = vector.broadcast %645 : f32 to vector<16x16xf32>
    %648 = arith.mulf %646, %647 : vector<16x16xf32>
    %649 = arith.addf %644, %648 : vector<16x16xf32>
    %c82 = arith.constant 82 : index
    %650 = memref.load %arg2[%c82] : memref<108xf32, #tpu.memory_space<smem>>
    %651 = vector.extract_strided_slice %641 {offsets = [0, 0], sizes = [16, 16], strides = [1, 1]} : vector<18x16xf32> to vector<16x16xf32>
    %652 = vector.broadcast %650 : f32 to vector<16x16xf32>
    %653 = arith.mulf %651, %652 : vector<16x16xf32>
    %654 = arith.addf %649, %653 : vector<16x16xf32>
    %c83 = arith.constant 83 : index
    %655 = memref.load %arg2[%c83] : memref<108xf32, #tpu.memory_space<smem>>
    %656 = vector.extract_strided_slice %642 {offsets = [0, 0], sizes = [16, 16], strides = [1, 1]} : vector<18x16xf32> to vector<16x16xf32>
    %657 = vector.broadcast %655 : f32 to vector<16x16xf32>
    %658 = arith.mulf %656, %657 : vector<16x16xf32>
    %659 = arith.addf %654, %658 : vector<16x16xf32>
    %c84 = arith.constant 84 : index
    %660 = memref.load %arg2[%c84] : memref<108xf32, #tpu.memory_space<smem>>
    %661 = vector.extract_strided_slice %640 {offsets = [1, 0], sizes = [16, 16], strides = [1, 1]} : vector<18x16xf32> to vector<16x16xf32>
    %662 = vector.broadcast %660 : f32 to vector<16x16xf32>
    %663 = arith.mulf %661, %662 : vector<16x16xf32>
    %664 = arith.addf %659, %663 : vector<16x16xf32>
    %c85 = arith.constant 85 : index
    %665 = memref.load %arg2[%c85] : memref<108xf32, #tpu.memory_space<smem>>
    %666 = vector.extract_strided_slice %641 {offsets = [1, 0], sizes = [16, 16], strides = [1, 1]} : vector<18x16xf32> to vector<16x16xf32>
    %667 = vector.broadcast %665 : f32 to vector<16x16xf32>
    %668 = arith.mulf %666, %667 : vector<16x16xf32>
    %669 = arith.addf %664, %668 : vector<16x16xf32>
    %c86 = arith.constant 86 : index
    %670 = memref.load %arg2[%c86] : memref<108xf32, #tpu.memory_space<smem>>
    %671 = vector.extract_strided_slice %642 {offsets = [1, 0], sizes = [16, 16], strides = [1, 1]} : vector<18x16xf32> to vector<16x16xf32>
    %672 = vector.broadcast %670 : f32 to vector<16x16xf32>
    %673 = arith.mulf %671, %672 : vector<16x16xf32>
    %674 = arith.addf %669, %673 : vector<16x16xf32>
    %c87 = arith.constant 87 : index
    %675 = memref.load %arg2[%c87] : memref<108xf32, #tpu.memory_space<smem>>
    %676 = vector.extract_strided_slice %640 {offsets = [2, 0], sizes = [16, 16], strides = [1, 1]} : vector<18x16xf32> to vector<16x16xf32>
    %677 = vector.broadcast %675 : f32 to vector<16x16xf32>
    %678 = arith.mulf %676, %677 : vector<16x16xf32>
    %679 = arith.addf %674, %678 : vector<16x16xf32>
    %c88 = arith.constant 88 : index
    %680 = memref.load %arg2[%c88] : memref<108xf32, #tpu.memory_space<smem>>
    %681 = vector.extract_strided_slice %641 {offsets = [2, 0], sizes = [16, 16], strides = [1, 1]} : vector<18x16xf32> to vector<16x16xf32>
    %682 = vector.broadcast %680 : f32 to vector<16x16xf32>
    %683 = arith.mulf %681, %682 : vector<16x16xf32>
    %684 = arith.addf %679, %683 : vector<16x16xf32>
    %c89 = arith.constant 89 : index
    %685 = memref.load %arg2[%c89] : memref<108xf32, #tpu.memory_space<smem>>
    %686 = vector.extract_strided_slice %642 {offsets = [2, 0], sizes = [16, 16], strides = [1, 1]} : vector<18x16xf32> to vector<16x16xf32>
    %687 = vector.broadcast %685 : f32 to vector<16x16xf32>
    %688 = arith.mulf %686, %687 : vector<16x16xf32>
    %689 = arith.addf %684, %688 : vector<16x16xf32>
    %cst_150 = arith.constant 0.000000e+00 : f32
    %690 = vector.broadcast %cst_150 : f32 to vector<16x16xf32>
    %691 = arith.maximumf %689, %690 : vector<16x16xf32>
    %c0_151 = arith.constant 0 : index
    %c1_152 = arith.constant 1 : index
    %c0_153 = arith.constant 0 : index
    %c0_154 = arith.constant 0 : index
    %692 = vector.load %arg7[%c0_151, %c1_152, %c0_153, %c0_154] : memref<1x3x18x18xf32, #tpu.memory_space<vmem>>, vector<1x1x18x18xf32>
    %693 = vector.shape_cast %692 : vector<1x1x18x18xf32> to vector<18x18xf32>
    %694 = vector.extract_strided_slice %693 {offsets = [0, 0], sizes = [18, 16], strides = [1, 1]} : vector<18x18xf32> to vector<18x16xf32>
    %695 = vector.extract_strided_slice %693 {offsets = [0, 1], sizes = [18, 16], strides = [1, 1]} : vector<18x18xf32> to vector<18x16xf32>
    %696 = vector.extract_strided_slice %693 {offsets = [0, 2], sizes = [18, 16], strides = [1, 1]} : vector<18x18xf32> to vector<18x16xf32>
    %697 = vector.extract_strided_slice %695 {offsets = [1, 0], sizes = [16, 16], strides = [1, 1]} : vector<18x16xf32> to vector<16x16xf32>
    %cst_155 = arith.constant 0.000000e+00 : f32
    %698 = vector.broadcast %cst_155 : f32 to vector<16x16xf32>
    %c90 = arith.constant 90 : index
    %699 = memref.load %arg2[%c90] : memref<108xf32, #tpu.memory_space<smem>>
    %700 = vector.extract_strided_slice %694 {offsets = [0, 0], sizes = [16, 16], strides = [1, 1]} : vector<18x16xf32> to vector<16x16xf32>
    %701 = vector.broadcast %699 : f32 to vector<16x16xf32>
    %702 = arith.mulf %700, %701 : vector<16x16xf32>
    %703 = arith.addf %698, %702 : vector<16x16xf32>
    %c91 = arith.constant 91 : index
    %704 = memref.load %arg2[%c91] : memref<108xf32, #tpu.memory_space<smem>>
    %705 = vector.extract_strided_slice %695 {offsets = [0, 0], sizes = [16, 16], strides = [1, 1]} : vector<18x16xf32> to vector<16x16xf32>
    %706 = vector.broadcast %704 : f32 to vector<16x16xf32>
    %707 = arith.mulf %705, %706 : vector<16x16xf32>
    %708 = arith.addf %703, %707 : vector<16x16xf32>
    %c92 = arith.constant 92 : index
    %709 = memref.load %arg2[%c92] : memref<108xf32, #tpu.memory_space<smem>>
    %710 = vector.extract_strided_slice %696 {offsets = [0, 0], sizes = [16, 16], strides = [1, 1]} : vector<18x16xf32> to vector<16x16xf32>
    %711 = vector.broadcast %709 : f32 to vector<16x16xf32>
    %712 = arith.mulf %710, %711 : vector<16x16xf32>
    %713 = arith.addf %708, %712 : vector<16x16xf32>
    %c93 = arith.constant 93 : index
    %714 = memref.load %arg2[%c93] : memref<108xf32, #tpu.memory_space<smem>>
    %715 = vector.extract_strided_slice %694 {offsets = [1, 0], sizes = [16, 16], strides = [1, 1]} : vector<18x16xf32> to vector<16x16xf32>
    %716 = vector.broadcast %714 : f32 to vector<16x16xf32>
    %717 = arith.mulf %715, %716 : vector<16x16xf32>
    %718 = arith.addf %713, %717 : vector<16x16xf32>
    %c94 = arith.constant 94 : index
    %719 = memref.load %arg2[%c94] : memref<108xf32, #tpu.memory_space<smem>>
    %720 = vector.extract_strided_slice %695 {offsets = [1, 0], sizes = [16, 16], strides = [1, 1]} : vector<18x16xf32> to vector<16x16xf32>
    %721 = vector.broadcast %719 : f32 to vector<16x16xf32>
    %722 = arith.mulf %720, %721 : vector<16x16xf32>
    %723 = arith.addf %718, %722 : vector<16x16xf32>
    %c95 = arith.constant 95 : index
    %724 = memref.load %arg2[%c95] : memref<108xf32, #tpu.memory_space<smem>>
    %725 = vector.extract_strided_slice %696 {offsets = [1, 0], sizes = [16, 16], strides = [1, 1]} : vector<18x16xf32> to vector<16x16xf32>
    %726 = vector.broadcast %724 : f32 to vector<16x16xf32>
    %727 = arith.mulf %725, %726 : vector<16x16xf32>
    %728 = arith.addf %723, %727 : vector<16x16xf32>
    %c96 = arith.constant 96 : index
    %729 = memref.load %arg2[%c96] : memref<108xf32, #tpu.memory_space<smem>>
    %730 = vector.extract_strided_slice %694 {offsets = [2, 0], sizes = [16, 16], strides = [1, 1]} : vector<18x16xf32> to vector<16x16xf32>
    %731 = vector.broadcast %729 : f32 to vector<16x16xf32>
    %732 = arith.mulf %730, %731 : vector<16x16xf32>
    %733 = arith.addf %728, %732 : vector<16x16xf32>
    %c97 = arith.constant 97 : index
    %734 = memref.load %arg2[%c97] : memref<108xf32, #tpu.memory_space<smem>>
    %735 = vector.extract_strided_slice %695 {offsets = [2, 0], sizes = [16, 16], strides = [1, 1]} : vector<18x16xf32> to vector<16x16xf32>
    %736 = vector.broadcast %734 : f32 to vector<16x16xf32>
    %737 = arith.mulf %735, %736 : vector<16x16xf32>
    %738 = arith.addf %733, %737 : vector<16x16xf32>
    %c98 = arith.constant 98 : index
    %739 = memref.load %arg2[%c98] : memref<108xf32, #tpu.memory_space<smem>>
    %740 = vector.extract_strided_slice %696 {offsets = [2, 0], sizes = [16, 16], strides = [1, 1]} : vector<18x16xf32> to vector<16x16xf32>
    %741 = vector.broadcast %739 : f32 to vector<16x16xf32>
    %742 = arith.mulf %740, %741 : vector<16x16xf32>
    %743 = arith.addf %738, %742 : vector<16x16xf32>
    %cst_156 = arith.constant 0.000000e+00 : f32
    %744 = vector.broadcast %cst_156 : f32 to vector<16x16xf32>
    %745 = arith.maximumf %743, %744 : vector<16x16xf32>
    %c0_157 = arith.constant 0 : index
    %c2_158 = arith.constant 2 : index
    %c0_159 = arith.constant 0 : index
    %c0_160 = arith.constant 0 : index
    %746 = vector.load %arg7[%c0_157, %c2_158, %c0_159, %c0_160] : memref<1x3x18x18xf32, #tpu.memory_space<vmem>>, vector<1x1x18x18xf32>
    %747 = vector.shape_cast %746 : vector<1x1x18x18xf32> to vector<18x18xf32>
    %748 = vector.extract_strided_slice %747 {offsets = [0, 0], sizes = [18, 16], strides = [1, 1]} : vector<18x18xf32> to vector<18x16xf32>
    %749 = vector.extract_strided_slice %747 {offsets = [0, 1], sizes = [18, 16], strides = [1, 1]} : vector<18x18xf32> to vector<18x16xf32>
    %750 = vector.extract_strided_slice %747 {offsets = [0, 2], sizes = [18, 16], strides = [1, 1]} : vector<18x18xf32> to vector<18x16xf32>
    %751 = vector.extract_strided_slice %749 {offsets = [1, 0], sizes = [16, 16], strides = [1, 1]} : vector<18x16xf32> to vector<16x16xf32>
    %cst_161 = arith.constant 0.000000e+00 : f32
    %752 = vector.broadcast %cst_161 : f32 to vector<16x16xf32>
    %c99 = arith.constant 99 : index
    %753 = memref.load %arg2[%c99] : memref<108xf32, #tpu.memory_space<smem>>
    %754 = vector.extract_strided_slice %748 {offsets = [0, 0], sizes = [16, 16], strides = [1, 1]} : vector<18x16xf32> to vector<16x16xf32>
    %755 = vector.broadcast %753 : f32 to vector<16x16xf32>
    %756 = arith.mulf %754, %755 : vector<16x16xf32>
    %757 = arith.addf %752, %756 : vector<16x16xf32>
    %c100 = arith.constant 100 : index
    %758 = memref.load %arg2[%c100] : memref<108xf32, #tpu.memory_space<smem>>
    %759 = vector.extract_strided_slice %749 {offsets = [0, 0], sizes = [16, 16], strides = [1, 1]} : vector<18x16xf32> to vector<16x16xf32>
    %760 = vector.broadcast %758 : f32 to vector<16x16xf32>
    %761 = arith.mulf %759, %760 : vector<16x16xf32>
    %762 = arith.addf %757, %761 : vector<16x16xf32>
    %c101 = arith.constant 101 : index
    %763 = memref.load %arg2[%c101] : memref<108xf32, #tpu.memory_space<smem>>
    %764 = vector.extract_strided_slice %750 {offsets = [0, 0], sizes = [16, 16], strides = [1, 1]} : vector<18x16xf32> to vector<16x16xf32>
    %765 = vector.broadcast %763 : f32 to vector<16x16xf32>
    %766 = arith.mulf %764, %765 : vector<16x16xf32>
    %767 = arith.addf %762, %766 : vector<16x16xf32>
    %c102 = arith.constant 102 : index
    %768 = memref.load %arg2[%c102] : memref<108xf32, #tpu.memory_space<smem>>
    %769 = vector.extract_strided_slice %748 {offsets = [1, 0], sizes = [16, 16], strides = [1, 1]} : vector<18x16xf32> to vector<16x16xf32>
    %770 = vector.broadcast %768 : f32 to vector<16x16xf32>
    %771 = arith.mulf %769, %770 : vector<16x16xf32>
    %772 = arith.addf %767, %771 : vector<16x16xf32>
    %c103 = arith.constant 103 : index
    %773 = memref.load %arg2[%c103] : memref<108xf32, #tpu.memory_space<smem>>
    %774 = vector.extract_strided_slice %749 {offsets = [1, 0], sizes = [16, 16], strides = [1, 1]} : vector<18x16xf32> to vector<16x16xf32>
    %775 = vector.broadcast %773 : f32 to vector<16x16xf32>
    %776 = arith.mulf %774, %775 : vector<16x16xf32>
    %777 = arith.addf %772, %776 : vector<16x16xf32>
    %c104 = arith.constant 104 : index
    %778 = memref.load %arg2[%c104] : memref<108xf32, #tpu.memory_space<smem>>
    %779 = vector.extract_strided_slice %750 {offsets = [1, 0], sizes = [16, 16], strides = [1, 1]} : vector<18x16xf32> to vector<16x16xf32>
    %780 = vector.broadcast %778 : f32 to vector<16x16xf32>
    %781 = arith.mulf %779, %780 : vector<16x16xf32>
    %782 = arith.addf %777, %781 : vector<16x16xf32>
    %c105 = arith.constant 105 : index
    %783 = memref.load %arg2[%c105] : memref<108xf32, #tpu.memory_space<smem>>
    %784 = vector.extract_strided_slice %748 {offsets = [2, 0], sizes = [16, 16], strides = [1, 1]} : vector<18x16xf32> to vector<16x16xf32>
    %785 = vector.broadcast %783 : f32 to vector<16x16xf32>
    %786 = arith.mulf %784, %785 : vector<16x16xf32>
    %787 = arith.addf %782, %786 : vector<16x16xf32>
    %c106 = arith.constant 106 : index
    %788 = memref.load %arg2[%c106] : memref<108xf32, #tpu.memory_space<smem>>
    %789 = vector.extract_strided_slice %749 {offsets = [2, 0], sizes = [16, 16], strides = [1, 1]} : vector<18x16xf32> to vector<16x16xf32>
    %790 = vector.broadcast %788 : f32 to vector<16x16xf32>
    %791 = arith.mulf %789, %790 : vector<16x16xf32>
    %792 = arith.addf %787, %791 : vector<16x16xf32>
    %c107 = arith.constant 107 : index
    %793 = memref.load %arg2[%c107] : memref<108xf32, #tpu.memory_space<smem>>
    %794 = vector.extract_strided_slice %750 {offsets = [2, 0], sizes = [16, 16], strides = [1, 1]} : vector<18x16xf32> to vector<16x16xf32>
    %795 = vector.broadcast %793 : f32 to vector<16x16xf32>
    %796 = arith.mulf %794, %795 : vector<16x16xf32>
    %797 = arith.addf %792, %796 : vector<16x16xf32>
    %cst_162 = arith.constant 0.000000e+00 : f32
    %798 = vector.broadcast %cst_162 : f32 to vector<16x16xf32>
    %799 = arith.maximumf %797, %798 : vector<16x16xf32>
    %c27_163 = arith.constant 27 : index
    %800 = memref.load %arg3[%c27_163] : memref<36xf32, #tpu.memory_space<smem>>
    %801 = vector.broadcast %800 : f32 to vector<16x16xf32>
    %802 = arith.mulf %691, %801 : vector<16x16xf32>
    %803 = arith.addf %643, %802 : vector<16x16xf32>
    %c28_164 = arith.constant 28 : index
    %804 = memref.load %arg3[%c28_164] : memref<36xf32, #tpu.memory_space<smem>>
    %805 = vector.broadcast %804 : f32 to vector<16x16xf32>
    %806 = arith.mulf %745, %805 : vector<16x16xf32>
    %807 = arith.addf %803, %806 : vector<16x16xf32>
    %c29_165 = arith.constant 29 : index
    %808 = memref.load %arg3[%c29_165] : memref<36xf32, #tpu.memory_space<smem>>
    %809 = vector.broadcast %808 : f32 to vector<16x16xf32>
    %810 = arith.mulf %799, %809 : vector<16x16xf32>
    %811 = arith.addf %807, %810 : vector<16x16xf32>
    %c30_166 = arith.constant 30 : index
    %812 = memref.load %arg3[%c30_166] : memref<36xf32, #tpu.memory_space<smem>>
    %813 = vector.broadcast %812 : f32 to vector<16x16xf32>
    %814 = arith.mulf %691, %813 : vector<16x16xf32>
    %815 = arith.addf %697, %814 : vector<16x16xf32>
    %c31_167 = arith.constant 31 : index
    %816 = memref.load %arg3[%c31_167] : memref<36xf32, #tpu.memory_space<smem>>
    %817 = vector.broadcast %816 : f32 to vector<16x16xf32>
    %818 = arith.mulf %745, %817 : vector<16x16xf32>
    %819 = arith.addf %815, %818 : vector<16x16xf32>
    %c32_168 = arith.constant 32 : index
    %820 = memref.load %arg3[%c32_168] : memref<36xf32, #tpu.memory_space<smem>>
    %821 = vector.broadcast %820 : f32 to vector<16x16xf32>
    %822 = arith.mulf %799, %821 : vector<16x16xf32>
    %823 = arith.addf %819, %822 : vector<16x16xf32>
    %c33_169 = arith.constant 33 : index
    %824 = memref.load %arg3[%c33_169] : memref<36xf32, #tpu.memory_space<smem>>
    %825 = vector.broadcast %824 : f32 to vector<16x16xf32>
    %826 = arith.mulf %691, %825 : vector<16x16xf32>
    %827 = arith.addf %751, %826 : vector<16x16xf32>
    %c34_170 = arith.constant 34 : index
    %828 = memref.load %arg3[%c34_170] : memref<36xf32, #tpu.memory_space<smem>>
    %829 = vector.broadcast %828 : f32 to vector<16x16xf32>
    %830 = arith.mulf %745, %829 : vector<16x16xf32>
    %831 = arith.addf %827, %830 : vector<16x16xf32>
    %c35_171 = arith.constant 35 : index
    %832 = memref.load %arg3[%c35_171] : memref<36xf32, #tpu.memory_space<smem>>
    %833 = vector.broadcast %832 : f32 to vector<16x16xf32>
    %834 = arith.mulf %799, %833 : vector<16x16xf32>
    %835 = arith.addf %831, %834 : vector<16x16xf32>
    %c0_172 = arith.constant 0 : index
    %c0_173 = arith.constant 0 : index
    %c1_174 = arith.constant 1 : index
    %c1_175 = arith.constant 1 : index
    %836 = vector.load %arg7[%c0_172, %c0_173, %c1_174, %c1_175] : memref<1x3x18x18xf32, #tpu.memory_space<vmem>>, vector<1x1x16x16xf32>
    %837 = vector.shape_cast %836 : vector<1x1x16x16xf32> to vector<16x16xf32>
    %838 = vector.shape_cast %811 : vector<16x16xf32> to vector<1x1x16x16xf32>
    tpu.vector_store %arg7[%c0_172, %c0_173, %c1_174, %c1_175], %838 {strides = array<i32>} : memref<1x3x18x18xf32, #tpu.memory_space<vmem>>, vector<1x1x16x16xf32>,
    %c0_176 = arith.constant 0 : index
    %c1_177 = arith.constant 1 : index
    %c1_178 = arith.constant 1 : index
    %c1_179 = arith.constant 1 : index
    %839 = vector.load %arg7[%c0_176, %c1_177, %c1_178, %c1_179] : memref<1x3x18x18xf32, #tpu.memory_space<vmem>>, vector<1x1x16x16xf32>
    %840 = vector.shape_cast %839 : vector<1x1x16x16xf32> to vector<16x16xf32>
    %841 = vector.shape_cast %823 : vector<16x16xf32> to vector<1x1x16x16xf32>
    tpu.vector_store %arg7[%c0_176, %c1_177, %c1_178, %c1_179], %841 {strides = array<i32>} : memref<1x3x18x18xf32, #tpu.memory_space<vmem>>, vector<1x1x16x16xf32>,
    %c0_180 = arith.constant 0 : index
    %c2_181 = arith.constant 2 : index
    %c1_182 = arith.constant 1 : index
    %c1_183 = arith.constant 1 : index
    %842 = vector.load %arg7[%c0_180, %c2_181, %c1_182, %c1_183] : memref<1x3x18x18xf32, #tpu.memory_space<vmem>>, vector<1x1x16x16xf32>
    %843 = vector.shape_cast %842 : vector<1x1x16x16xf32> to vector<16x16xf32>
    %844 = vector.shape_cast %835 : vector<16x16xf32> to vector<1x1x16x16xf32>
    tpu.vector_store %arg7[%c0_180, %c2_181, %c1_182, %c1_183], %844 {strides = array<i32>} : memref<1x3x18x18xf32, #tpu.memory_space<vmem>>, vector<1x1x16x16xf32>,
    %cst_184 = arith.constant 0.000000e+00 : f32
    %845 = vector.broadcast %cst_184 : f32 to vector<16x16xf32>
    %c0_185 = arith.constant 0 : index
    %c0_186 = arith.constant 0 : index
    %c0_187 = arith.constant 0 : index
    %c0_188 = arith.constant 0 : index
    %846 = vector.load %arg7[%c0_185, %c0_186, %c0_187, %c0_188] : memref<1x3x18x18xf32, #tpu.memory_space<vmem>>, vector<1x1x18x18xf32>
    %847 = vector.shape_cast %846 : vector<1x1x18x18xf32> to vector<18x18xf32>
    %848 = vector.extract_strided_slice %847 {offsets = [0, 0], sizes = [18, 16], strides = [1, 1]} : vector<18x18xf32> to vector<18x16xf32>
    %849 = vector.extract_strided_slice %847 {offsets = [0, 1], sizes = [18, 16], strides = [1, 1]} : vector<18x18xf32> to vector<18x16xf32>
    %850 = vector.extract_strided_slice %847 {offsets = [0, 2], sizes = [18, 16], strides = [1, 1]} : vector<18x18xf32> to vector<18x16xf32>
    %c0_189 = arith.constant 0 : index
    %851 = memref.load %arg4[%c0_189] : memref<81xf32, #tpu.memory_space<smem>>
    %852 = vector.extract_strided_slice %848 {offsets = [0, 0], sizes = [16, 16], strides = [1, 1]} : vector<18x16xf32> to vector<16x16xf32>
    %853 = vector.broadcast %851 : f32 to vector<16x16xf32>
    %854 = arith.mulf %852, %853 : vector<16x16xf32>
    %855 = arith.addf %845, %854 : vector<16x16xf32>
    %c1_190 = arith.constant 1 : index
    %856 = memref.load %arg4[%c1_190] : memref<81xf32, #tpu.memory_space<smem>>
    %857 = vector.extract_strided_slice %849 {offsets = [0, 0], sizes = [16, 16], strides = [1, 1]} : vector<18x16xf32> to vector<16x16xf32>
    %858 = vector.broadcast %856 : f32 to vector<16x16xf32>
    %859 = arith.mulf %857, %858 : vector<16x16xf32>
    %860 = arith.addf %855, %859 : vector<16x16xf32>
    %c2_191 = arith.constant 2 : index
    %861 = memref.load %arg4[%c2_191] : memref<81xf32, #tpu.memory_space<smem>>
    %862 = vector.extract_strided_slice %850 {offsets = [0, 0], sizes = [16, 16], strides = [1, 1]} : vector<18x16xf32> to vector<16x16xf32>
    %863 = vector.broadcast %861 : f32 to vector<16x16xf32>
    %864 = arith.mulf %862, %863 : vector<16x16xf32>
    %865 = arith.addf %860, %864 : vector<16x16xf32>
    %c3_192 = arith.constant 3 : index
    %866 = memref.load %arg4[%c3_192] : memref<81xf32, #tpu.memory_space<smem>>
    %867 = vector.extract_strided_slice %848 {offsets = [1, 0], sizes = [16, 16], strides = [1, 1]} : vector<18x16xf32> to vector<16x16xf32>
    %868 = vector.broadcast %866 : f32 to vector<16x16xf32>
    %869 = arith.mulf %867, %868 : vector<16x16xf32>
    %870 = arith.addf %865, %869 : vector<16x16xf32>
    %c4_193 = arith.constant 4 : index
    %871 = memref.load %arg4[%c4_193] : memref<81xf32, #tpu.memory_space<smem>>
    %872 = vector.extract_strided_slice %849 {offsets = [1, 0], sizes = [16, 16], strides = [1, 1]} : vector<18x16xf32> to vector<16x16xf32>
    %873 = vector.broadcast %871 : f32 to vector<16x16xf32>
    %874 = arith.mulf %872, %873 : vector<16x16xf32>
    %875 = arith.addf %870, %874 : vector<16x16xf32>
    %c5_194 = arith.constant 5 : index
    %876 = memref.load %arg4[%c5_194] : memref<81xf32, #tpu.memory_space<smem>>
    %877 = vector.extract_strided_slice %850 {offsets = [1, 0], sizes = [16, 16], strides = [1, 1]} : vector<18x16xf32> to vector<16x16xf32>
    %878 = vector.broadcast %876 : f32 to vector<16x16xf32>
    %879 = arith.mulf %877, %878 : vector<16x16xf32>
    %880 = arith.addf %875, %879 : vector<16x16xf32>
    %c6_195 = arith.constant 6 : index
    %881 = memref.load %arg4[%c6_195] : memref<81xf32, #tpu.memory_space<smem>>
    %882 = vector.extract_strided_slice %848 {offsets = [2, 0], sizes = [16, 16], strides = [1, 1]} : vector<18x16xf32> to vector<16x16xf32>
    %883 = vector.broadcast %881 : f32 to vector<16x16xf32>
    %884 = arith.mulf %882, %883 : vector<16x16xf32>
    %885 = arith.addf %880, %884 : vector<16x16xf32>
    %c7_196 = arith.constant 7 : index
    %886 = memref.load %arg4[%c7_196] : memref<81xf32, #tpu.memory_space<smem>>
    %887 = vector.extract_strided_slice %849 {offsets = [2, 0], sizes = [16, 16], strides = [1, 1]} : vector<18x16xf32> to vector<16x16xf32>
    %888 = vector.broadcast %886 : f32 to vector<16x16xf32>
    %889 = arith.mulf %887, %888 : vector<16x16xf32>
    %890 = arith.addf %885, %889 : vector<16x16xf32>
    %c8_197 = arith.constant 8 : index
    %891 = memref.load %arg4[%c8_197] : memref<81xf32, #tpu.memory_space<smem>>
    %892 = vector.extract_strided_slice %850 {offsets = [2, 0], sizes = [16, 16], strides = [1, 1]} : vector<18x16xf32> to vector<16x16xf32>
    %893 = vector.broadcast %891 : f32 to vector<16x16xf32>
    %894 = arith.mulf %892, %893 : vector<16x16xf32>
    %895 = arith.addf %890, %894 : vector<16x16xf32>
    %c0_198 = arith.constant 0 : index
    %c1_199 = arith.constant 1 : index
    %c0_200 = arith.constant 0 : index
    %c0_201 = arith.constant 0 : index
    %896 = vector.load %arg7[%c0_198, %c1_199, %c0_200, %c0_201] : memref<1x3x18x18xf32, #tpu.memory_space<vmem>>, vector<1x1x18x18xf32>
    %897 = vector.shape_cast %896 : vector<1x1x18x18xf32> to vector<18x18xf32>
    %898 = vector.extract_strided_slice %897 {offsets = [0, 0], sizes = [18, 16], strides = [1, 1]} : vector<18x18xf32> to vector<18x16xf32>
    %899 = vector.extract_strided_slice %897 {offsets = [0, 1], sizes = [18, 16], strides = [1, 1]} : vector<18x18xf32> to vector<18x16xf32>
    %900 = vector.extract_strided_slice %897 {offsets = [0, 2], sizes = [18, 16], strides = [1, 1]} : vector<18x18xf32> to vector<18x16xf32>
    %c9_202 = arith.constant 9 : index
    %901 = memref.load %arg4[%c9_202] : memref<81xf32, #tpu.memory_space<smem>>
    %902 = vector.extract_strided_slice %898 {offsets = [0, 0], sizes = [16, 16], strides = [1, 1]} : vector<18x16xf32> to vector<16x16xf32>
    %903 = vector.broadcast %901 : f32 to vector<16x16xf32>
    %904 = arith.mulf %902, %903 : vector<16x16xf32>
    %905 = arith.addf %895, %904 : vector<16x16xf32>
    %c10_203 = arith.constant 10 : index
    %906 = memref.load %arg4[%c10_203] : memref<81xf32, #tpu.memory_space<smem>>
    %907 = vector.extract_strided_slice %899 {offsets = [0, 0], sizes = [16, 16], strides = [1, 1]} : vector<18x16xf32> to vector<16x16xf32>
    %908 = vector.broadcast %906 : f32 to vector<16x16xf32>
    %909 = arith.mulf %907, %908 : vector<16x16xf32>
    %910 = arith.addf %905, %909 : vector<16x16xf32>
    %c11_204 = arith.constant 11 : index
    %911 = memref.load %arg4[%c11_204] : memref<81xf32, #tpu.memory_space<smem>>
    %912 = vector.extract_strided_slice %900 {offsets = [0, 0], sizes = [16, 16], strides = [1, 1]} : vector<18x16xf32> to vector<16x16xf32>
    %913 = vector.broadcast %911 : f32 to vector<16x16xf32>
    %914 = arith.mulf %912, %913 : vector<16x16xf32>
    %915 = arith.addf %910, %914 : vector<16x16xf32>
    %c12_205 = arith.constant 12 : index
    %916 = memref.load %arg4[%c12_205] : memref<81xf32, #tpu.memory_space<smem>>
    %917 = vector.extract_strided_slice %898 {offsets = [1, 0], sizes = [16, 16], strides = [1, 1]} : vector<18x16xf32> to vector<16x16xf32>
    %918 = vector.broadcast %916 : f32 to vector<16x16xf32>
    %919 = arith.mulf %917, %918 : vector<16x16xf32>
    %920 = arith.addf %915, %919 : vector<16x16xf32>
    %c13_206 = arith.constant 13 : index
    %921 = memref.load %arg4[%c13_206] : memref<81xf32, #tpu.memory_space<smem>>
    %922 = vector.extract_strided_slice %899 {offsets = [1, 0], sizes = [16, 16], strides = [1, 1]} : vector<18x16xf32> to vector<16x16xf32>
    %923 = vector.broadcast %921 : f32 to vector<16x16xf32>
    %924 = arith.mulf %922, %923 : vector<16x16xf32>
    %925 = arith.addf %920, %924 : vector<16x16xf32>
    %c14_207 = arith.constant 14 : index
    %926 = memref.load %arg4[%c14_207] : memref<81xf32, #tpu.memory_space<smem>>
    %927 = vector.extract_strided_slice %900 {offsets = [1, 0], sizes = [16, 16], strides = [1, 1]} : vector<18x16xf32> to vector<16x16xf32>
    %928 = vector.broadcast %926 : f32 to vector<16x16xf32>
    %929 = arith.mulf %927, %928 : vector<16x16xf32>
    %930 = arith.addf %925, %929 : vector<16x16xf32>
    %c15_208 = arith.constant 15 : index
    %931 = memref.load %arg4[%c15_208] : memref<81xf32, #tpu.memory_space<smem>>
    %932 = vector.extract_strided_slice %898 {offsets = [2, 0], sizes = [16, 16], strides = [1, 1]} : vector<18x16xf32> to vector<16x16xf32>
    %933 = vector.broadcast %931 : f32 to vector<16x16xf32>
    %934 = arith.mulf %932, %933 : vector<16x16xf32>
    %935 = arith.addf %930, %934 : vector<16x16xf32>
    %c16_209 = arith.constant 16 : index
    %936 = memref.load %arg4[%c16_209] : memref<81xf32, #tpu.memory_space<smem>>
    %937 = vector.extract_strided_slice %899 {offsets = [2, 0], sizes = [16, 16], strides = [1, 1]} : vector<18x16xf32> to vector<16x16xf32>
    %938 = vector.broadcast %936 : f32 to vector<16x16xf32>
    %939 = arith.mulf %937, %938 : vector<16x16xf32>
    %940 = arith.addf %935, %939 : vector<16x16xf32>
    %c17_210 = arith.constant 17 : index
    %941 = memref.load %arg4[%c17_210] : memref<81xf32, #tpu.memory_space<smem>>
    %942 = vector.extract_strided_slice %900 {offsets = [2, 0], sizes = [16, 16], strides = [1, 1]} : vector<18x16xf32> to vector<16x16xf32>
    %943 = vector.broadcast %941 : f32 to vector<16x16xf32>
    %944 = arith.mulf %942, %943 : vector<16x16xf32>
    %945 = arith.addf %940, %944 : vector<16x16xf32>
    %c0_211 = arith.constant 0 : index
    %c2_212 = arith.constant 2 : index
    %c0_213 = arith.constant 0 : index
    %c0_214 = arith.constant 0 : index
    %946 = vector.load %arg7[%c0_211, %c2_212, %c0_213, %c0_214] : memref<1x3x18x18xf32, #tpu.memory_space<vmem>>, vector<1x1x18x18xf32>
    %947 = vector.shape_cast %946 : vector<1x1x18x18xf32> to vector<18x18xf32>
    %948 = vector.extract_strided_slice %947 {offsets = [0, 0], sizes = [18, 16], strides = [1, 1]} : vector<18x18xf32> to vector<18x16xf32>
    %949 = vector.extract_strided_slice %947 {offsets = [0, 1], sizes = [18, 16], strides = [1, 1]} : vector<18x18xf32> to vector<18x16xf32>
    %950 = vector.extract_strided_slice %947 {offsets = [0, 2], sizes = [18, 16], strides = [1, 1]} : vector<18x18xf32> to vector<18x16xf32>
    %c18_215 = arith.constant 18 : index
    %951 = memref.load %arg4[%c18_215] : memref<81xf32, #tpu.memory_space<smem>>
    %952 = vector.extract_strided_slice %948 {offsets = [0, 0], sizes = [16, 16], strides = [1, 1]} : vector<18x16xf32> to vector<16x16xf32>
    %953 = vector.broadcast %951 : f32 to vector<16x16xf32>
    %954 = arith.mulf %952, %953 : vector<16x16xf32>
    %955 = arith.addf %945, %954 : vector<16x16xf32>
    %c19_216 = arith.constant 19 : index
    %956 = memref.load %arg4[%c19_216] : memref<81xf32, #tpu.memory_space<smem>>
    %957 = vector.extract_strided_slice %949 {offsets = [0, 0], sizes = [16, 16], strides = [1, 1]} : vector<18x16xf32> to vector<16x16xf32>
    %958 = vector.broadcast %956 : f32 to vector<16x16xf32>
    %959 = arith.mulf %957, %958 : vector<16x16xf32>
    %960 = arith.addf %955, %959 : vector<16x16xf32>
    %c20_217 = arith.constant 20 : index
    %961 = memref.load %arg4[%c20_217] : memref<81xf32, #tpu.memory_space<smem>>
    %962 = vector.extract_strided_slice %950 {offsets = [0, 0], sizes = [16, 16], strides = [1, 1]} : vector<18x16xf32> to vector<16x16xf32>
    %963 = vector.broadcast %961 : f32 to vector<16x16xf32>
    %964 = arith.mulf %962, %963 : vector<16x16xf32>
    %965 = arith.addf %960, %964 : vector<16x16xf32>
    %c21_218 = arith.constant 21 : index
    %966 = memref.load %arg4[%c21_218] : memref<81xf32, #tpu.memory_space<smem>>
    %967 = vector.extract_strided_slice %948 {offsets = [1, 0], sizes = [16, 16], strides = [1, 1]} : vector<18x16xf32> to vector<16x16xf32>
    %968 = vector.broadcast %966 : f32 to vector<16x16xf32>
    %969 = arith.mulf %967, %968 : vector<16x16xf32>
    %970 = arith.addf %965, %969 : vector<16x16xf32>
    %c22_219 = arith.constant 22 : index
    %971 = memref.load %arg4[%c22_219] : memref<81xf32, #tpu.memory_space<smem>>
    %972 = vector.extract_strided_slice %949 {offsets = [1, 0], sizes = [16, 16], strides = [1, 1]} : vector<18x16xf32> to vector<16x16xf32>
    %973 = vector.broadcast %971 : f32 to vector<16x16xf32>
    %974 = arith.mulf %972, %973 : vector<16x16xf32>
    %975 = arith.addf %970, %974 : vector<16x16xf32>
    %c23_220 = arith.constant 23 : index
    %976 = memref.load %arg4[%c23_220] : memref<81xf32, #tpu.memory_space<smem>>
    %977 = vector.extract_strided_slice %950 {offsets = [1, 0], sizes = [16, 16], strides = [1, 1]} : vector<18x16xf32> to vector<16x16xf32>
    %978 = vector.broadcast %976 : f32 to vector<16x16xf32>
    %979 = arith.mulf %977, %978 : vector<16x16xf32>
    %980 = arith.addf %975, %979 : vector<16x16xf32>
    %c24_221 = arith.constant 24 : index
    %981 = memref.load %arg4[%c24_221] : memref<81xf32, #tpu.memory_space<smem>>
    %982 = vector.extract_strided_slice %948 {offsets = [2, 0], sizes = [16, 16], strides = [1, 1]} : vector<18x16xf32> to vector<16x16xf32>
    %983 = vector.broadcast %981 : f32 to vector<16x16xf32>
    %984 = arith.mulf %982, %983 : vector<16x16xf32>
    %985 = arith.addf %980, %984 : vector<16x16xf32>
    %c25_222 = arith.constant 25 : index
    %986 = memref.load %arg4[%c25_222] : memref<81xf32, #tpu.memory_space<smem>>
    %987 = vector.extract_strided_slice %949 {offsets = [2, 0], sizes = [16, 16], strides = [1, 1]} : vector<18x16xf32> to vector<16x16xf32>
    %988 = vector.broadcast %986 : f32 to vector<16x16xf32>
    %989 = arith.mulf %987, %988 : vector<16x16xf32>
    %990 = arith.addf %985, %989 : vector<16x16xf32>
    %c26_223 = arith.constant 26 : index
    %991 = memref.load %arg4[%c26_223] : memref<81xf32, #tpu.memory_space<smem>>
    %992 = vector.extract_strided_slice %950 {offsets = [2, 0], sizes = [16, 16], strides = [1, 1]} : vector<18x16xf32> to vector<16x16xf32>
    %993 = vector.broadcast %991 : f32 to vector<16x16xf32>
    %994 = arith.mulf %992, %993 : vector<16x16xf32>
    %995 = arith.addf %990, %994 : vector<16x16xf32>
    %c0_224 = arith.constant 0 : index
    %996 = memref.load %arg5[%c0_224] : memref<3xf32, #tpu.memory_space<smem>>
    %997 = vector.broadcast %996 : f32 to vector<16x16xf32>
    %998 = arith.addf %995, %997 : vector<16x16xf32>
    %c0_225 = arith.constant 0 : index
    %c0_226 = arith.constant 0 : index
    %c0_227 = arith.constant 0 : index
    %c0_228 = arith.constant 0 : index
    %999 = vector.load %arg6[%c0_225, %c0_226, %c0_227, %c0_228] : memref<1x3x16x16xf32, #tpu.memory_space<vmem>>, vector<1x1x16x16xf32>
    %1000 = vector.shape_cast %999 : vector<1x1x16x16xf32> to vector<16x16xf32>
    %1001 = vector.shape_cast %998 : vector<16x16xf32> to vector<1x1x16x16xf32>
    tpu.vector_store %arg6[%c0_225, %c0_226, %c0_227, %c0_228], %1001 {strides = array<i32>} : memref<1x3x16x16xf32, #tpu.memory_space<vmem>>, vector<1x1x16x16xf32>,
    %cst_229 = arith.constant 0.000000e+00 : f32
    %1002 = vector.broadcast %cst_229 : f32 to vector<16x16xf32>
    %c0_230 = arith.constant 0 : index
    %c0_231 = arith.constant 0 : index
    %c0_232 = arith.constant 0 : index
    %c0_233 = arith.constant 0 : index
    %1003 = vector.load %arg7[%c0_230, %c0_231, %c0_232, %c0_233] : memref<1x3x18x18xf32, #tpu.memory_space<vmem>>, vector<1x1x18x18xf32>
    %1004 = vector.shape_cast %1003 : vector<1x1x18x18xf32> to vector<18x18xf32>
    %1005 = vector.extract_strided_slice %1004 {offsets = [0, 0], sizes = [18, 16], strides = [1, 1]} : vector<18x18xf32> to vector<18x16xf32>
    %1006 = vector.extract_strided_slice %1004 {offsets = [0, 1], sizes = [18, 16], strides = [1, 1]} : vector<18x18xf32> to vector<18x16xf32>
    %1007 = vector.extract_strided_slice %1004 {offsets = [0, 2], sizes = [18, 16], strides = [1, 1]} : vector<18x18xf32> to vector<18x16xf32>
    %c27_234 = arith.constant 27 : index
    %1008 = memref.load %arg4[%c27_234] : memref<81xf32, #tpu.memory_space<smem>>
    %1009 = vector.extract_strided_slice %1005 {offsets = [0, 0], sizes = [16, 16], strides = [1, 1]} : vector<18x16xf32> to vector<16x16xf32>
    %1010 = vector.broadcast %1008 : f32 to vector<16x16xf32>
    %1011 = arith.mulf %1009, %1010 : vector<16x16xf32>
    %1012 = arith.addf %1002, %1011 : vector<16x16xf32>
    %c28_235 = arith.constant 28 : index
    %1013 = memref.load %arg4[%c28_235] : memref<81xf32, #tpu.memory_space<smem>>
    %1014 = vector.extract_strided_slice %1006 {offsets = [0, 0], sizes = [16, 16], strides = [1, 1]} : vector<18x16xf32> to vector<16x16xf32>
    %1015 = vector.broadcast %1013 : f32 to vector<16x16xf32>
    %1016 = arith.mulf %1014, %1015 : vector<16x16xf32>
    %1017 = arith.addf %1012, %1016 : vector<16x16xf32>
    %c29_236 = arith.constant 29 : index
    %1018 = memref.load %arg4[%c29_236] : memref<81xf32, #tpu.memory_space<smem>>
    %1019 = vector.extract_strided_slice %1007 {offsets = [0, 0], sizes = [16, 16], strides = [1, 1]} : vector<18x16xf32> to vector<16x16xf32>
    %1020 = vector.broadcast %1018 : f32 to vector<16x16xf32>
    %1021 = arith.mulf %1019, %1020 : vector<16x16xf32>
    %1022 = arith.addf %1017, %1021 : vector<16x16xf32>
    %c30_237 = arith.constant 30 : index
    %1023 = memref.load %arg4[%c30_237] : memref<81xf32, #tpu.memory_space<smem>>
    %1024 = vector.extract_strided_slice %1005 {offsets = [1, 0], sizes = [16, 16], strides = [1, 1]} : vector<18x16xf32> to vector<16x16xf32>
    %1025 = vector.broadcast %1023 : f32 to vector<16x16xf32>
    %1026 = arith.mulf %1024, %1025 : vector<16x16xf32>
    %1027 = arith.addf %1022, %1026 : vector<16x16xf32>
    %c31_238 = arith.constant 31 : index
    %1028 = memref.load %arg4[%c31_238] : memref<81xf32, #tpu.memory_space<smem>>
    %1029 = vector.extract_strided_slice %1006 {offsets = [1, 0], sizes = [16, 16], strides = [1, 1]} : vector<18x16xf32> to vector<16x16xf32>
    %1030 = vector.broadcast %1028 : f32 to vector<16x16xf32>
    %1031 = arith.mulf %1029, %1030 : vector<16x16xf32>
    %1032 = arith.addf %1027, %1031 : vector<16x16xf32>
    %c32_239 = arith.constant 32 : index
    %1033 = memref.load %arg4[%c32_239] : memref<81xf32, #tpu.memory_space<smem>>
    %1034 = vector.extract_strided_slice %1007 {offsets = [1, 0], sizes = [16, 16], strides = [1, 1]} : vector<18x16xf32> to vector<16x16xf32>
    %1035 = vector.broadcast %1033 : f32 to vector<16x16xf32>
    %1036 = arith.mulf %1034, %1035 : vector<16x16xf32>
    %1037 = arith.addf %1032, %1036 : vector<16x16xf32>
    %c33_240 = arith.constant 33 : index
    %1038 = memref.load %arg4[%c33_240] : memref<81xf32, #tpu.memory_space<smem>>
    %1039 = vector.extract_strided_slice %1005 {offsets = [2, 0], sizes = [16, 16], strides = [1, 1]} : vector<18x16xf32> to vector<16x16xf32>
    %1040 = vector.broadcast %1038 : f32 to vector<16x16xf32>
    %1041 = arith.mulf %1039, %1040 : vector<16x16xf32>
    %1042 = arith.addf %1037, %1041 : vector<16x16xf32>
    %c34_241 = arith.constant 34 : index
    %1043 = memref.load %arg4[%c34_241] : memref<81xf32, #tpu.memory_space<smem>>
    %1044 = vector.extract_strided_slice %1006 {offsets = [2, 0], sizes = [16, 16], strides = [1, 1]} : vector<18x16xf32> to vector<16x16xf32>
    %1045 = vector.broadcast %1043 : f32 to vector<16x16xf32>
    %1046 = arith.mulf %1044, %1045 : vector<16x16xf32>
    %1047 = arith.addf %1042, %1046 : vector<16x16xf32>
    %c35_242 = arith.constant 35 : index
    %1048 = memref.load %arg4[%c35_242] : memref<81xf32, #tpu.memory_space<smem>>
    %1049 = vector.extract_strided_slice %1007 {offsets = [2, 0], sizes = [16, 16], strides = [1, 1]} : vector<18x16xf32> to vector<16x16xf32>
    %1050 = vector.broadcast %1048 : f32 to vector<16x16xf32>
    %1051 = arith.mulf %1049, %1050 : vector<16x16xf32>
    %1052 = arith.addf %1047, %1051 : vector<16x16xf32>
    %c0_243 = arith.constant 0 : index
    %c1_244 = arith.constant 1 : index
    %c0_245 = arith.constant 0 : index
    %c0_246 = arith.constant 0 : index
    %1053 = vector.load %arg7[%c0_243, %c1_244, %c0_245, %c0_246] : memref<1x3x18x18xf32, #tpu.memory_space<vmem>>, vector<1x1x18x18xf32>
    %1054 = vector.shape_cast %1053 : vector<1x1x18x18xf32> to vector<18x18xf32>
    %1055 = vector.extract_strided_slice %1054 {offsets = [0, 0], sizes = [18, 16], strides = [1, 1]} : vector<18x18xf32> to vector<18x16xf32>
    %1056 = vector.extract_strided_slice %1054 {offsets = [0, 1], sizes = [18, 16], strides = [1, 1]} : vector<18x18xf32> to vector<18x16xf32>
    %1057 = vector.extract_strided_slice %1054 {offsets = [0, 2], sizes = [18, 16], strides = [1, 1]} : vector<18x18xf32> to vector<18x16xf32>
    %c36_247 = arith.constant 36 : index
    %1058 = memref.load %arg4[%c36_247] : memref<81xf32, #tpu.memory_space<smem>>
    %1059 = vector.extract_strided_slice %1055 {offsets = [0, 0], sizes = [16, 16], strides = [1, 1]} : vector<18x16xf32> to vector<16x16xf32>
    %1060 = vector.broadcast %1058 : f32 to vector<16x16xf32>
    %1061 = arith.mulf %1059, %1060 : vector<16x16xf32>
    %1062 = arith.addf %1052, %1061 : vector<16x16xf32>
    %c37_248 = arith.constant 37 : index
    %1063 = memref.load %arg4[%c37_248] : memref<81xf32, #tpu.memory_space<smem>>
    %1064 = vector.extract_strided_slice %1056 {offsets = [0, 0], sizes = [16, 16], strides = [1, 1]} : vector<18x16xf32> to vector<16x16xf32>
    %1065 = vector.broadcast %1063 : f32 to vector<16x16xf32>
    %1066 = arith.mulf %1064, %1065 : vector<16x16xf32>
    %1067 = arith.addf %1062, %1066 : vector<16x16xf32>
    %c38_249 = arith.constant 38 : index
    %1068 = memref.load %arg4[%c38_249] : memref<81xf32, #tpu.memory_space<smem>>
    %1069 = vector.extract_strided_slice %1057 {offsets = [0, 0], sizes = [16, 16], strides = [1, 1]} : vector<18x16xf32> to vector<16x16xf32>
    %1070 = vector.broadcast %1068 : f32 to vector<16x16xf32>
    %1071 = arith.mulf %1069, %1070 : vector<16x16xf32>
    %1072 = arith.addf %1067, %1071 : vector<16x16xf32>
    %c39_250 = arith.constant 39 : index
    %1073 = memref.load %arg4[%c39_250] : memref<81xf32, #tpu.memory_space<smem>>
    %1074 = vector.extract_strided_slice %1055 {offsets = [1, 0], sizes = [16, 16], strides = [1, 1]} : vector<18x16xf32> to vector<16x16xf32>
    %1075 = vector.broadcast %1073 : f32 to vector<16x16xf32>
    %1076 = arith.mulf %1074, %1075 : vector<16x16xf32>
    %1077 = arith.addf %1072, %1076 : vector<16x16xf32>
    %c40_251 = arith.constant 40 : index
    %1078 = memref.load %arg4[%c40_251] : memref<81xf32, #tpu.memory_space<smem>>
    %1079 = vector.extract_strided_slice %1056 {offsets = [1, 0], sizes = [16, 16], strides = [1, 1]} : vector<18x16xf32> to vector<16x16xf32>
    %1080 = vector.broadcast %1078 : f32 to vector<16x16xf32>
    %1081 = arith.mulf %1079, %1080 : vector<16x16xf32>
    %1082 = arith.addf %1077, %1081 : vector<16x16xf32>
    %c41_252 = arith.constant 41 : index
    %1083 = memref.load %arg4[%c41_252] : memref<81xf32, #tpu.memory_space<smem>>
    %1084 = vector.extract_strided_slice %1057 {offsets = [1, 0], sizes = [16, 16], strides = [1, 1]} : vector<18x16xf32> to vector<16x16xf32>
    %1085 = vector.broadcast %1083 : f32 to vector<16x16xf32>
    %1086 = arith.mulf %1084, %1085 : vector<16x16xf32>
    %1087 = arith.addf %1082, %1086 : vector<16x16xf32>
    %c42_253 = arith.constant 42 : index
    %1088 = memref.load %arg4[%c42_253] : memref<81xf32, #tpu.memory_space<smem>>
    %1089 = vector.extract_strided_slice %1055 {offsets = [2, 0], sizes = [16, 16], strides = [1, 1]} : vector<18x16xf32> to vector<16x16xf32>
    %1090 = vector.broadcast %1088 : f32 to vector<16x16xf32>
    %1091 = arith.mulf %1089, %1090 : vector<16x16xf32>
    %1092 = arith.addf %1087, %1091 : vector<16x16xf32>
    %c43_254 = arith.constant 43 : index
    %1093 = memref.load %arg4[%c43_254] : memref<81xf32, #tpu.memory_space<smem>>
    %1094 = vector.extract_strided_slice %1056 {offsets = [2, 0], sizes = [16, 16], strides = [1, 1]} : vector<18x16xf32> to vector<16x16xf32>
    %1095 = vector.broadcast %1093 : f32 to vector<16x16xf32>
    %1096 = arith.mulf %1094, %1095 : vector<16x16xf32>
    %1097 = arith.addf %1092, %1096 : vector<16x16xf32>
    %c44_255 = arith.constant 44 : index
    %1098 = memref.load %arg4[%c44_255] : memref<81xf32, #tpu.memory_space<smem>>
    %1099 = vector.extract_strided_slice %1057 {offsets = [2, 0], sizes = [16, 16], strides = [1, 1]} : vector<18x16xf32> to vector<16x16xf32>
    %1100 = vector.broadcast %1098 : f32 to vector<16x16xf32>
    %1101 = arith.mulf %1099, %1100 : vector<16x16xf32>
    %1102 = arith.addf %1097, %1101 : vector<16x16xf32>
    %c0_256 = arith.constant 0 : index
    %c2_257 = arith.constant 2 : index
    %c0_258 = arith.constant 0 : index
    %c0_259 = arith.constant 0 : index
    %1103 = vector.load %arg7[%c0_256, %c2_257, %c0_258, %c0_259] : memref<1x3x18x18xf32, #tpu.memory_space<vmem>>, vector<1x1x18x18xf32>
    %1104 = vector.shape_cast %1103 : vector<1x1x18x18xf32> to vector<18x18xf32>
    %1105 = vector.extract_strided_slice %1104 {offsets = [0, 0], sizes = [18, 16], strides = [1, 1]} : vector<18x18xf32> to vector<18x16xf32>
    %1106 = vector.extract_strided_slice %1104 {offsets = [0, 1], sizes = [18, 16], strides = [1, 1]} : vector<18x18xf32> to vector<18x16xf32>
    %1107 = vector.extract_strided_slice %1104 {offsets = [0, 2], sizes = [18, 16], strides = [1, 1]} : vector<18x18xf32> to vector<18x16xf32>
    %c45_260 = arith.constant 45 : index
    %1108 = memref.load %arg4[%c45_260] : memref<81xf32, #tpu.memory_space<smem>>
    %1109 = vector.extract_strided_slice %1105 {offsets = [0, 0], sizes = [16, 16], strides = [1, 1]} : vector<18x16xf32> to vector<16x16xf32>
    %1110 = vector.broadcast %1108 : f32 to vector<16x16xf32>
    %1111 = arith.mulf %1109, %1110 : vector<16x16xf32>
    %1112 = arith.addf %1102, %1111 : vector<16x16xf32>
    %c46_261 = arith.constant 46 : index
    %1113 = memref.load %arg4[%c46_261] : memref<81xf32, #tpu.memory_space<smem>>
    %1114 = vector.extract_strided_slice %1106 {offsets = [0, 0], sizes = [16, 16], strides = [1, 1]} : vector<18x16xf32> to vector<16x16xf32>
    %1115 = vector.broadcast %1113 : f32 to vector<16x16xf32>
    %1116 = arith.mulf %1114, %1115 : vector<16x16xf32>
    %1117 = arith.addf %1112, %1116 : vector<16x16xf32>
    %c47_262 = arith.constant 47 : index
    %1118 = memref.load %arg4[%c47_262] : memref<81xf32, #tpu.memory_space<smem>>
    %1119 = vector.extract_strided_slice %1107 {offsets = [0, 0], sizes = [16, 16], strides = [1, 1]} : vector<18x16xf32> to vector<16x16xf32>
    %1120 = vector.broadcast %1118 : f32 to vector<16x16xf32>
    %1121 = arith.mulf %1119, %1120 : vector<16x16xf32>
    %1122 = arith.addf %1117, %1121 : vector<16x16xf32>
    %c48_263 = arith.constant 48 : index
    %1123 = memref.load %arg4[%c48_263] : memref<81xf32, #tpu.memory_space<smem>>
    %1124 = vector.extract_strided_slice %1105 {offsets = [1, 0], sizes = [16, 16], strides = [1, 1]} : vector<18x16xf32> to vector<16x16xf32>
    %1125 = vector.broadcast %1123 : f32 to vector<16x16xf32>
    %1126 = arith.mulf %1124, %1125 : vector<16x16xf32>
    %1127 = arith.addf %1122, %1126 : vector<16x16xf32>
    %c49_264 = arith.constant 49 : index
    %1128 = memref.load %arg4[%c49_264] : memref<81xf32, #tpu.memory_space<smem>>
    %1129 = vector.extract_strided_slice %1106 {offsets = [1, 0], sizes = [16, 16], strides = [1, 1]} : vector<18x16xf32> to vector<16x16xf32>
    %1130 = vector.broadcast %1128 : f32 to vector<16x16xf32>
    %1131 = arith.mulf %1129, %1130 : vector<16x16xf32>
    %1132 = arith.addf %1127, %1131 : vector<16x16xf32>
    %c50_265 = arith.constant 50 : index
    %1133 = memref.load %arg4[%c50_265] : memref<81xf32, #tpu.memory_space<smem>>
    %1134 = vector.extract_strided_slice %1107 {offsets = [1, 0], sizes = [16, 16], strides = [1, 1]} : vector<18x16xf32> to vector<16x16xf32>
    %1135 = vector.broadcast %1133 : f32 to vector<16x16xf32>
    %1136 = arith.mulf %1134, %1135 : vector<16x16xf32>
    %1137 = arith.addf %1132, %1136 : vector<16x16xf32>
    %c51_266 = arith.constant 51 : index
    %1138 = memref.load %arg4[%c51_266] : memref<81xf32, #tpu.memory_space<smem>>
    %1139 = vector.extract_strided_slice %1105 {offsets = [2, 0], sizes = [16, 16], strides = [1, 1]} : vector<18x16xf32> to vector<16x16xf32>
    %1140 = vector.broadcast %1138 : f32 to vector<16x16xf32>
    %1141 = arith.mulf %1139, %1140 : vector<16x16xf32>
    %1142 = arith.addf %1137, %1141 : vector<16x16xf32>
    %c52_267 = arith.constant 52 : index
    %1143 = memref.load %arg4[%c52_267] : memref<81xf32, #tpu.memory_space<smem>>
    %1144 = vector.extract_strided_slice %1106 {offsets = [2, 0], sizes = [16, 16], strides = [1, 1]} : vector<18x16xf32> to vector<16x16xf32>
    %1145 = vector.broadcast %1143 : f32 to vector<16x16xf32>
    %1146 = arith.mulf %1144, %1145 : vector<16x16xf32>
    %1147 = arith.addf %1142, %1146 : vector<16x16xf32>
    %c53_268 = arith.constant 53 : index
    %1148 = memref.load %arg4[%c53_268] : memref<81xf32, #tpu.memory_space<smem>>
    %1149 = vector.extract_strided_slice %1107 {offsets = [2, 0], sizes = [16, 16], strides = [1, 1]} : vector<18x16xf32> to vector<16x16xf32>
    %1150 = vector.broadcast %1148 : f32 to vector<16x16xf32>
    %1151 = arith.mulf %1149, %1150 : vector<16x16xf32>
    %1152 = arith.addf %1147, %1151 : vector<16x16xf32>
    %c1_269 = arith.constant 1 : index
    %1153 = memref.load %arg5[%c1_269] : memref<3xf32, #tpu.memory_space<smem>>
    %1154 = vector.broadcast %1153 : f32 to vector<16x16xf32>
    %1155 = arith.addf %1152, %1154 : vector<16x16xf32>
    %c0_270 = arith.constant 0 : index
    %c1_271 = arith.constant 1 : index
    %c0_272 = arith.constant 0 : index
    %c0_273 = arith.constant 0 : index
    %1156 = vector.load %arg6[%c0_270, %c1_271, %c0_272, %c0_273] : memref<1x3x16x16xf32, #tpu.memory_space<vmem>>, vector<1x1x16x16xf32>
    %1157 = vector.shape_cast %1156 : vector<1x1x16x16xf32> to vector<16x16xf32>
    %1158 = vector.shape_cast %1155 : vector<16x16xf32> to vector<1x1x16x16xf32>
    tpu.vector_store %arg6[%c0_270, %c1_271, %c0_272, %c0_273], %1158 {strides = array<i32>} : memref<1x3x16x16xf32, #tpu.memory_space<vmem>>, vector<1x1x16x16xf32>,
    %cst_274 = arith.constant 0.000000e+00 : f32
    %1159 = vector.broadcast %cst_274 : f32 to vector<16x16xf32>
    %c0_275 = arith.constant 0 : index
    %c0_276 = arith.constant 0 : index
    %c0_277 = arith.constant 0 : index
    %c0_278 = arith.constant 0 : index
    %1160 = vector.load %arg7[%c0_275, %c0_276, %c0_277, %c0_278] : memref<1x3x18x18xf32, #tpu.memory_space<vmem>>, vector<1x1x18x18xf32>
    %1161 = vector.shape_cast %1160 : vector<1x1x18x18xf32> to vector<18x18xf32>
    %1162 = vector.extract_strided_slice %1161 {offsets = [0, 0], sizes = [18, 16], strides = [1, 1]} : vector<18x18xf32> to vector<18x16xf32>
    %1163 = vector.extract_strided_slice %1161 {offsets = [0, 1], sizes = [18, 16], strides = [1, 1]} : vector<18x18xf32> to vector<18x16xf32>
    %1164 = vector.extract_strided_slice %1161 {offsets = [0, 2], sizes = [18, 16], strides = [1, 1]} : vector<18x18xf32> to vector<18x16xf32>
    %c54_279 = arith.constant 54 : index
    %1165 = memref.load %arg4[%c54_279] : memref<81xf32, #tpu.memory_space<smem>>
    %1166 = vector.extract_strided_slice %1162 {offsets = [0, 0], sizes = [16, 16], strides = [1, 1]} : vector<18x16xf32> to vector<16x16xf32>
    %1167 = vector.broadcast %1165 : f32 to vector<16x16xf32>
    %1168 = arith.mulf %1166, %1167 : vector<16x16xf32>
    %1169 = arith.addf %1159, %1168 : vector<16x16xf32>
    %c55_280 = arith.constant 55 : index
    %1170 = memref.load %arg4[%c55_280] : memref<81xf32, #tpu.memory_space<smem>>
    %1171 = vector.extract_strided_slice %1163 {offsets = [0, 0], sizes = [16, 16], strides = [1, 1]} : vector<18x16xf32> to vector<16x16xf32>
    %1172 = vector.broadcast %1170 : f32 to vector<16x16xf32>
    %1173 = arith.mulf %1171, %1172 : vector<16x16xf32>
    %1174 = arith.addf %1169, %1173 : vector<16x16xf32>
    %c56_281 = arith.constant 56 : index
    %1175 = memref.load %arg4[%c56_281] : memref<81xf32, #tpu.memory_space<smem>>
    %1176 = vector.extract_strided_slice %1164 {offsets = [0, 0], sizes = [16, 16], strides = [1, 1]} : vector<18x16xf32> to vector<16x16xf32>
    %1177 = vector.broadcast %1175 : f32 to vector<16x16xf32>
    %1178 = arith.mulf %1176, %1177 : vector<16x16xf32>
    %1179 = arith.addf %1174, %1178 : vector<16x16xf32>
    %c57_282 = arith.constant 57 : index
    %1180 = memref.load %arg4[%c57_282] : memref<81xf32, #tpu.memory_space<smem>>
    %1181 = vector.extract_strided_slice %1162 {offsets = [1, 0], sizes = [16, 16], strides = [1, 1]} : vector<18x16xf32> to vector<16x16xf32>
    %1182 = vector.broadcast %1180 : f32 to vector<16x16xf32>
    %1183 = arith.mulf %1181, %1182 : vector<16x16xf32>
    %1184 = arith.addf %1179, %1183 : vector<16x16xf32>
    %c58_283 = arith.constant 58 : index
    %1185 = memref.load %arg4[%c58_283] : memref<81xf32, #tpu.memory_space<smem>>
    %1186 = vector.extract_strided_slice %1163 {offsets = [1, 0], sizes = [16, 16], strides = [1, 1]} : vector<18x16xf32> to vector<16x16xf32>
    %1187 = vector.broadcast %1185 : f32 to vector<16x16xf32>
    %1188 = arith.mulf %1186, %1187 : vector<16x16xf32>
    %1189 = arith.addf %1184, %1188 : vector<16x16xf32>
    %c59_284 = arith.constant 59 : index
    %1190 = memref.load %arg4[%c59_284] : memref<81xf32, #tpu.memory_space<smem>>
    %1191 = vector.extract_strided_slice %1164 {offsets = [1, 0], sizes = [16, 16], strides = [1, 1]} : vector<18x16xf32> to vector<16x16xf32>
    %1192 = vector.broadcast %1190 : f32 to vector<16x16xf32>
    %1193 = arith.mulf %1191, %1192 : vector<16x16xf32>
    %1194 = arith.addf %1189, %1193 : vector<16x16xf32>
    %c60_285 = arith.constant 60 : index
    %1195 = memref.load %arg4[%c60_285] : memref<81xf32, #tpu.memory_space<smem>>
    %1196 = vector.extract_strided_slice %1162 {offsets = [2, 0], sizes = [16, 16], strides = [1, 1]} : vector<18x16xf32> to vector<16x16xf32>
    %1197 = vector.broadcast %1195 : f32 to vector<16x16xf32>
    %1198 = arith.mulf %1196, %1197 : vector<16x16xf32>
    %1199 = arith.addf %1194, %1198 : vector<16x16xf32>
    %c61_286 = arith.constant 61 : index
    %1200 = memref.load %arg4[%c61_286] : memref<81xf32, #tpu.memory_space<smem>>
    %1201 = vector.extract_strided_slice %1163 {offsets = [2, 0], sizes = [16, 16], strides = [1, 1]} : vector<18x16xf32> to vector<16x16xf32>
    %1202 = vector.broadcast %1200 : f32 to vector<16x16xf32>
    %1203 = arith.mulf %1201, %1202 : vector<16x16xf32>
    %1204 = arith.addf %1199, %1203 : vector<16x16xf32>
    %c62_287 = arith.constant 62 : index
    %1205 = memref.load %arg4[%c62_287] : memref<81xf32, #tpu.memory_space<smem>>
    %1206 = vector.extract_strided_slice %1164 {offsets = [2, 0], sizes = [16, 16], strides = [1, 1]} : vector<18x16xf32> to vector<16x16xf32>
    %1207 = vector.broadcast %1205 : f32 to vector<16x16xf32>
    %1208 = arith.mulf %1206, %1207 : vector<16x16xf32>
    %1209 = arith.addf %1204, %1208 : vector<16x16xf32>
    %c0_288 = arith.constant 0 : index
    %c1_289 = arith.constant 1 : index
    %c0_290 = arith.constant 0 : index
    %c0_291 = arith.constant 0 : index
    %1210 = vector.load %arg7[%c0_288, %c1_289, %c0_290, %c0_291] : memref<1x3x18x18xf32, #tpu.memory_space<vmem>>, vector<1x1x18x18xf32>
    %1211 = vector.shape_cast %1210 : vector<1x1x18x18xf32> to vector<18x18xf32>
    %1212 = vector.extract_strided_slice %1211 {offsets = [0, 0], sizes = [18, 16], strides = [1, 1]} : vector<18x18xf32> to vector<18x16xf32>
    %1213 = vector.extract_strided_slice %1211 {offsets = [0, 1], sizes = [18, 16], strides = [1, 1]} : vector<18x18xf32> to vector<18x16xf32>
    %1214 = vector.extract_strided_slice %1211 {offsets = [0, 2], sizes = [18, 16], strides = [1, 1]} : vector<18x18xf32> to vector<18x16xf32>
    %c63_292 = arith.constant 63 : index
    %1215 = memref.load %arg4[%c63_292] : memref<81xf32, #tpu.memory_space<smem>>
    %1216 = vector.extract_strided_slice %1212 {offsets = [0, 0], sizes = [16, 16], strides = [1, 1]} : vector<18x16xf32> to vector<16x16xf32>
    %1217 = vector.broadcast %1215 : f32 to vector<16x16xf32>
    %1218 = arith.mulf %1216, %1217 : vector<16x16xf32>
    %1219 = arith.addf %1209, %1218 : vector<16x16xf32>
    %c64_293 = arith.constant 64 : index
    %1220 = memref.load %arg4[%c64_293] : memref<81xf32, #tpu.memory_space<smem>>
    %1221 = vector.extract_strided_slice %1213 {offsets = [0, 0], sizes = [16, 16], strides = [1, 1]} : vector<18x16xf32> to vector<16x16xf32>
    %1222 = vector.broadcast %1220 : f32 to vector<16x16xf32>
    %1223 = arith.mulf %1221, %1222 : vector<16x16xf32>
    %1224 = arith.addf %1219, %1223 : vector<16x16xf32>
    %c65_294 = arith.constant 65 : index
    %1225 = memref.load %arg4[%c65_294] : memref<81xf32, #tpu.memory_space<smem>>
    %1226 = vector.extract_strided_slice %1214 {offsets = [0, 0], sizes = [16, 16], strides = [1, 1]} : vector<18x16xf32> to vector<16x16xf32>
    %1227 = vector.broadcast %1225 : f32 to vector<16x16xf32>
    %1228 = arith.mulf %1226, %1227 : vector<16x16xf32>
    %1229 = arith.addf %1224, %1228 : vector<16x16xf32>
    %c66_295 = arith.constant 66 : index
    %1230 = memref.load %arg4[%c66_295] : memref<81xf32, #tpu.memory_space<smem>>
    %1231 = vector.extract_strided_slice %1212 {offsets = [1, 0], sizes = [16, 16], strides = [1, 1]} : vector<18x16xf32> to vector<16x16xf32>
    %1232 = vector.broadcast %1230 : f32 to vector<16x16xf32>
    %1233 = arith.mulf %1231, %1232 : vector<16x16xf32>
    %1234 = arith.addf %1229, %1233 : vector<16x16xf32>
    %c67_296 = arith.constant 67 : index
    %1235 = memref.load %arg4[%c67_296] : memref<81xf32, #tpu.memory_space<smem>>
    %1236 = vector.extract_strided_slice %1213 {offsets = [1, 0], sizes = [16, 16], strides = [1, 1]} : vector<18x16xf32> to vector<16x16xf32>
    %1237 = vector.broadcast %1235 : f32 to vector<16x16xf32>
    %1238 = arith.mulf %1236, %1237 : vector<16x16xf32>
    %1239 = arith.addf %1234, %1238 : vector<16x16xf32>
    %c68_297 = arith.constant 68 : index
    %1240 = memref.load %arg4[%c68_297] : memref<81xf32, #tpu.memory_space<smem>>
    %1241 = vector.extract_strided_slice %1214 {offsets = [1, 0], sizes = [16, 16], strides = [1, 1]} : vector<18x16xf32> to vector<16x16xf32>
    %1242 = vector.broadcast %1240 : f32 to vector<16x16xf32>
    %1243 = arith.mulf %1241, %1242 : vector<16x16xf32>
    %1244 = arith.addf %1239, %1243 : vector<16x16xf32>
    %c69_298 = arith.constant 69 : index
    %1245 = memref.load %arg4[%c69_298] : memref<81xf32, #tpu.memory_space<smem>>
    %1246 = vector.extract_strided_slice %1212 {offsets = [2, 0], sizes = [16, 16], strides = [1, 1]} : vector<18x16xf32> to vector<16x16xf32>
    %1247 = vector.broadcast %1245 : f32 to vector<16x16xf32>
    %1248 = arith.mulf %1246, %1247 : vector<16x16xf32>
    %1249 = arith.addf %1244, %1248 : vector<16x16xf32>
    %c70_299 = arith.constant 70 : index
    %1250 = memref.load %arg4[%c70_299] : memref<81xf32, #tpu.memory_space<smem>>
    %1251 = vector.extract_strided_slice %1213 {offsets = [2, 0], sizes = [16, 16], strides = [1, 1]} : vector<18x16xf32> to vector<16x16xf32>
    %1252 = vector.broadcast %1250 : f32 to vector<16x16xf32>
    %1253 = arith.mulf %1251, %1252 : vector<16x16xf32>
    %1254 = arith.addf %1249, %1253 : vector<16x16xf32>
    %c71_300 = arith.constant 71 : index
    %1255 = memref.load %arg4[%c71_300] : memref<81xf32, #tpu.memory_space<smem>>
    %1256 = vector.extract_strided_slice %1214 {offsets = [2, 0], sizes = [16, 16], strides = [1, 1]} : vector<18x16xf32> to vector<16x16xf32>
    %1257 = vector.broadcast %1255 : f32 to vector<16x16xf32>
    %1258 = arith.mulf %1256, %1257 : vector<16x16xf32>
    %1259 = arith.addf %1254, %1258 : vector<16x16xf32>
    %c0_301 = arith.constant 0 : index
    %c2_302 = arith.constant 2 : index
    %c0_303 = arith.constant 0 : index
    %c0_304 = arith.constant 0 : index
    %1260 = vector.load %arg7[%c0_301, %c2_302, %c0_303, %c0_304] : memref<1x3x18x18xf32, #tpu.memory_space<vmem>>, vector<1x1x18x18xf32>
    %1261 = vector.shape_cast %1260 : vector<1x1x18x18xf32> to vector<18x18xf32>
    %1262 = vector.extract_strided_slice %1261 {offsets = [0, 0], sizes = [18, 16], strides = [1, 1]} : vector<18x18xf32> to vector<18x16xf32>
    %1263 = vector.extract_strided_slice %1261 {offsets = [0, 1], sizes = [18, 16], strides = [1, 1]} : vector<18x18xf32> to vector<18x16xf32>
    %1264 = vector.extract_strided_slice %1261 {offsets = [0, 2], sizes = [18, 16], strides = [1, 1]} : vector<18x18xf32> to vector<18x16xf32>
    %c72_305 = arith.constant 72 : index
    %1265 = memref.load %arg4[%c72_305] : memref<81xf32, #tpu.memory_space<smem>>
    %1266 = vector.extract_strided_slice %1262 {offsets = [0, 0], sizes = [16, 16], strides = [1, 1]} : vector<18x16xf32> to vector<16x16xf32>
    %1267 = vector.broadcast %1265 : f32 to vector<16x16xf32>
    %1268 = arith.mulf %1266, %1267 : vector<16x16xf32>
    %1269 = arith.addf %1259, %1268 : vector<16x16xf32>
    %c73_306 = arith.constant 73 : index
    %1270 = memref.load %arg4[%c73_306] : memref<81xf32, #tpu.memory_space<smem>>
    %1271 = vector.extract_strided_slice %1263 {offsets = [0, 0], sizes = [16, 16], strides = [1, 1]} : vector<18x16xf32> to vector<16x16xf32>
    %1272 = vector.broadcast %1270 : f32 to vector<16x16xf32>
    %1273 = arith.mulf %1271, %1272 : vector<16x16xf32>
    %1274 = arith.addf %1269, %1273 : vector<16x16xf32>
    %c74_307 = arith.constant 74 : index
    %1275 = memref.load %arg4[%c74_307] : memref<81xf32, #tpu.memory_space<smem>>
    %1276 = vector.extract_strided_slice %1264 {offsets = [0, 0], sizes = [16, 16], strides = [1, 1]} : vector<18x16xf32> to vector<16x16xf32>
    %1277 = vector.broadcast %1275 : f32 to vector<16x16xf32>
    %1278 = arith.mulf %1276, %1277 : vector<16x16xf32>
    %1279 = arith.addf %1274, %1278 : vector<16x16xf32>
    %c75_308 = arith.constant 75 : index
    %1280 = memref.load %arg4[%c75_308] : memref<81xf32, #tpu.memory_space<smem>>
    %1281 = vector.extract_strided_slice %1262 {offsets = [1, 0], sizes = [16, 16], strides = [1, 1]} : vector<18x16xf32> to vector<16x16xf32>
    %1282 = vector.broadcast %1280 : f32 to vector<16x16xf32>
    %1283 = arith.mulf %1281, %1282 : vector<16x16xf32>
    %1284 = arith.addf %1279, %1283 : vector<16x16xf32>
    %c76_309 = arith.constant 76 : index
    %1285 = memref.load %arg4[%c76_309] : memref<81xf32, #tpu.memory_space<smem>>
    %1286 = vector.extract_strided_slice %1263 {offsets = [1, 0], sizes = [16, 16], strides = [1, 1]} : vector<18x16xf32> to vector<16x16xf32>
    %1287 = vector.broadcast %1285 : f32 to vector<16x16xf32>
    %1288 = arith.mulf %1286, %1287 : vector<16x16xf32>
    %1289 = arith.addf %1284, %1288 : vector<16x16xf32>
    %c77_310 = arith.constant 77 : index
    %1290 = memref.load %arg4[%c77_310] : memref<81xf32, #tpu.memory_space<smem>>
    %1291 = vector.extract_strided_slice %1264 {offsets = [1, 0], sizes = [16, 16], strides = [1, 1]} : vector<18x16xf32> to vector<16x16xf32>
    %1292 = vector.broadcast %1290 : f32 to vector<16x16xf32>
    %1293 = arith.mulf %1291, %1292 : vector<16x16xf32>
    %1294 = arith.addf %1289, %1293 : vector<16x16xf32>
    %c78_311 = arith.constant 78 : index
    %1295 = memref.load %arg4[%c78_311] : memref<81xf32, #tpu.memory_space<smem>>
    %1296 = vector.extract_strided_slice %1262 {offsets = [2, 0], sizes = [16, 16], strides = [1, 1]} : vector<18x16xf32> to vector<16x16xf32>
    %1297 = vector.broadcast %1295 : f32 to vector<16x16xf32>
    %1298 = arith.mulf %1296, %1297 : vector<16x16xf32>
    %1299 = arith.addf %1294, %1298 : vector<16x16xf32>
    %c79_312 = arith.constant 79 : index
    %1300 = memref.load %arg4[%c79_312] : memref<81xf32, #tpu.memory_space<smem>>
    %1301 = vector.extract_strided_slice %1263 {offsets = [2, 0], sizes = [16, 16], strides = [1, 1]} : vector<18x16xf32> to vector<16x16xf32>
    %1302 = vector.broadcast %1300 : f32 to vector<16x16xf32>
    %1303 = arith.mulf %1301, %1302 : vector<16x16xf32>
    %1304 = arith.addf %1299, %1303 : vector<16x16xf32>
    %c80_313 = arith.constant 80 : index
    %1305 = memref.load %arg4[%c80_313] : memref<81xf32, #tpu.memory_space<smem>>
    %1306 = vector.extract_strided_slice %1264 {offsets = [2, 0], sizes = [16, 16], strides = [1, 1]} : vector<18x16xf32> to vector<16x16xf32>
    %1307 = vector.broadcast %1305 : f32 to vector<16x16xf32>
    %1308 = arith.mulf %1306, %1307 : vector<16x16xf32>
    %1309 = arith.addf %1304, %1308 : vector<16x16xf32>
    %c2_314 = arith.constant 2 : index
    %1310 = memref.load %arg5[%c2_314] : memref<3xf32, #tpu.memory_space<smem>>
    %1311 = vector.broadcast %1310 : f32 to vector<16x16xf32>
    %1312 = arith.addf %1309, %1311 : vector<16x16xf32>
    %c0_315 = arith.constant 0 : index
    %c2_316 = arith.constant 2 : index
    %c0_317 = arith.constant 0 : index
    %c0_318 = arith.constant 0 : index
    %1313 = vector.load %arg6[%c0_315, %c2_316, %c0_317, %c0_318] : memref<1x3x16x16xf32, #tpu.memory_space<vmem>>, vector<1x1x16x16xf32>
    %1314 = vector.shape_cast %1313 : vector<1x1x16x16xf32> to vector<16x16xf32>
    %1315 = vector.shape_cast %1312 : vector<16x16xf32> to vector<1x1x16x16xf32>
    tpu.vector_store %arg6[%c0_315, %c2_316, %c0_317, %c0_318], %1315 {strides = array<i32>} : memref<1x3x16x16xf32, #tpu.memory_space<vmem>>, vector<1x1x16x16xf32>,
    return
  }
  func.func @transform_0(%arg0: i32) -> (i32, i32, i32, i32) {
    %c0_i32 = arith.constant 0 : i32
    %c0_i32_0 = arith.constant 0 : i32
    %c0_i32_1 = arith.constant 0 : i32
    %c0_i32_2 = arith.constant 0 : i32
    return %arg0, %c0_i32, %c0_i32_0, %c0_i32_1 : i32, i32, i32, i32
  }
  func.func @transform_1(%arg0: i32) -> i32 {
    %c0_i32 = arith.constant 0 : i32
    %c0_i32_0 = arith.constant 0 : i32
    return %c0_i32 : i32
  }
  func.func @transform_2(%arg0: i32) -> i32 {
    %c0_i32 = arith.constant 0 : i32
    %c0_i32_0 = arith.constant 0 : i32
    return %c0_i32 : i32
  }
  func.func @transform_3(%arg0: i32) -> i32 {
    %c0_i32 = arith.constant 0 : i32
    %c0_i32_0 = arith.constant 0 : i32
    return %c0_i32 : i32
  }
  func.func @transform_4(%arg0: i32) -> i32 {
    %c0_i32 = arith.constant 0 : i32
    %c0_i32_0 = arith.constant 0 : i32
    return %c0_i32 : i32
  }
  func.func @transform_5(%arg0: i32) -> (i32, i32, i32, i32) {
    %c0_i32 = arith.constant 0 : i32
    %c0_i32_0 = arith.constant 0 : i32
    %c0_i32_1 = arith.constant 0 : i32
    %c0_i32_2 = arith.constant 0 : i32
    return %arg0, %c0_i32, %c0_i32_0, %c0_i32_1 : i32, i32, i32, i32
  }
}

</mosaic_0001>

<llo_original>
// kernel: net_forward.1
$region0: #{net_forward.1}
  #allocation0 [shape = 'u32[]', space=smem, size = 0x4, offset = 0x4, fixed_abs, tag = 'smem constant byte address 0x4 - core index']
  #allocation1 [shape = 'u32[144,128]{1,0:T(1,128)}', space=vmem, size = 0x12000, scoped, tag = 'internal scratch']
  #allocation2 [shape = 'f32[1,3,18,18]{3,2,1,0:T(8,128)}', space=vmem, size = 0x9000, scoped, tag = 'scratch operand']
  %s0 = inlined_call_operand.vmem [shape: f32[2,3,16,16], index: 0, kind: input, shape index: {}]
  %s1 = inlined_call_operand.vmem [shape: f32[108], index: 1, kind: input, shape index: {}]
  %s2 = inlined_call_operand.vmem [shape: f32[36], index: 2, kind: input, shape index: {}]
  %s3 = inlined_call_operand.vmem [shape: f32[81], index: 3, kind: input, shape index: {}]
  %s4 = inlined_call_operand.vmem [shape: f32[3], index: 4, kind: input, shape index: {}]
  %s5 = inlined_call_operand.hbm [shape: f32[2,3,16,16], index: 5, kind: output, shape index: {}]
  %s6 = sld [smem:[#allocation0]]
  $region69: #{net_forward.1} parent=0
    _
  %s8 = ssub.s32 1, %s6
  %s9 = scalar_select 0, %s8, %s6
  $region1: #{net_forward.1} parent=0
    #allocation3 [shape = 'u8[512]{0}', space=smem, size = 0x200, scoped, tag = 'input window, operand 1, single buffered']
    #allocation4 [shape = 's32[2]{0}', space=sflag, size = 0x8, scoped, tag = 'scoped memory for net_forward.1']
    #allocation5 [shape = 's32[2]{0}', space=sflag, size = 0x8, scoped, tag = 'scoped memory for net_forward.1']
    #allocation6 [shape = 'u8[512]{0}', space=smem, size = 0x200, scoped, tag = 'input window, operand 2, single buffered']
    #allocation7 [shape = 's32[1]{0}', space=sflag, size = 0x4, scoped, tag = 'scoped memory for net_forward.1']
    #allocation8 [shape = 'u8[512]{0}', space=smem, size = 0x200, scoped, tag = 'input window, operand 3, single buffered']
    #allocation9 [shape = 'u8[512]{0}', space=smem, size = 0x200, scoped, tag = 'input window, operand 4, single buffered']
    #allocation10 [shape = 's32[1]{0}', space=sflag, size = 0x4, scoped, tag = 'scoped memory for net_forward.1']
    #allocation11 [shape = 'u8[49152]{0}', space=vmem, size = 0xc000, scoped, tag = 'output window, operand 0']
    %10 = vsyncpa [#allocation5], 0
    %11 = vsyncpa [#allocation7], 0
    %12 = vsyncpa [#allocation10], 0
    %13 = vsyncpa [#allocation4], 0
    %s14 = scalar_lea.sflag [#allocation4], 1
    %15 = vsyncpa %s14, 0
    loop: start=0, step=1, limit=4
    $region2: #{net_forward.1} parent=1 // loop_pre_header
      _
    $region3: #{net_forward.1} parent=1 // loop_header
      %s17 = sphi 0, %s21
      %p18 = scmp.ge.s32.totalorder %s17, 4
      %s27 = sphi 0, %s29
      %s30 = sphi 0, %s27
      %s31 = sphi 0, %s30
      %s47 = sphi 0, %s31
      %s51 = sphi 0, %s51
      %s53 = sphi 0, %s51
      %s54 = sphi 0, %s53
      %s68 = sphi 0, %s54
      %s72 = sphi 0, %s72
      %s74 = sphi 0, %s72
      %s75 = sphi 0, %s74
      %s89 = sphi 0, %s75
      %s93 = sphi 0, %s93
      %s95 = sphi 0, %s93
      %s96 = sphi 0, %s95
      %s110 = sphi 0, %s96
      %s114 = sphi 0, %s114
      %s116 = sphi 0, %s114
      %s117 = sphi 0, %s116
      %s131 = sphi 0, %s117
      %s137 = sphi 0, %s139
      %s140 = sphi 0, %s137
      %s141 = sphi 0, %s140
      %s157 = sphi 0, %s141
    $region4: #{net_forward.1} parent=1 // loop_header_branch
      %20 = sbr.rel (%p18) target = $region8
    $region5: #{net_forward.1} parent=1 // loop_body
      %s22 = ssub.s32 %s17, 1
      %s23 = ssub.s32 %s17, 2
      %s24 = sadd.s32 %s17, 1
      %s25 = ssub.s32 %s17, %s24
      %p26 = scmp.eq.s32.totalorder %s25, 0
      %s28 = sadd.s32 %s27, 1
      %s29 = scalar_select %p26, %s27, %s28
      %p32 = pneg %p26
      %p33 = scmp.eq.s32.totalorder %s17, 1
      %p34 = por %p32, %p33
      %p35 = scmp.ne.s32.totalorder %s27, %s30
      %p36 = scmp.eq.s32.totalorder %s17, 0
      %p37 = por %p35, %p36
      %p38 = scmp.ne.s32.totalorder %s27, %s30
      %p39 = scmp.eq.s32.totalorder %s22, 1
      %p40 = por %p38, %p39
      %p41 = scmp.ne.s32.totalorder %s30, %s31
      %p42 = scmp.eq.s32.totalorder %s22, 0
      %p43 = por %p41, %p42
      %p44 = scmp.ne.s32.totalorder %s30, %s31
      %p45 = scmp.eq.s32.totalorder %s23, 1
      %p46 = por %p44, %p45
      %p48 = scmp.ne.s32.totalorder %s31, %s47
      %p49 = scmp.eq.s32.totalorder %s23, 0
      %p50 = por %p48, %p49
      %s52 = sadd.s32 %s51, 1
      %p55 = scmp.eq.s32.totalorder %s17, 1
      %p56 = scmp.ne.s32.totalorder %s51, %s53
      %p57 = scmp.eq.s32.totalorder %s17, 0
      %p58 = por %p56, %p57
      %p59 = scmp.ne.s32.totalorder %s51, %s53
      %p60 = scmp.eq.s32.totalorder %s22, 1
      %p61 = por %p59, %p60
      %p62 = scmp.ne.s32.totalorder %s53, %s54
      %p63 = scmp.eq.s32.totalorder %s22, 0
      %p64 = por %p62, %p63
      %p65 = scmp.ne.s32.totalorder %s53, %s54
      %p66 = scmp.eq.s32.totalorder %s23, 1
      %p67 = por %p65, %p66
      %p69 = scmp.ne.s32.totalorder %s54, %s68
      %p70 = scmp.eq.s32.totalorder %s23, 0
      %p71 = por %p69, %p70
      %s73 = sadd.s32 %s72, 1
      %p76 = scmp.eq.s32.totalorder %s17, 1
      %p77 = scmp.ne.s32.totalorder %s72, %s74
      %p78 = scmp.eq.s32.totalorder %s17, 0
      %p79 = por %p77, %p78
      %p80 = scmp.ne.s32.totalorder %s72, %s74
      %p81 = scmp.eq.s32.totalorder %s22, 1
      %p82 = por %p80, %p81
      %p83 = scmp.ne.s32.totalorder %s74, %s75
      %p84 = scmp.eq.s32.totalorder %s22, 0
      %p85 = por %p83, %p84
      %p86 = scmp.ne.s32.totalorder %s74, %s75
      %p87 = scmp.eq.s32.totalorder %s23, 1
      %p88 = por %p86, %p87
      %p90 = scmp.ne.s32.totalorder %s75, %s89
      %p91 = scmp.eq.s32.totalorder %s23, 0
      %p92 = por %p90, %p91
      %s94 = sadd.s32 %s93, 1
      %p97 = scmp.eq.s32.totalorder %s17, 1
      %p98 = scmp.ne.s32.totalorder %s93, %s95
      %p99 = scmp.eq.s32.totalorder %s17, 0
      %p100 = por %p98, %p99
      %p101 = scmp.ne.s32.totalorder %s93, %s95
      %p102 = scmp.eq.s32.totalorder %s22, 1
      %p103 = por %p101, %p102
      %p104 = scmp.ne.s32.totalorder %s95, %s96
      %p105 = scmp.eq.s32.totalorder %s22, 0
      %p106 = por %p104, %p105
      %p107 = scmp.ne.s32.totalorder %s95, %s96
      %p108 = scmp.eq.s32.totalorder %s23, 1
      %p109 = por %p107, %p108
      %p111 = scmp.ne.s32.totalorder %s96, %s110
      %p112 = scmp.eq.s32.totalorder %s23, 0
      %p113 = por %p111, %p112
      %s115 = sadd.s32 %s114, 1
      %p118 = scmp.eq.s32.totalorder %s17, 1
      %p119 = scmp.ne.s32.totalorder %s114, %s116
      %p120 = scmp.eq.s32.totalorder %s17, 0
      %p121 = por %p119, %p120
      %p122 = scmp.ne.s32.totalorder %s114, %s116
      %p123 = scmp.eq.s32.totalorder %s22, 1
      %p124 = por %p122, %p123
      %p125 = scmp.ne.s32.totalorder %s116, %s117
      %p126 = scmp.eq.s32.totalorder %s22, 0
      %p127 = por %p125, %p126
      %p128 = scmp.ne.s32.totalorder %s116, %s117
      %p129 = scmp.eq.s32.totalorder %s23, 1
      %p130 = por %p128, %p129
      %p132 = scmp.ne.s32.totalorder %s117, %s131
      %p133 = scmp.eq.s32.totalorder %s23, 0
      %p134 = por %p132, %p133
      %s135 = ssub.s32 %s17, %s24
      %p136 = scmp.eq.s32.totalorder %s135, 0
      %s138 = sadd.s32 %s137, 1
      %s139 = scalar_select %p136, %s137, %s138
      %p142 = pneg %p136
      %p143 = scmp.eq.s32.totalorder %s17, 1
      %p144 = por %p142, %p143
      %p145 = scmp.ne.s32.totalorder %s137, %s140
      %p146 = scmp.eq.s32.totalorder %s17, 0
      %p147 = por %p145, %p146
      %p148 = scmp.ne.s32.totalorder %s137, %s140
      %p149 = scmp.eq.s32.totalorder %s22, 1
      %p150 = por %p148, %p149
      %p151 = scmp.ne.s32.totalorder %s140, %s141
      %p152 = scmp.eq.s32.totalorder %s22, 0
      %p153 = por %p151, %p152
      %p154 = scmp.ne.s32.totalorder %s140, %s141
      %p155 = scmp.eq.s32.totalorder %s23, 1
      %p156 = por %p154, %p155
      %p158 = scmp.ne.s32.totalorder %s141, %s157
      %p159 = scmp.eq.s32.totalorder %s23, 0
      %p160 = por %p158, %p159
      %p161 = scmp.le.s32.totalorder 1, %s17
      %p162 = scmp.lt.s32.totalorder %s17, 3
      %p163 = pnand %p161, %p162
      %p164 = pneg %p163
      // Predicated region
      $region9: #{net_forward.1} parent=5 // pred_check
        _
      $region10: #{net_forward.1} parent=5 // pred_check_branch
        %166 = sbr.rel (%p163) target = $region12
      $region11: #{net_forward.1} parent=5 // pred_region
        %s167 = ssub.s32 %s17, 1
        // Predicated region
        $region13: #{net_forward.1} parent=11 // pred_check
          %p168 = pneg %p64
        $region14: #{net_forward.1} parent=11 // pred_check_branch
          %170 = sbr.rel (%p168) target = $region16
        $region15: #{net_forward.1} parent=11 // pred_region
          %s172 = ssub.s32 16, 16
          %173 = vsyncadd [#allocation5], %s172
          %s175 = sshll.u32 %s1, 4
          %s176 = int_to_ptr.vmem [resolvable:$true] %s175
          %178 = dma.vmem_to_smem %s176, 16, [#allocation3], [#allocation5]
        $region16: #{net_forward.1} parent=11 // pred_fallthru
          _
        // Predicated region
        $region17: #{net_forward.1} parent=11 // pred_check
          %p179 = pneg %p85
        $region18: #{net_forward.1} parent=11 // pred_check_branch
          %181 = sbr.rel (%p179) target = $region20
        $region19: #{net_forward.1} parent=11 // pred_region
          %s183 = ssub.s32 16, 16
          %184 = vsyncadd [#allocation7], %s183
          %s186 = sshll.u32 %s2, 4
          %s187 = int_to_ptr.vmem [resolvable:$true] %s186
          %189 = dma.vmem_to_smem %s187, 16, [#allocation6], [#allocation7]
        $region20: #{net_forward.1} parent=11 // pred_fallthru
          _
        // Predicated region
        $region21: #{net_forward.1} parent=11 // pred_check
          %p190 = pneg %p106
        $region22: #{net_forward.1} parent=11 // pred_check_branch
          %192 = sbr.rel (%p190) target = $region24
        $region23: #{net_forward.1} parent=11 // pred_region
          %s194 = ssub.s32 16, 16
          %195 = vsyncadd [#allocation7], %s194
          %s197 = sshll.u32 %s3, 4
          %s198 = int_to_ptr.vmem [resolvable:$true] %s197
          %200 = dma.vmem_to_smem %s198, 16, [#allocation8], [#allocation7]
        $region24: #{net_forward.1} parent=11 // pred_fallthru
          _
        // Predicated region
        $region25: #{net_forward.1} parent=11 // pred_check
          %p201 = pneg %p127
        $region26: #{net_forward.1} parent=11 // pred_check_branch
          %203 = sbr.rel (%p201) target = $region28
        $region27: #{net_forward.1} parent=11 // pred_region
          %s205 = ssub.s32 16, 16
          %206 = vsyncadd [#allocation10], %s205
          %s208 = sshll.u32 %s4, 4
          %s209 = int_to_ptr.vmem [resolvable:$true] %s208
          %211 = dma.vmem_to_smem %s209, 16, [#allocation9], [#allocation10]
        $region28: #{net_forward.1} parent=11 // pred_fallthru
          _
      $region12: #{net_forward.1} parent=5 // pred_fallthru
        _
      %p212 = scmp.lt.s32.totalorder %s17, 2
      // Predicated region
      $region29: #{net_forward.1} parent=5 // pred_check
        %p213 = pneg %p212
      $region30: #{net_forward.1} parent=5 // pred_check_branch
        %215 = sbr.rel (%p213) target = $region32
      $region31: #{net_forward.1} parent=5 // pred_region
        // Predicated region
        $region33: #{net_forward.1} parent=31 // pred_check
          %p216 = pneg %p37
        $region34: #{net_forward.1} parent=31 // pred_check_branch
          %218 = sbr.rel (%p216) target = $region36
        $region35: #{net_forward.1} parent=31 // pred_region
          %p219 = scmp.lt.s32.totalorder %s17, 1
          %s220 = scalar_select %p219, %s17, 1
          %s221 = smul.addr %s220, 6
          %s222 = smul.addr %s221, 8
          %s223 = scalar_lea.vmem %s0, %s222
        $region36: #{net_forward.1} parent=31 // pred_fallthru
          _
      $region32: #{net_forward.1} parent=5 // pred_fallthru
        _
      %p224 = scmp.le.s32.totalorder 1, %s17
      %p225 = scmp.lt.s32.totalorder %s17, 3
      %p226 = pnand %p224, %p225
      %p227 = pneg %p226
      // Predicated region
      $region37: #{net_forward.1} parent=5 // pred_check
        _
      $region38: #{net_forward.1} parent=5 // pred_check_branch
        %229 = sbr.rel (%p226) target = $region40
      $region39: #{net_forward.1} parent=5 // pred_region
        %s230 = ssub.s32 %s17, 1
        // Predicated region
        $region41: #{net_forward.1} parent=39 // pred_check
          %p231 = pneg %p64
        $region42: #{net_forward.1} parent=39 // pred_check_branch
          %233 = sbr.rel (%p231) target = $region44
        $region43: #{net_forward.1} parent=39 // pred_region
          %234 = dma.done [#allocation5], 16
        $region44: #{net_forward.1} parent=39 // pred_fallthru
          _
        // Predicated region
        $region45: #{net_forward.1} parent=39 // pred_check
          %p235 = pneg %p85
        $region46: #{net_forward.1} parent=39 // pred_check_branch
          %237 = sbr.rel (%p235) target = $region48
        $region47: #{net_forward.1} parent=39 // pred_region
          %238 = dma.done [#allocation7], 16
        $region48: #{net_forward.1} parent=39 // pred_fallthru
          _
        // Predicated region
        $region49: #{net_forward.1} parent=39 // pred_check
          %p239 = pneg %p106
        $region50: #{net_forward.1} parent=39 // pred_check_branch
          %241 = sbr.rel (%p239) target = $region52
        $region51: #{net_forward.1} parent=39 // pred_region
          %242 = dma.done [#allocation7], 16
        $region52: #{net_forward.1} parent=39 // pred_fallthru
          _
        // Predicated region
        $region53: #{net_forward.1} parent=39 // pred_check
          %p243 = pneg %p127
        $region54: #{net_forward.1} parent=39 // pred_check_branch
          %245 = sbr.rel (%p243) target = $region56
        $region55: #{net_forward.1} parent=39 // pred_region
          %246 = dma.done [#allocation10], 16
        $region56: #{net_forward.1} parent=39 // pred_fallthru
          _
        %247 = sfence
        %p248 = scmp.lt.s32.totalorder %s22, 1
        %s249 = scalar_select %p248, %s22, 1
        %s250 = smul.addr %s249, 6
        %s251 = smul.addr %s250, 8
        %s252 = scalar_lea.vmem %s0, %s251
        %p253 = pneg %p43
        %p254 = pneg %p40
        %p255 = pneg %p64
        %p256 = pneg %p61
        %p257 = pneg %p85
        %p258 = pneg %p82
        %p259 = pneg %p106
        %p260 = pneg %p103
        %p261 = pneg %p127
        %p262 = pneg %p124
        %p263 = pneg %p153
        %p264 = pneg %p150
        %s265 = sand.u32 %s140, 1
        %s266 = scalar_lea.sflag [#allocation4], %s265
        %s267 = sand.u32 %s140, 1
        %s268 = smul.addr %s267, 48
        %s269 = scalar_lea.vmem [#allocation11], %s268
        %p270 = scmp.lt.s32.totalorder %s22, 1
        %s271 = scalar_select %p270, %s22, 1
        %s272 = smul.addr %s271, 6
        %s273 = smul.addr %s272, 8
        %s274 = scalar_lea.vmem %s0, %s273
        %vm275 = vcmask 146432
        %276 = vst.msk [vmem:[#allocation2] sm:$0xff] %vm275, 0.0
        %277 = vst.msk [vmem:[#allocation2 + $0x8] sm:$0xff] %vm275, 0.0
        %vm278 = vcmask 140288
        %279 = vst.msk [vmem:[#allocation2 + $0x10] sm:$0x3] %vm278, 0.0
        %280 = vst.msk [vmem:[#allocation2 + $0x18] sm:$0xff] %vm275, 0.0
        %281 = vst.msk [vmem:[#allocation2 + $0x20] sm:$0xff] %vm275, 0.0
        %282 = vst.msk [vmem:[#allocation2 + $0x28] sm:$0x3] %vm278, 0.0
        %283 = vst.msk [vmem:[#allocation2 + $0x30] sm:$0xff] %vm275, 0.0
        %284 = vst.msk [vmem:[#allocation2 + $0x38] sm:$0xff] %vm275, 0.0
        %285 = vst.msk [vmem:[#allocation2 + $0x40] sm:$0x3] %vm278, 0.0
        %v286 = vld [vmem:[%s274] sm:$0xff]
        %v287 = vld [vmem:[%s274 + $0x8] sm:$0xff]
        %290 = vrot.lane.b32.xlu0 %v286, 1
        %v291 = vpop.permute.xlu0 %290
        %292 = vrot.lane.b32.xlu0 %v287, 1
        %v293 = vpop.permute.xlu0 %292
        %vm296 = vcmask 138248
        %297 = vst.msk [vmem:[#allocation2 + $0x1] sm:$0xff] %vm296, %v291
        %298 = vst.msk [vmem:[#allocation2 + $0x9] sm:$0xff] %vm296, %v293
        %s299 = scalar_lea.vmem %s274, 16
        %v300 = vld [vmem:[%s299] sm:$0xff]
        %v301 = vld [vmem:[%s299 + $0x8] sm:$0xff]
        %304 = vrot.lane.b32.xlu0 %v300, 1
        %v305 = vpop.permute.xlu0 %304
        %306 = vrot.lane.b32.xlu0 %v301, 1
        %v307 = vpop.permute.xlu0 %306
        %s310 = scalar_lea.vmem [#allocation2], 24
        %311 = vst.msk [vmem:[%s310 + $0x1] sm:$0xff] %vm296, %v305
        %312 = vst.msk [vmem:[%s310 + $0x9] sm:$0xff] %vm296, %v307
        %s313 = scalar_lea.vmem %s274, 32
        %v314 = vld [vmem:[%s313] sm:$0xff]
        %v315 = vld [vmem:[%s313 + $0x8] sm:$0xff]
        %318 = vrot.lane.b32.xlu0 %v314, 1
        %v319 = vpop.permute.xlu0 %318
        %320 = vrot.lane.b32.xlu0 %v315, 1
        %v321 = vpop.permute.xlu0 %320
        %s324 = scalar_lea.vmem [#allocation2], 48
        %325 = vst.msk [vmem:[%s324 + $0x1] sm:$0xff] %vm296, %v319
        %326 = vst.msk [vmem:[%s324 + $0x9] sm:$0xff] %vm296, %v321
        %v327 = vld [vmem:[#allocation2] sm:$0xff]
        %v328 = vld [vmem:[#allocation2 + $0x8] sm:$0xff]
        %v329 = vld [vmem:[#allocation2 + $0x10] sm:$0x3]
        %s330 = sld [smem:[#allocation3]]
        %v331 = vstv %s330
        %v332 = vmul.f32 %v327, %v331
        %v333 = vmul.f32 %v328, %v331
        %v334 = vadd.f32 %v332, 0.0
        %v335 = vadd.f32 %v333, 0.0
        %s336 = sld [smem:[#allocation3 + $0x1]]
        %v337 = vstv %s336
        %v338 = vmul.f32 %v327, %v337
        %v339 = vmul.f32 %v328, %v337
        %342 = vrot.lane.b32.xlu0 %v338, 127
        %v343 = vpop.permute.xlu0 %342
        %344 = vrot.lane.b32.xlu0 %v339, 127
        %v345 = vpop.permute.xlu0 %344
        %v348 = vadd.f32 %v334, %v343
        %v349 = vadd.f32 %v335, %v345
        %s350 = sld [smem:[#allocation3 + $0x2]]
        %v351 = vstv %s350
        %v352 = vmul.f32 %v327, %v351
        %v353 = vmul.f32 %v328, %v351
        %356 = vrot.lane.b32.xlu0 %v352, 126
        %v357 = vpop.permute.xlu0 %356
        %358 = vrot.lane.b32.xlu0 %v353, 126
        %v359 = vpop.permute.xlu0 %358
        %v362 = vadd.f32 %v348, %v357
        %v363 = vadd.f32 %v349, %v359
        %s364 = sld [smem:[#allocation3 + $0x3]]
        %v365 = vstv %s364
        %v366 = vmul.f32 %v327, %v365
        %v367 = vmul.f32 %v328, %v365
        %v368 = vmul.f32 %v329, %v365
        %vm372 = vcmask 1046528
        %v373 = vrot.slane %v366, 1
        %v374 = vrot.slane %v367, 1
        %v375 = vsel %vm372, %v373, %v374
        %v376 = vrot.slane %v368, 1
        %v377 = vsel %vm372, %v374, %v376
        %v380 = vadd.f32 %v362, %v375
        %v381 = vadd.f32 %v363, %v377
        %s382 = sld [smem:[#allocation3 + $0x4]]
        %v383 = vstv %s382
        %v384 = vmul.f32 %v327, %v383
        %v385 = vmul.f32 %v328, %v383
        %v386 = vmul.f32 %v329, %v383
        %v390 = vrot.slane %v384, 1
        %v391 = vrot.slane %v385, 1
        %v392 = vsel %vm372, %v390, %v391
        %v393 = vrot.slane %v386, 1
        %v394 = vsel %vm372, %v391, %v393
        %395 = vrot.lane.b32.xlu0 %v392, 127
        %v396 = vpop.permute.xlu0 %395
        %397 = vrot.lane.b32.xlu0 %v394, 127
        %v398 = vpop.permute.xlu0 %397
        %v401 = vadd.f32 %v380, %v396
        %v402 = vadd.f32 %v381, %v398
        %s403 = sld [smem:[#allocation3 + $0x5]]
        %v404 = vstv %s403
        %v405 = vmul.f32 %v327, %v404
        %v406 = vmul.f32 %v328, %v404
        %v407 = vmul.f32 %v329, %v404
        %v411 = vrot.slane %v405, 1
        %v412 = vrot.slane %v406, 1
        %v413 = vsel %vm372, %v411, %v412
        %v414 = vrot.slane %v407, 1
        %v415 = vsel %vm372, %v412, %v414
        %416 = vrot.lane.b32.xlu0 %v413, 126
        %v417 = vpop.permute.xlu0 %416
        %418 = vrot.lane.b32.xlu0 %v415, 126
        %v419 = vpop.permute.xlu0 %418
        %v422 = vadd.f32 %v401, %v417
        %v423 = vadd.f32 %v402, %v419
        %s424 = sld [smem:[#allocation3 + $0x6]]
        %v425 = vstv %s424
        %v426 = vmul.f32 %v327, %v425
        %v427 = vmul.f32 %v328, %v425
        %v428 = vmul.f32 %v329, %v425
        %vm432 = vcmask 1045504
        %v433 = vrot.slane %v426, 2
        %v434 = vrot.slane %v427, 2
        %v435 = vsel %vm432, %v433, %v434
        %v436 = vrot.slane %v428, 2
        %v437 = vsel %vm432, %v434, %v436
        %v440 = vadd.f32 %v422, %v435
        %v441 = vadd.f32 %v423, %v437
        %s442 = sld [smem:[#allocation3 + $0x7]]
        %v443 = vstv %s442
        %v444 = vmul.f32 %v327, %v443
        %v445 = vmul.f32 %v328, %v443
        %v446 = vmul.f32 %v329, %v443
        %v450 = vrot.slane %v444, 2
        %v451 = vrot.slane %v445, 2
        %v452 = vsel %vm432, %v450, %v451
        %v453 = vrot.slane %v446, 2
        %v454 = vsel %vm432, %v451, %v453
        %455 = vrot.lane.b32.xlu0 %v452, 127
        %v456 = vpop.permute.xlu0 %455
        %457 = vrot.lane.b32.xlu0 %v454, 127
        %v458 = vpop.permute.xlu0 %457
        %v461 = vadd.f32 %v440, %v456
        %v462 = vadd.f32 %v441, %v458
        %s463 = sld [smem:[#allocation3 + $0x8]]
        %v464 = vstv %s463
        %v465 = vmul.f32 %v327, %v464
        %v466 = vmul.f32 %v328, %v464
        %v467 = vmul.f32 %v329, %v464
        %v471 = vrot.slane %v465, 2
        %v472 = vrot.slane %v466, 2
        %v473 = vsel %vm432, %v471, %v472
        %v474 = vrot.slane %v467, 2
        %v475 = vsel %vm432, %v472, %v474
        %476 = vrot.lane.b32.xlu0 %v473, 126
        %v477 = vpop.permute.xlu0 %476
        %478 = vrot.lane.b32.xlu0 %v475, 126
        %v479 = vpop.permute.xlu0 %478
        %v482 = vadd.f32 %v461, %v477
        %v483 = vadd.f32 %v462, %v479
        %v484 = vmax.f32 %v482, 0.0
        %v485 = vmax.f32 %v483, 0.0
        %v486 = vld [vmem:[%s310] sm:$0xff]
        %v487 = vld [vmem:[%s310 + $0x8] sm:$0xff]
        %v488 = vld [vmem:[%s310 + $0x10] sm:$0x3]
        %s489 = sld [smem:[#allocation3 + $0x9]]
        %v490 = vstv %s489
        %v491 = vmul.f32 %v486, %v490
        %v492 = vmul.f32 %v487, %v490
        %v493 = vadd.f32 %v491, 0.0
        %v494 = vadd.f32 %v492, 0.0
        %s495 = sld [smem:[#allocation3 + $0xa]]
        %v496 = vstv %s495
        %v497 = vmul.f32 %v486, %v496
        %v498 = vmul.f32 %v487, %v496
        %501 = vrot.lane.b32.xlu0 %v497, 127
        %v502 = vpop.permute.xlu0 %501
        %503 = vrot.lane.b32.xlu0 %v498, 127
        %v504 = vpop.permute.xlu0 %503
        %v507 = vadd.f32 %v493, %v502
        %v508 = vadd.f32 %v494, %v504
        %s509 = sld [smem:[#allocation3 + $0xb]]
        %v510 = vstv %s509
        %v511 = vmul.f32 %v486, %v510
        %v512 = vmul.f32 %v487, %v510
        %515 = vrot.lane.b32.xlu0 %v511, 126
        %v516 = vpop.permute.xlu0 %515
        %517 = vrot.lane.b32.xlu0 %v512, 126
        %v518 = vpop.permute.xlu0 %517
        %v521 = vadd.f32 %v507, %v516
        %v522 = vadd.f32 %v508, %v518
        %s523 = sld [smem:[#allocation3 + $0xc]]
        %v524 = vstv %s523
        %v525 = vmul.f32 %v486, %v524
        %v526 = vmul.f32 %v487, %v524
        %v527 = vmul.f32 %v488, %v524
        %v531 = vrot.slane %v525, 1
        %v532 = vrot.slane %v526, 1
        %v533 = vsel %vm372, %v531, %v532
        %v534 = vrot.slane %v527, 1
        %v535 = vsel %vm372, %v532, %v534
        %v538 = vadd.f32 %v521, %v533
        %v539 = vadd.f32 %v522, %v535
        %s540 = sld [smem:[#allocation3 + $0xd]]
        %v541 = vstv %s540
        %v542 = vmul.f32 %v486, %v541
        %v543 = vmul.f32 %v487, %v541
        %v544 = vmul.f32 %v488, %v541
        %v548 = vrot.slane %v542, 1
        %v549 = vrot.slane %v543, 1
        %v550 = vsel %vm372, %v548, %v549
        %v551 = vrot.slane %v544, 1
        %v552 = vsel %vm372, %v549, %v551
        %553 = vrot.lane.b32.xlu0 %v550, 127
        %v554 = vpop.permute.xlu0 %553
        %555 = vrot.lane.b32.xlu0 %v552, 127
        %v556 = vpop.permute.xlu0 %555
        %v559 = vadd.f32 %v538, %v554
        %v560 = vadd.f32 %v539, %v556
        %s561 = sld [smem:[#allocation3 + $0xe]]
        %v562 = vstv %s561
        %v563 = vmul.f32 %v486, %v562
        %v564 = vmul.f32 %v487, %v562
        %v565 = vmul.f32 %v488, %v562
        %v569 = vrot.slane %v563, 1
        %v570 = vrot.slane %v564, 1
        %v571 = vsel %vm372, %v569, %v570
        %v572 = vrot.slane %v565, 1
        %v573 = vsel %vm372, %v570, %v572
        %574 = vrot.lane.b32.xlu0 %v571, 126
        %v575 = vpop.permute.xlu0 %574
        %576 = vrot.lane.b32.xlu0 %v573, 126
        %v577 = vpop.permute.xlu0 %576
        %v580 = vadd.f32 %v559, %v575
        %v581 = vadd.f32 %v560, %v577
        %s582 = sld [smem:[#allocation3 + $0xf]]
        %v583 = vstv %s582
        %v584 = vmul.f32 %v486, %v583
        %v585 = vmul.f32 %v487, %v583
        %v586 = vmul.f32 %v488, %v583
        %v590 = vrot.slane %v584, 2
        %v591 = vrot.slane %v585, 2
        %v592 = vsel %vm432, %v590, %v591
        %v593 = vrot.slane %v586, 2
        %v594 = vsel %vm432, %v591, %v593
        %v597 = vadd.f32 %v580, %v592
        %v598 = vadd.f32 %v581, %v594
        %s599 = sld [smem:[#allocation3 + $0x10]]
        %v600 = vstv %s599
        %v601 = vmul.f32 %v486, %v600
        %v602 = vmul.f32 %v487, %v600
        %v603 = vmul.f32 %v488, %v600
        %v607 = vrot.slane %v601, 2
        %v608 = vrot.slane %v602, 2
        %v609 = vsel %vm432, %v607, %v608
        %v610 = vrot.slane %v603, 2
        %v611 = vsel %vm432, %v608, %v610
        %612 = vrot.lane.b32.xlu0 %v609, 127
        %v613 = vpop.permute.xlu0 %612
        %614 = vrot.lane.b32.xlu0 %v611, 127
        %v615 = vpop.permute.xlu0 %614
        %v618 = vadd.f32 %v597, %v613
        %v619 = vadd.f32 %v598, %v615
        %s620 = sld [smem:[#allocation3 + $0x11]]
        %v621 = vstv %s620
        %v622 = vmul.f32 %v486, %v621
        %v623 = vmul.f32 %v487, %v621
        %v624 = vmul.f32 %v488, %v621
        %v628 = vrot.slane %v622, 2
        %v629 = vrot.slane %v623, 2
        %v630 = vsel %vm432, %v628, %v629
        %v631 = vrot.slane %v624, 2
        %v632 = vsel %vm432, %v629, %v631
        %633 = vrot.lane.b32.xlu0 %v630, 126
        %v634 = vpop.permute.xlu0 %633
        %635 = vrot.lane.b32.xlu0 %v632, 126
        %v636 = vpop.permute.xlu0 %635
        %v639 = vadd.f32 %v618, %v634
        %v640 = vadd.f32 %v619, %v636
        %v641 = vmax.f32 %v639, 0.0
        %v642 = vmax.f32 %v640, 0.0
        %v643 = vld [vmem:[%s324] sm:$0xff]
        %v644 = vld [vmem:[%s324 + $0x8] sm:$0xff]
        %v645 = vld [vmem:[%s324 + $0x10] sm:$0x3]
        %s646 = sld [smem:[#allocation3 + $0x12]]
        %v647 = vstv %s646
        %v648 = vmul.f32 %v643, %v647
        %v649 = vmul.f32 %v644, %v647
        %v650 = vadd.f32 %v648, 0.0
        %v651 = vadd.f32 %v649, 0.0
        %s652 = sld [smem:[#allocation3 + $0x13]]
        %v653 = vstv %s652
        %v654 = vmul.f32 %v643, %v653
        %v655 = vmul.f32 %v644, %v653
        %658 = vrot.lane.b32.xlu0 %v654, 127
        %v659 = vpop.permute.xlu0 %658
        %660 = vrot.lane.b32.xlu0 %v655, 127
        %v661 = vpop.permute.xlu0 %660
        %v664 = vadd.f32 %v650, %v659
        %v665 = vadd.f32 %v651, %v661
        %s666 = sld [smem:[#allocation3 + $0x14]]
        %v667 = vstv %s666
        %v668 = vmul.f32 %v643, %v667
        %v669 = vmul.f32 %v644, %v667
        %672 = vrot.lane.b32.xlu0 %v668, 126
        %v673 = vpop.permute.xlu0 %672
        %674 = vrot.lane.b32.xlu0 %v669, 126
        %v675 = vpop.permute.xlu0 %674
        %v678 = vadd.f32 %v664, %v673
        %v679 = vadd.f32 %v665, %v675
        %s680 = sld [smem:[#allocation3 + $0x15]]
        %v681 = vstv %s680
        %v682 = vmul.f32 %v643, %v681
        %v683 = vmul.f32 %v644, %v681
        %v684 = vmul.f32 %v645, %v681
        %v688 = vrot.slane %v682, 1
        %v689 = vrot.slane %v683, 1
        %v690 = vsel %vm372, %v688, %v689
        %v691 = vrot.slane %v684, 1
        %v692 = vsel %vm372, %v689, %v691
        %v695 = vadd.f32 %v678, %v690
        %v696 = vadd.f32 %v679, %v692
        %s697 = sld [smem:[#allocation3 + $0x16]]
        %v698 = vstv %s697
        %v699 = vmul.f32 %v643, %v698
        %v700 = vmul.f32 %v644, %v698
        %v701 = vmul.f32 %v645, %v698
        %v705 = vrot.slane %v699, 1
        %v706 = vrot.slane %v700, 1
        %v707 = vsel %vm372, %v705, %v706
        %v708 = vrot.slane %v701, 1
        %v709 = vsel %vm372, %v706, %v708
        %710 = vrot.lane.b32.xlu0 %v707, 127
        %v711 = vpop.permute.xlu0 %710
        %712 = vrot.lane.b32.xlu0 %v709, 127
        %v713 = vpop.permute.xlu0 %712
        %v716 = vadd.f32 %v695, %v711
        %v717 = vadd.f32 %v696, %v713
        %s718 = sld [smem:[#allocation3 + $0x17]]
        %v719 = vstv %s718
        %v720 = vmul.f32 %v643, %v719
        %v721 = vmul.f32 %v644, %v719
        %v722 = vmul.f32 %v645, %v719
        %v726 = vrot.slane %v720, 1
        %v727 = vrot.slane %v721, 1
        %v728 = vsel %vm372, %v726, %v727
        %v729 = vrot.slane %v722, 1
        %v730 = vsel %vm372, %v727, %v729
        %731 = vrot.lane.b32.xlu0 %v728, 126
        %v732 = vpop.permute.xlu0 %731
        %733 = vrot.lane.b32.xlu0 %v730, 126
        %v734 = vpop.permute.xlu0 %733
        %v737 = vadd.f32 %v716, %v732
        %v738 = vadd.f32 %v717, %v734
        %s739 = sld [smem:[#allocation3 + $0x18]]
        %v740 = vstv %s739
        %v741 = vmul.f32 %v643, %v740
        %v742 = vmul.f32 %v644, %v740
        %v743 = vmul.f32 %v645, %v740
        %v747 = vrot.slane %v741, 2
        %v748 = vrot.slane %v742, 2
        %v749 = vsel %vm432, %v747, %v748
        %v750 = vrot.slane %v743, 2
        %v751 = vsel %vm432, %v748, %v750
        %v754 = vadd.f32 %v737, %v749
        %v755 = vadd.f32 %v738, %v751
        %s756 = sld [smem:[#allocation3 + $0x19]]
        %v757 = vstv %s756
        %v758 = vmul.f32 %v643, %v757
        %v759 = vmul.f32 %v644, %v757
        %v760 = vmul.f32 %v645, %v757
        %v764 = vrot.slane %v758, 2
        %v765 = vrot.slane %v759, 2
        %v766 = vsel %vm432, %v764, %v765
        %v767 = vrot.slane %v760, 2
        %v768 = vsel %vm432, %v765, %v767
        %769 = vrot.lane.b32.xlu0 %v766, 127
        %v770 = vpop.permute.xlu0 %769
        %771 = vrot.lane.b32.xlu0 %v768, 127
        %v772 = vpop.permute.xlu0 %771
        %v775 = vadd.f32 %v754, %v770
        %v776 = vadd.f32 %v755, %v772
        %s777 = sld [smem:[#allocation3 + $0x1a]]
        %v778 = vstv %s777
        %v779 = vmul.f32 %v643, %v778
        %v780 = vmul.f32 %v644, %v778
        %v781 = vmul.f32 %v645, %v778
        %v785 = vrot.slane %v779, 2
        %v786 = vrot.slane %v780, 2
        %v787 = vsel %vm432, %v785, %v786
        %v788 = vrot.slane %v781, 2
        %v789 = vsel %vm432, %v786, %v788
        %790 = vrot.lane.b32.xlu0 %v787, 126
        %v791 = vpop.permute.xlu0 %790
        %792 = vrot.lane.b32.xlu0 %v789, 126
        %v793 = vpop.permute.xlu0 %792
        %v796 = vadd.f32 %v775, %v791
        %v797 = vadd.f32 %v776, %v793
        %v798 = vmax.f32 %v796, 0.0
        %v799 = vmax.f32 %v797, 0.0
        %s800 = sld [smem:[#allocation6]]
        %v801 = vstv %s800
        %v802 = vmul.f32 %v484, %v801
        %v803 = vmul.f32 %v485, %v801
        %vm806 = vcmask 1040384
        %v807 = vrot.slane %v802, 7
        %v808 = vrot.slane %v803, 7
        %v809 = vsel %vm806, %v807, %v808
        %810 = vrot.lane.b32.xlu0 %v807, 1
        %v811 = vpop.permute.xlu0 %810
        %812 = vrot.lane.b32.xlu0 %v809, 1
        %v813 = vpop.permute.xlu0 %812
        %814 = vrot.lane.b32.xlu0 %v808, 1
        %v815 = vpop.permute.xlu0 %814
        %v819 = vadd.f32 %v327, %v811
        %v820 = vadd.f32 %v328, %v813
        %v821 = vadd.f32 %v329, %v815
        %s822 = sld [smem:[#allocation6 + $0x1]]
        %v823 = vstv %s822
        %v824 = vmul.f32 %v641, %v823
        %v825 = vmul.f32 %v642, %v823
        %v828 = vrot.slane %v824, 7
        %v829 = vrot.slane %v825, 7
        %v830 = vsel %vm806, %v828, %v829
        %831 = vrot.lane.b32.xlu0 %v828, 1
        %v832 = vpop.permute.xlu0 %831
        %833 = vrot.lane.b32.xlu0 %v830, 1
        %v834 = vpop.permute.xlu0 %833
        %835 = vrot.lane.b32.xlu0 %v829, 1
        %v836 = vpop.permute.xlu0 %835
        %v840 = vadd.f32 %v819, %v832
        %v841 = vadd.f32 %v820, %v834
        %v842 = vadd.f32 %v821, %v836
        %s843 = sld [smem:[#allocation6 + $0x2]]
        %v844 = vstv %s843
        %v845 = vmul.f32 %v798, %v844
        %v846 = vmul.f32 %v799, %v844
        %v849 = vrot.slane %v845, 7
        %v850 = vrot.slane %v846, 7
        %v851 = vsel %vm806, %v849, %v850
        %852 = vrot.lane.b32.xlu0 %v849, 1
        %v853 = vpop.permute.xlu0 %852
        %854 = vrot.lane.b32.xlu0 %v851, 1
        %v855 = vpop.permute.xlu0 %854
        %856 = vrot.lane.b32.xlu0 %v850, 1
        %v857 = vpop.permute.xlu0 %856
        %v861 = vadd.f32 %v840, %v853
        %v862 = vadd.f32 %v841, %v855
        %v863 = vadd.f32 %v842, %v857
        %s864 = sld [smem:[#allocation6 + $0x3]]
        %v865 = vstv %s864
        %v866 = vmul.f32 %v484, %v865
        %v867 = vmul.f32 %v485, %v865
        %v870 = vrot.slane %v866, 7
        %v871 = vrot.slane %v867, 7
        %v872 = vsel %vm806, %v870, %v871
        %873 = vrot.lane.b32.xlu0 %v870, 1
        %v874 = vpop.permute.xlu0 %873
        %875 = vrot.lane.b32.xlu0 %v872, 1
        %v876 = vpop.permute.xlu0 %875
        %877 = vrot.lane.b32.xlu0 %v871, 1
        %v878 = vpop.permute.xlu0 %877
        %v882 = vadd.f32 %v486, %v874
        %v883 = vadd.f32 %v487, %v876
        %v884 = vadd.f32 %v488, %v878
        %s885 = sld [smem:[#allocation6 + $0x4]]
        %v886 = vstv %s885
        %v887 = vmul.f32 %v641, %v886
        %v888 = vmul.f32 %v642, %v886
        %v891 = vrot.slane %v887, 7
        %v892 = vrot.slane %v888, 7
        %v893 = vsel %vm806, %v891, %v892
        %894 = vrot.lane.b32.xlu0 %v891, 1
        %v895 = vpop.permute.xlu0 %894
        %896 = vrot.lane.b32.xlu0 %v893, 1
        %v897 = vpop.permute.xlu0 %896
        %898 = vrot.lane.b32.xlu0 %v892, 1
        %v899 = vpop.permute.xlu0 %898
        %v903 = vadd.f32 %v882, %v895
        %v904 = vadd.f32 %v883, %v897
        %v905 = vadd.f32 %v884, %v899
        %s906 = sld [smem:[#allocation6 + $0x5]]
        %v907 = vstv %s906
        %v908 = vmul.f32 %v798, %v907
        %v909 = vmul.f32 %v799, %v907
        %v912 = vrot.slane %v908, 7
        %v913 = vrot.slane %v909, 7
        %v914 = vsel %vm806, %v912, %v913
        %915 = vrot.lane.b32.xlu0 %v912, 1
        %v916 = vpop.permute.xlu0 %915
        %917 = vrot.lane.b32.xlu0 %v914, 1
        %v918 = vpop.permute.xlu0 %917
        %919 = vrot.lane.b32.xlu0 %v913, 1
        %v920 = vpop.permute.xlu0 %919
        %v924 = vadd.f32 %v903, %v916
        %v925 = vadd.f32 %v904, %v918
        %v926 = vadd.f32 %v905, %v920
        %s927 = sld [smem:[#allocation6 + $0x6]]
        %v928 = vstv %s927
        %v929 = vmul.f32 %v484, %v928
        %v930 = vmul.f32 %v485, %v928
        %v933 = vrot.slane %v929, 7
        %v934 = vrot.slane %v930, 7
        %v935 = vsel %vm806, %v933, %v934
        %936 = vrot.lane.b32.xlu0 %v933, 1
        %v937 = vpop.permute.xlu0 %936
        %938 = vrot.lane.b32.xlu0 %v935, 1
        %v939 = vpop.permute.xlu0 %938
        %940 = vrot.lane.b32.xlu0 %v934, 1
        %v941 = vpop.permute.xlu0 %940
        %v945 = vadd.f32 %v643, %v937
        %v946 = vadd.f32 %v644, %v939
        %v947 = vadd.f32 %v645, %v941
        %s948 = sld [smem:[#allocation6 + $0x7]]
        %v949 = vstv %s948
        %v950 = vmul.f32 %v641, %v949
        %v951 = vmul.f32 %v642, %v949
        %v954 = vrot.slane %v950, 7
        %v955 = vrot.slane %v951, 7
        %v956 = vsel %vm806, %v954, %v955
        %957 = vrot.lane.b32.xlu0 %v954, 1
        %v958 = vpop.permute.xlu0 %957
        %959 = vrot.lane.b32.xlu0 %v956, 1
        %v960 = vpop.permute.xlu0 %959
        %961 = vrot.lane.b32.xlu0 %v955, 1
        %v962 = vpop.permute.xlu0 %961
        %v966 = vadd.f32 %v945, %v958
        %v967 = vadd.f32 %v946, %v960
        %v968 = vadd.f32 %v947, %v962
        %s969 = sld [smem:[#allocation6 + $0x8]]
        %v970 = vstv %s969
        %v971 = vmul.f32 %v798, %v970
        %v972 = vmul.f32 %v799, %v970
        %v975 = vrot.slane %v971, 7
        %v976 = vrot.slane %v972, 7
        %v977 = vsel %vm806, %v975, %v976
        %978 = vrot.lane.b32.xlu0 %v975, 1
        %v979 = vpop.permute.xlu0 %978
        %980 = vrot.lane.b32.xlu0 %v977, 1
        %v981 = vpop.permute.xlu0 %980
        %982 = vrot.lane.b32.xlu0 %v976, 1
        %v983 = vpop.permute.xlu0 %982
        %v987 = vadd.f32 %v966, %v979
        %v988 = vadd.f32 %v967, %v981
        %v989 = vadd.f32 %v968, %v983
        %vm990 = vcmask 138249
        %991 = vst.msk [vmem:[#allocation2] sm:$0xfe] %vm990, %v861
        %992 = vst.msk [vmem:[#allocation2 + $0x8] sm:$0xff] %vm296, %v862
        %vm993 = vcmask 131080
        %994 = vst.msk [vmem:[#allocation2 + $0x10] sm:$0x1] %vm993, %v863
        %995 = vst.msk [vmem:[%s310] sm:$0xfe] %vm990, %v924
        %996 = vst.msk [vmem:[%s310 + $0x8] sm:$0xff] %vm296, %v925
        %997 = vst.msk [vmem:[%s310 + $0x10] sm:$0x1] %vm993, %v926
        %998 = vst.msk [vmem:[%s324] sm:$0xfe] %vm990, %v987
        %999 = vst.msk [vmem:[%s324 + $0x8] sm:$0xff] %vm296, %v988
        %1000 = vst.msk [vmem:[%s324 + $0x10] sm:$0x1] %vm993, %v989
        %v1001 = vld [vmem:[#allocation2] sm:$0xff]
        %v1002 = vld [vmem:[#allocation2 + $0x8] sm:$0xff]
        %v1003 = vld [vmem:[#allocation2 + $0x10] sm:$0x3]
        %s1004 = sld [smem:[#allocation3 + $0x1b]]
        %v1005 = vstv %s1004
        %v1006 = vmul.f32 %v1001, %v1005
        %v1007 = vmul.f32 %v1002, %v1005
        %v1008 = vadd.f32 %v1006, 0.0
        %v1009 = vadd.f32 %v1007, 0.0
        %s1010 = sld [smem:[#allocation3 + $0x1c]]
        %v1011 = vstv %s1010
        %v1012 = vmul.f32 %v1001, %v1011
        %v1013 = vmul.f32 %v1002, %v1011
        %1016 = vrot.lane.b32.xlu0 %v1012, 127
        %v1017 = vpop.permute.xlu0 %1016
        %1018 = vrot.lane.b32.xlu0 %v1013, 127
        %v1019 = vpop.permute.xlu0 %1018
        %v1022 = vadd.f32 %v1008, %v1017
        %v1023 = vadd.f32 %v1009, %v1019
        %s1024 = sld [smem:[#allocation3 + $0x1d]]
        %v1025 = vstv %s1024
        %v1026 = vmul.f32 %v1001, %v1025
        %v1027 = vmul.f32 %v1002, %v1025
        %1030 = vrot.lane.b32.xlu0 %v1026, 126
        %v1031 = vpop.permute.xlu0 %1030
        %1032 = vrot.lane.b32.xlu0 %v1027, 126
        %v1033 = vpop.permute.xlu0 %1032
        %v1036 = vadd.f32 %v1022, %v1031
        %v1037 = vadd.f32 %v1023, %v1033
        %s1038 = sld [smem:[#allocation3 + $0x1e]]
        %v1039 = vstv %s1038
        %v1040 = vmul.f32 %v1001, %v1039
        %v1041 = vmul.f32 %v1002, %v1039
        %v1042 = vmul.f32 %v1003, %v1039
        %v1046 = vrot.slane %v1040, 1
        %v1047 = vrot.slane %v1041, 1
        %v1048 = vsel %vm372, %v1046, %v1047
        %v1049 = vrot.slane %v1042, 1
        %v1050 = vsel %vm372, %v1047, %v1049
        %v1053 = vadd.f32 %v1036, %v1048
        %v1054 = vadd.f32 %v1037, %v1050
        %s1055 = sld [smem:[#allocation3 + $0x1f]]
        %v1056 = vstv %s1055
        %v1057 = vmul.f32 %v1001, %v1056
        %v1058 = vmul.f32 %v1002, %v1056
        %v1059 = vmul.f32 %v1003, %v1056
        %v1063 = vrot.slane %v1057, 1
        %v1064 = vrot.slane %v1058, 1
        %v1065 = vsel %vm372, %v1063, %v1064
        %v1066 = vrot.slane %v1059, 1
        %v1067 = vsel %vm372, %v1064, %v1066
        %1068 = vrot.lane.b32.xlu0 %v1065, 127
        %v1069 = vpop.permute.xlu0 %1068
        %1070 = vrot.lane.b32.xlu0 %v1067, 127
        %v1071 = vpop.permute.xlu0 %1070
        %v1074 = vadd.f32 %v1053, %v1069
        %v1075 = vadd.f32 %v1054, %v1071
        %s1076 = sld [smem:[#allocation3 + $0x20]]
        %v1077 = vstv %s1076
        %v1078 = vmul.f32 %v1001, %v1077
        %v1079 = vmul.f32 %v1002, %v1077
        %v1080 = vmul.f32 %v1003, %v1077
        %v1084 = vrot.slane %v1078, 1
        %v1085 = vrot.slane %v1079, 1
        %v1086 = vsel %vm372, %v1084, %v1085
        %v1087 = vrot.slane %v1080, 1
        %v1088 = vsel %vm372, %v1085, %v1087
        %1089 = vrot.lane.b32.xlu0 %v1086, 126
        %v1090 = vpop.permute.xlu0 %1089
        %1091 = vrot.lane.b32.xlu0 %v1088, 126
        %v1092 = vpop.permute.xlu0 %1091
        %v1095 = vadd.f32 %v1074, %v1090
        %v1096 = vadd.f32 %v1075, %v1092
        %s1097 = sld [smem:[#allocation3 + $0x21]]
        %v1098 = vstv %s1097
        %v1099 = vmul.f32 %v1001, %v1098
        %v1100 = vmul.f32 %v1002, %v1098
        %v1101 = vmul.f32 %v1003, %v1098
        %v1105 = vrot.slane %v1099, 2
        %v1106 = vrot.slane %v1100, 2
        %v1107 = vsel %vm432, %v1105, %v1106
        %v1108 = vrot.slane %v1101, 2
        %v1109 = vsel %vm432, %v1106, %v1108
        %v1112 = vadd.f32 %v1095, %v1107
        %v1113 = vadd.f32 %v1096, %v1109
        %s1114 = sld [smem:[#allocation3 + $0x22]]
        %v1115 = vstv %s1114
        %v1116 = vmul.f32 %v1001, %v1115
        %v1117 = vmul.f32 %v1002, %v1115
        %v1118 = vmul.f32 %v1003, %v1115
        %v1122 = vrot.slane %v1116, 2
        %v1123 = vrot.slane %v1117, 2
        %v1124 = vsel %vm432, %v1122, %v1123
        %v1125 = vrot.slane %v1118, 2
        %v1126 = vsel %vm432, %v1123, %v1125
        %1127 = vrot.lane.b32.xlu0 %v1124, 127
        %v1128 = vpop.permute.xlu0 %1127
        %1129 = vrot.lane.b32.xlu0 %v1126, 127
        %v1130 = vpop.permute.xlu0 %1129
        %v1133 = vadd.f32 %v1112, %v1128
        %v1134 = vadd.f32 %v1113, %v1130
        %s1135 = sld [smem:[#allocation3 + $0x23]]
        %v1136 = vstv %s1135
        %v1137 = vmul.f32 %v1001, %v1136
        %v1138 = vmul.f32 %v1002, %v1136
        %v1139 = vmul.f32 %v1003, %v1136
        %v1143 = vrot.slane %v1137, 2
        %v1144 = vrot.slane %v1138, 2
        %v1145 = vsel %vm432, %v1143, %v1144
        %v1146 = vrot.slane %v1139, 2
        %v1147 = vsel %vm432, %v1144, %v1146
        %1148 = vrot.lane.b32.xlu0 %v1145, 126
        %v1149 = vpop.permute.xlu0 %1148
        %1150 = vrot.lane.b32.xlu0 %v1147, 126
        %v1151 = vpop.permute.xlu0 %1150
        %v1154 = vadd.f32 %v1133, %v1149
        %v1155 = vadd.f32 %v1134, %v1151
        %v1156 = vmax.f32 %v1154, 0.0
        %v1157 = vmax.f32 %v1155, 0.0
        %v1158 = vld [vmem:[%s310] sm:$0xff]
        %v1159 = vld [vmem:[%s310 + $0x8] sm:$0xff]
        %v1160 = vld [vmem:[%s310 + $0x10] sm:$0x3]
        %s1161 = sld [smem:[#allocation3 + $0x24]]
        %v1162 = vstv %s1161
        %v1163 = vmul.f32 %v1158, %v1162
        %v1164 = vmul.f32 %v1159, %v1162
        %v1165 = vadd.f32 %v1163, 0.0
        %v1166 = vadd.f32 %v1164, 0.0
        %s1167 = sld [smem:[#allocation3 + $0x25]]
        %v1168 = vstv %s1167
        %v1169 = vmul.f32 %v1158, %v1168
        %v1170 = vmul.f32 %v1159, %v1168
        %1173 = vrot.lane.b32.xlu0 %v1169, 127
        %v1174 = vpop.permute.xlu0 %1173
        %1175 = vrot.lane.b32.xlu0 %v1170, 127
        %v1176 = vpop.permute.xlu0 %1175
        %v1179 = vadd.f32 %v1165, %v1174
        %v1180 = vadd.f32 %v1166, %v1176
        %s1181 = sld [smem:[#allocation3 + $0x26]]
        %v1182 = vstv %s1181
        %v1183 = vmul.f32 %v1158, %v1182
        %v1184 = vmul.f32 %v1159, %v1182
        %1187 = vrot.lane.b32.xlu0 %v1183, 126
        %v1188 = vpop.permute.xlu0 %1187
        %1189 = vrot.lane.b32.xlu0 %v1184, 126
        %v1190 = vpop.permute.xlu0 %1189
        %v1193 = vadd.f32 %v1179, %v1188
        %v1194 = vadd.f32 %v1180, %v1190
        %s1195 = sld [smem:[#allocation3 + $0x27]]
        %v1196 = vstv %s1195
        %v1197 = vmul.f32 %v1158, %v1196
        %v1198 = vmul.f32 %v1159, %v1196
        %v1199 = vmul.f32 %v1160, %v1196
        %v1203 = vrot.slane %v1197, 1
        %v1204 = vrot.slane %v1198, 1
        %v1205 = vsel %vm372, %v1203, %v1204
        %v1206 = vrot.slane %v1199, 1
        %v1207 = vsel %vm372, %v1204, %v1206
        %v1210 = vadd.f32 %v1193, %v1205
        %v1211 = vadd.f32 %v1194, %v1207
        %s1212 = sld [smem:[#allocation3 + $0x28]]
        %v1213 = vstv %s1212
        %v1214 = vmul.f32 %v1158, %v1213
        %v1215 = vmul.f32 %v1159, %v1213
        %v1216 = vmul.f32 %v1160, %v1213
        %v1220 = vrot.slane %v1214, 1
        %v1221 = vrot.slane %v1215, 1
        %v1222 = vsel %vm372, %v1220, %v1221
        %v1223 = vrot.slane %v1216, 1
        %v1224 = vsel %vm372, %v1221, %v1223
        %1225 = vrot.lane.b32.xlu0 %v1222, 127
        %v1226 = vpop.permute.xlu0 %1225
        %1227 = vrot.lane.b32.xlu0 %v1224, 127
        %v1228 = vpop.permute.xlu0 %1227
        %v1231 = vadd.f32 %v1210, %v1226
        %v1232 = vadd.f32 %v1211, %v1228
        %s1233 = sld [smem:[#allocation3 + $0x29]]
        %v1234 = vstv %s1233
        %v1235 = vmul.f32 %v1158, %v1234
        %v1236 = vmul.f32 %v1159, %v1234
        %v1237 = vmul.f32 %v1160, %v1234
        %v1241 = vrot.slane %v1235, 1
        %v1242 = vrot.slane %v1236, 1
        %v1243 = vsel %vm372, %v1241, %v1242
        %v1244 = vrot.slane %v1237, 1
        %v1245 = vsel %vm372, %v1242, %v1244
        %1246 = vrot.lane.b32.xlu0 %v1243, 126
        %v1247 = vpop.permute.xlu0 %1246
        %1248 = vrot.lane.b32.xlu0 %v1245, 126
        %v1249 = vpop.permute.xlu0 %1248
        %v1252 = vadd.f32 %v1231, %v1247
        %v1253 = vadd.f32 %v1232, %v1249
        %s1254 = sld [smem:[#allocation3 + $0x2a]]
        %v1255 = vstv %s1254
        %v1256 = vmul.f32 %v1158, %v1255
        %v1257 = vmul.f32 %v1159, %v1255
        %v1258 = vmul.f32 %v1160, %v1255
        %v1262 = vrot.slane %v1256, 2
        %v1263 = vrot.slane %v1257, 2
        %v1264 = vsel %vm432, %v1262, %v1263
        %v1265 = vrot.slane %v1258, 2
        %v1266 = vsel %vm432, %v1263, %v1265
        %v1269 = vadd.f32 %v1252, %v1264
        %v1270 = vadd.f32 %v1253, %v1266
        %s1271 = sld [smem:[#allocation3 + $0x2b]]
        %v1272 = vstv %s1271
        %v1273 = vmul.f32 %v1158, %v1272
        %v1274 = vmul.f32 %v1159, %v1272
        %v1275 = vmul.f32 %v1160, %v1272
        %v1279 = vrot.slane %v1273, 2
        %v1280 = vrot.slane %v1274, 2
        %v1281 = vsel %vm432, %v1279, %v1280
        %v1282 = vrot.slane %v1275, 2
        %v1283 = vsel %vm432, %v1280, %v1282
        %1284 = vrot.lane.b32.xlu0 %v1281, 127
        %v1285 = vpop.permute.xlu0 %1284
        %1286 = vrot.lane.b32.xlu0 %v1283, 127
        %v1287 = vpop.permute.xlu0 %1286
        %v1290 = vadd.f32 %v1269, %v1285
        %v1291 = vadd.f32 %v1270, %v1287
        %s1292 = sld [smem:[#allocation3 + $0x2c]]
        %v1293 = vstv %s1292
        %v1294 = vmul.f32 %v1158, %v1293
        %v1295 = vmul.f32 %v1159, %v1293
        %v1296 = vmul.f32 %v1160, %v1293
        %v1300 = vrot.slane %v1294, 2
        %v1301 = vrot.slane %v1295, 2
        %v1302 = vsel %vm432, %v1300, %v1301
        %v1303 = vrot.slane %v1296, 2
        %v1304 = vsel %vm432, %v1301, %v1303
        %1305 = vrot.lane.b32.xlu0 %v1302, 126
        %v1306 = vpop.permute.xlu0 %1305
        %1307 = vrot.lane.b32.xlu0 %v1304, 126
        %v1308 = vpop.permute.xlu0 %1307
        %v1311 = vadd.f32 %v1290, %v1306
        %v1312 = vadd.f32 %v1291, %v1308
        %v1313 = vmax.f32 %v1311, 0.0
        %v1314 = vmax.f32 %v1312, 0.0
        %v1315 = vld [vmem:[%s324] sm:$0xff]
        %v1316 = vld [vmem:[%s324 + $0x8] sm:$0xff]
        %v1317 = vld [vmem:[%s324 + $0x10] sm:$0x3]
        %s1318 = sld [smem:[#allocation3 + $0x2d]]
        %v1319 = vstv %s1318
        %v1320 = vmul.f32 %v1315, %v1319
        %v1321 = vmul.f32 %v1316, %v1319
        %v1322 = vadd.f32 %v1320, 0.0
        %v1323 = vadd.f32 %v1321, 0.0
        %s1324 = sld [smem:[#allocation3 + $0x2e]]
        %v1325 = vstv %s1324
        %v1326 = vmul.f32 %v1315, %v1325
        %v1327 = vmul.f32 %v1316, %v1325
        %1330 = vrot.lane.b32.xlu0 %v1326, 127
        %v1331 = vpop.permute.xlu0 %1330
        %1332 = vrot.lane.b32.xlu0 %v1327, 127
        %v1333 = vpop.permute.xlu0 %1332
        %v1336 = vadd.f32 %v1322, %v1331
        %v1337 = vadd.f32 %v1323, %v1333
        %s1338 = sld [smem:[#allocation3 + $0x2f]]
        %v1339 = vstv %s1338
        %v1340 = vmul.f32 %v1315, %v1339
        %v1341 = vmul.f32 %v1316, %v1339
        %1344 = vrot.lane.b32.xlu0 %v1340, 126
        %v1345 = vpop.permute.xlu0 %1344
        %1346 = vrot.lane.b32.xlu0 %v1341, 126
        %v1347 = vpop.permute.xlu0 %1346
        %v1350 = vadd.f32 %v1336, %v1345
        %v1351 = vadd.f32 %v1337, %v1347
        %s1352 = sld [smem:[#allocation3 + $0x30]]
        %v1353 = vstv %s1352
        %v1354 = vmul.f32 %v1315, %v1353
        %v1355 = vmul.f32 %v1316, %v1353
        %v1356 = vmul.f32 %v1317, %v1353
        %v1360 = vrot.slane %v1354, 1
        %v1361 = vrot.slane %v1355, 1
        %v1362 = vsel %vm372, %v1360, %v1361
        %v1363 = vrot.slane %v1356, 1
        %v1364 = vsel %vm372, %v1361, %v1363
        %v1367 = vadd.f32 %v1350, %v1362
        %v1368 = vadd.f32 %v1351, %v1364
        %s1369 = sld [smem:[#allocation3 + $0x31]]
        %v1370 = vstv %s1369
        %v1371 = vmul.f32 %v1315, %v1370
        %v1372 = vmul.f32 %v1316, %v1370
        %v1373 = vmul.f32 %v1317, %v1370
        %v1377 = vrot.slane %v1371, 1
        %v1378 = vrot.slane %v1372, 1
        %v1379 = vsel %vm372, %v1377, %v1378
        %v1380 = vrot.slane %v1373, 1
        %v1381 = vsel %vm372, %v1378, %v1380
        %1382 = vrot.lane.b32.xlu0 %v1379, 127
        %v1383 = vpop.permute.xlu0 %1382
        %1384 = vrot.lane.b32.xlu0 %v1381, 127
        %v1385 = vpop.permute.xlu0 %1384
        %v1388 = vadd.f32 %v1367, %v1383
        %v1389 = vadd.f32 %v1368, %v1385
        %s1390 = sld [smem:[#allocation3 + $0x32]]
        %v1391 = vstv %s1390
        %v1392 = vmul.f32 %v1315, %v1391
        %v1393 = vmul.f32 %v1316, %v1391
        %v1394 = vmul.f32 %v1317, %v1391
        %v1398 = vrot.slane %v1392, 1
        %v1399 = vrot.slane %v1393, 1
        %v1400 = vsel %vm372, %v1398, %v1399
        %v1401 = vrot.slane %v1394, 1
        %v1402 = vsel %vm372, %v1399, %v1401
        %1403 = vrot.lane.b32.xlu0 %v1400, 126
        %v1404 = vpop.permute.xlu0 %1403
        %1405 = vrot.lane.b32.xlu0 %v1402, 126
        %v1406 = vpop.permute.xlu0 %1405
        %v1409 = vadd.f32 %v1388, %v1404
        %v1410 = vadd.f32 %v1389, %v1406
        %s1411 = sld [smem:[#allocation3 + $0x33]]
        %v1412 = vstv %s1411
        %v1413 = vmul.f32 %v1315, %v1412
        %v1414 = vmul.f32 %v1316, %v1412
        %v1415 = vmul.f32 %v1317, %v1412
        %v1419 = vrot.slane %v1413, 2
        %v1420 = vrot.slane %v1414, 2
        %v1421 = vsel %vm432, %v1419, %v1420
        %v1422 = vrot.slane %v1415, 2
        %v1423 = vsel %vm432, %v1420, %v1422
        %v1426 = vadd.f32 %v1409, %v1421
        %v1427 = vadd.f32 %v1410, %v1423
        %s1428 = sld [smem:[#allocation3 + $0x34]]
        %v1429 = vstv %s1428
        %v1430 = vmul.f32 %v1315, %v1429
        %v1431 = vmul.f32 %v1316, %v1429
        %v1432 = vmul.f32 %v1317, %v1429
        %v1436 = vrot.slane %v1430, 2
        %v1437 = vrot.slane %v1431, 2
        %v1438 = vsel %vm432, %v1436, %v1437
        %v1439 = vrot.slane %v1432, 2
        %v1440 = vsel %vm432, %v1437, %v1439
        %1441 = vrot.lane.b32.xlu0 %v1438, 127
        %v1442 = vpop.permute.xlu0 %1441
        %1443 = vrot.lane.b32.xlu0 %v1440, 127
        %v1444 = vpop.permute.xlu0 %1443
        %v1447 = vadd.f32 %v1426, %v1442
        %v1448 = vadd.f32 %v1427, %v1444
        %s1449 = sld [smem:[#allocation3 + $0x35]]
        %v1450 = vstv %s1449
        %v1451 = vmul.f32 %v1315, %v1450
        %v1452 = vmul.f32 %v1316, %v1450
        %v1453 = vmul.f32 %v1317, %v1450
        %v1457 = vrot.slane %v1451, 2
        %v1458 = vrot.slane %v1452, 2
        %v1459 = vsel %vm432, %v1457, %v1458
        %v1460 = vrot.slane %v1453, 2
        %v1461 = vsel %vm432, %v1458, %v1460
        %1462 = vrot.lane.b32.xlu0 %v1459, 126
        %v1463 = vpop.permute.xlu0 %1462
        %1464 = vrot.lane.b32.xlu0 %v1461, 126
        %v1465 = vpop.permute.xlu0 %1464
        %v1468 = vadd.f32 %v1447, %v1463
        %v1469 = vadd.f32 %v1448, %v1465
        %v1470 = vmax.f32 %v1468, 0.0
        %v1471 = vmax.f32 %v1469, 0.0
        %s1472 = sld [smem:[#allocation6 + $0x9]]
        %v1473 = vstv %s1472
        %v1474 = vmul.f32 %v1156, %v1473
        %v1475 = vmul.f32 %v1157, %v1473
        %v1478 = vrot.slane %v1474, 7
        %v1479 = vrot.slane %v1475, 7
        %v1480 = vsel %vm806, %v1478, %v1479
        %1481 = vrot.lane.b32.xlu0 %v1478, 1
        %v1482 = vpop.permute.xlu0 %1481
        %1483 = vrot.lane.b32.xlu0 %v1480, 1
        %v1484 = vpop.permute.xlu0 %1483
        %1485 = vrot.lane.b32.xlu0 %v1479, 1
        %v1486 = vpop.permute.xlu0 %1485
        %v1490 = vadd.f32 %v1001, %v1482
        %v1491 = vadd.f32 %v1002, %v1484
        %v1492 = vadd.f32 %v1003, %v1486
        %s1493 = sld [smem:[#allocation6 + $0xa]]
        %v1494 = vstv %s1493
        %v1495 = vmul.f32 %v1313, %v1494
        %v1496 = vmul.f32 %v1314, %v1494
        %v1499 = vrot.slane %v1495, 7
        %v1500 = vrot.slane %v1496, 7
        %v1501 = vsel %vm806, %v1499, %v1500
        %1502 = vrot.lane.b32.xlu0 %v1499, 1
        %v1503 = vpop.permute.xlu0 %1502
        %1504 = vrot.lane.b32.xlu0 %v1501, 1
        %v1505 = vpop.permute.xlu0 %1504
        %1506 = vrot.lane.b32.xlu0 %v1500, 1
        %v1507 = vpop.permute.xlu0 %1506
        %v1511 = vadd.f32 %v1490, %v1503
        %v1512 = vadd.f32 %v1491, %v1505
        %v1513 = vadd.f32 %v1492, %v1507
        %s1514 = sld [smem:[#allocation6 + $0xb]]
        %v1515 = vstv %s1514
        %v1516 = vmul.f32 %v1470, %v1515
        %v1517 = vmul.f32 %v1471, %v1515
        %v1520 = vrot.slane %v1516, 7
        %v1521 = vrot.slane %v1517, 7
        %v1522 = vsel %vm806, %v1520, %v1521
        %1523 = vrot.lane.b32.xlu0 %v1520, 1
        %v1524 = vpop.permute.xlu0 %1523
        %1525 = vrot.lane.b32.xlu0 %v1522, 1
        %v1526 = vpop.permute.xlu0 %1525
        %1527 = vrot.lane.b32.xlu0 %v1521, 1
        %v1528 = vpop.permute.xlu0 %1527
        %v1532 = vadd.f32 %v1511, %v1524
        %v1533 = vadd.f32 %v1512, %v1526
        %v1534 = vadd.f32 %v1513, %v1528
        %s1535 = sld [smem:[#allocation6 + $0xc]]
        %v1536 = vstv %s1535
        %v1537 = vmul.f32 %v1156, %v1536
        %v1538 = vmul.f32 %v1157, %v1536
        %v1541 = vrot.slane %v1537, 7
        %v1542 = vrot.slane %v1538, 7
        %v1543 = vsel %vm806, %v1541, %v1542
        %1544 = vrot.lane.b32.xlu0 %v1541, 1
        %v1545 = vpop.permute.xlu0 %1544
        %1546 = vrot.lane.b32.xlu0 %v1543, 1
        %v1547 = vpop.permute.xlu0 %1546
        %1548 = vrot.lane.b32.xlu0 %v1542, 1
        %v1549 = vpop.permute.xlu0 %1548
        %v1553 = vadd.f32 %v1158, %v1545
        %v1554 = vadd.f32 %v1159, %v1547
        %v1555 = vadd.f32 %v1160, %v1549
        %s1556 = sld [smem:[#allocation6 + $0xd]]
        %v1557 = vstv %s1556
        %v1558 = vmul.f32 %v1313, %v1557
        %v1559 = vmul.f32 %v1314, %v1557
        %v1562 = vrot.slane %v1558, 7
        %v1563 = vrot.slane %v1559, 7
        %v1564 = vsel %vm806, %v1562, %v1563
        %1565 = vrot.lane.b32.xlu0 %v1562, 1
        %v1566 = vpop.permute.xlu0 %1565
        %1567 = vrot.lane.b32.xlu0 %v1564, 1
        %v1568 = vpop.permute.xlu0 %1567
        %1569 = vrot.lane.b32.xlu0 %v1563, 1
        %v1570 = vpop.permute.xlu0 %1569
        %v1574 = vadd.f32 %v1553, %v1566
        %v1575 = vadd.f32 %v1554, %v1568
        %v1576 = vadd.f32 %v1555, %v1570
        %s1577 = sld [smem:[#allocation6 + $0xe]]
        %v1578 = vstv %s1577
        %v1579 = vmul.f32 %v1470, %v1578
        %v1580 = vmul.f32 %v1471, %v1578
        %v1583 = vrot.slane %v1579, 7
        %v1584 = vrot.slane %v1580, 7
        %v1585 = vsel %vm806, %v1583, %v1584
        %1586 = vrot.lane.b32.xlu0 %v1583, 1
        %v1587 = vpop.permute.xlu0 %1586
        %1588 = vrot.lane.b32.xlu0 %v1585, 1
        %v1589 = vpop.permute.xlu0 %1588
        %1590 = vrot.lane.b32.xlu0 %v1584, 1
        %v1591 = vpop.permute.xlu0 %1590
        %v1595 = vadd.f32 %v1574, %v1587
        %v1596 = vadd.f32 %v1575, %v1589
        %v1597 = vadd.f32 %v1576, %v1591
        %s1598 = sld [smem:[#allocation6 + $0xf]]
        %v1599 = vstv %s1598
        %v1600 = vmul.f32 %v1156, %v1599
        %v1601 = vmul.f32 %v1157, %v1599
        %v1604 = vrot.slane %v1600, 7
        %v1605 = vrot.slane %v1601, 7
        %v1606 = vsel %vm806, %v1604, %v1605
        %1607 = vrot.lane.b32.xlu0 %v1604, 1
        %v1608 = vpop.permute.xlu0 %1607
        %1609 = vrot.lane.b32.xlu0 %v1606, 1
        %v1610 = vpop.permute.xlu0 %1609
        %1611 = vrot.lane.b32.xlu0 %v1605, 1
        %v1612 = vpop.permute.xlu0 %1611
        %v1616 = vadd.f32 %v1315, %v1608
        %v1617 = vadd.f32 %v1316, %v1610
        %v1618 = vadd.f32 %v1317, %v1612
        %s1619 = sld [smem:[#allocation6 + $0x10]]
        %v1620 = vstv %s1619
        %v1621 = vmul.f32 %v1313, %v1620
        %v1622 = vmul.f32 %v1314, %v1620
        %v1625 = vrot.slane %v1621, 7
        %v1626 = vrot.slane %v1622, 7
        %v1627 = vsel %vm806, %v1625, %v1626
        %1628 = vrot.lane.b32.xlu0 %v1625, 1
        %v1629 = vpop.permute.xlu0 %1628
        %1630 = vrot.lane.b32.xlu0 %v1627, 1
        %v1631 = vpop.permute.xlu0 %1630
        %1632 = vrot.lane.b32.xlu0 %v1626, 1
        %v1633 = vpop.permute.xlu0 %1632
        %v1637 = vadd.f32 %v1616, %v1629
        %v1638 = vadd.f32 %v1617, %v1631
        %v1639 = vadd.f32 %v1618, %v1633
        %s1640 = sld [smem:[#allocation6 + $0x11]]
        %v1641 = vstv %s1640
        %v1642 = vmul.f32 %v1470, %v1641
        %v1643 = vmul.f32 %v1471, %v1641
        %v1646 = vrot.slane %v1642, 7
        %v1647 = vrot.slane %v1643, 7
        %v1648 = vsel %vm806, %v1646, %v1647
        %1649 = vrot.lane.b32.xlu0 %v1646, 1
        %v1650 = vpop.permute.xlu0 %1649
        %1651 = vrot.lane.b32.xlu0 %v1648, 1
        %v1652 = vpop.permute.xlu0 %1651
        %1653 = vrot.lane.b32.xlu0 %v1647, 1
        %v1654 = vpop.permute.xlu0 %1653
        %v1658 = vadd.f32 %v1637, %v1650
        %v1659 = vadd.f32 %v1638, %v1652
        %v1660 = vadd.f32 %v1639, %v1654
        %1661 = vst.msk [vmem:[#allocation2] sm:$0xfe] %vm990, %v1532
        %1662 = vst.msk [vmem:[#allocation2 + $0x8] sm:$0xff] %vm296, %v1533
        %1663 = vst.msk [vmem:[#allocation2 + $0x10] sm:$0x1] %vm993, %v1534
        %1664 = vst.msk [vmem:[%s310] sm:$0xfe] %vm990, %v1595
        %1665 = vst.msk [vmem:[%s310 + $0x8] sm:$0xff] %vm296, %v1596
        %1666 = vst.msk [vmem:[%s310 + $0x10] sm:$0x1] %vm993, %v1597
        %1667 = vst.msk [vmem:[%s324] sm:$0xfe] %vm990, %v1658
        %1668 = vst.msk [vmem:[%s324 + $0x8] sm:$0xff] %vm296, %v1659
        %1669 = vst.msk [vmem:[%s324 + $0x10] sm:$0x1] %vm993, %v1660
        %v1670 = vld [vmem:[#allocation2] sm:$0xff]
        %v1671 = vld [vmem:[#allocation2 + $0x8] sm:$0xff]
        %v1672 = vld [vmem:[#allocation2 + $0x10] sm:$0x3]
        %s1673 = sld [smem:[#allocation3 + $0x36]]
        %v1674 = vstv %s1673
        %v1675 = vmul.f32 %v1670, %v1674
        %v1676 = vmul.f32 %v1671, %v1674
        %v1677 = vadd.f32 %v1675, 0.0
        %v1678 = vadd.f32 %v1676, 0.0
        %s1679 = sld [smem:[#allocation3 + $0x37]]
        %v1680 = vstv %s1679
        %v1681 = vmul.f32 %v1670, %v1680
        %v1682 = vmul.f32 %v1671, %v1680
        %1685 = vrot.lane.b32.xlu0 %v1681, 127
        %v1686 = vpop.permute.xlu0 %1685
        %1687 = vrot.lane.b32.xlu0 %v1682, 127
        %v1688 = vpop.permute.xlu0 %1687
        %v1691 = vadd.f32 %v1677, %v1686
        %v1692 = vadd.f32 %v1678, %v1688
        %s1693 = sld [smem:[#allocation3 + $0x38]]
        %v1694 = vstv %s1693
        %v1695 = vmul.f32 %v1670, %v1694
        %v1696 = vmul.f32 %v1671, %v1694
        %1699 = vrot.lane.b32.xlu0 %v1695, 126
        %v1700 = vpop.permute.xlu0 %1699
        %1701 = vrot.lane.b32.xlu0 %v1696, 126
        %v1702 = vpop.permute.xlu0 %1701
        %v1705 = vadd.f32 %v1691, %v1700
        %v1706 = vadd.f32 %v1692, %v1702
        %s1707 = sld [smem:[#allocation3 + $0x39]]
        %v1708 = vstv %s1707
        %v1709 = vmul.f32 %v1670, %v1708
        %v1710 = vmul.f32 %v1671, %v1708
        %v1711 = vmul.f32 %v1672, %v1708
        %v1715 = vrot.slane %v1709, 1
        %v1716 = vrot.slane %v1710, 1
        %v1717 = vsel %vm372, %v1715, %v1716
        %v1718 = vrot.slane %v1711, 1
        %v1719 = vsel %vm372, %v1716, %v1718
        %v1722 = vadd.f32 %v1705, %v1717
        %v1723 = vadd.f32 %v1706, %v1719
        %s1724 = sld [smem:[#allocation3 + $0x3a]]
        %v1725 = vstv %s1724
        %v1726 = vmul.f32 %v1670, %v1725
        %v1727 = vmul.f32 %v1671, %v1725
        %v1728 = vmul.f32 %v1672, %v1725
        %v1732 = vrot.slane %v1726, 1
        %v1733 = vrot.slane %v1727, 1
        %v1734 = vsel %vm372, %v1732, %v1733
        %v1735 = vrot.slane %v1728, 1
        %v1736 = vsel %vm372, %v1733, %v1735
        %1737 = vrot.lane.b32.xlu0 %v1734, 127
        %v1738 = vpop.permute.xlu0 %1737
        %1739 = vrot.lane.b32.xlu0 %v1736, 127
        %v1740 = vpop.permute.xlu0 %1739
        %v1743 = vadd.f32 %v1722, %v1738
        %v1744 = vadd.f32 %v1723, %v1740
        %s1745 = sld [smem:[#allocation3 + $0x3b]]
        %v1746 = vstv %s1745
        %v1747 = vmul.f32 %v1670, %v1746
        %v1748 = vmul.f32 %v1671, %v1746
        %v1749 = vmul.f32 %v1672, %v1746
        %v1753 = vrot.slane %v1747, 1
        %v1754 = vrot.slane %v1748, 1
        %v1755 = vsel %vm372, %v1753, %v1754
        %v1756 = vrot.slane %v1749, 1
        %v1757 = vsel %vm372, %v1754, %v1756
        %1758 = vrot.lane.b32.xlu0 %v1755, 126
        %v1759 = vpop.permute.xlu0 %1758
        %1760 = vrot.lane.b32.xlu0 %v1757, 126
        %v1761 = vpop.permute.xlu0 %1760
        %v1764 = vadd.f32 %v1743, %v1759
        %v1765 = vadd.f32 %v1744, %v1761
        %s1766 = sld [smem:[#allocation3 + $0x3c]]
        %v1767 = vstv %s1766
        %v1768 = vmul.f32 %v1670, %v1767
        %v1769 = vmul.f32 %v1671, %v1767
        %v1770 = vmul.f32 %v1672, %v1767
        %v1774 = vrot.slane %v1768, 2
        %v1775 = vrot.slane %v1769, 2
        %v1776 = vsel %vm432, %v1774, %v1775
        %v1777 = vrot.slane %v1770, 2
        %v1778 = vsel %vm432, %v1775, %v1777
        %v1781 = vadd.f32 %v1764, %v1776
        %v1782 = vadd.f32 %v1765, %v1778
        %s1783 = sld [smem:[#allocation3 + $0x3d]]
        %v1784 = vstv %s1783
        %v1785 = vmul.f32 %v1670, %v1784
        %v1786 = vmul.f32 %v1671, %v1784
        %v1787 = vmul.f32 %v1672, %v1784
        %v1791 = vrot.slane %v1785, 2
        %v1792 = vrot.slane %v1786, 2
        %v1793 = vsel %vm432, %v1791, %v1792
        %v1794 = vrot.slane %v1787, 2
        %v1795 = vsel %vm432, %v1792, %v1794
        %1796 = vrot.lane.b32.xlu0 %v1793, 127
        %v1797 = vpop.permute.xlu0 %1796
        %1798 = vrot.lane.b32.xlu0 %v1795, 127
        %v1799 = vpop.permute.xlu0 %1798
        %v1802 = vadd.f32 %v1781, %v1797
        %v1803 = vadd.f32 %v1782, %v1799
        %s1804 = sld [smem:[#allocation3 + $0x3e]]
        %v1805 = vstv %s1804
        %v1806 = vmul.f32 %v1670, %v1805
        %v1807 = vmul.f32 %v1671, %v1805
        %v1808 = vmul.f32 %v1672, %v1805
        %v1812 = vrot.slane %v1806, 2
        %v1813 = vrot.slane %v1807, 2
        %v1814 = vsel %vm432, %v1812, %v1813
        %v1815 = vrot.slane %v1808, 2
        %v1816 = vsel %vm432, %v1813, %v1815
        %1817 = vrot.lane.b32.xlu0 %v1814, 126
        %v1818 = vpop.permute.xlu0 %1817
        %1819 = vrot.lane.b32.xlu0 %v1816, 126
        %v1820 = vpop.permute.xlu0 %1819
        %v1823 = vadd.f32 %v1802, %v1818
        %v1824 = vadd.f32 %v1803, %v1820
        %v1825 = vmax.f32 %v1823, 0.0
        %v1826 = vmax.f32 %v1824, 0.0
        %v1827 = vld [vmem:[%s310] sm:$0xff]
        %v1828 = vld [vmem:[%s310 + $0x8] sm:$0xff]
        %v1829 = vld [vmem:[%s310 + $0x10] sm:$0x3]
        %s1830 = sld [smem:[#allocation3 + $0x3f]]
        %v1831 = vstv %s1830
        %v1832 = vmul.f32 %v1827, %v1831
        %v1833 = vmul.f32 %v1828, %v1831
        %v1834 = vadd.f32 %v1832, 0.0
        %v1835 = vadd.f32 %v1833, 0.0
        %s1836 = sld [smem:[#allocation3 + $0x40]]
        %v1837 = vstv %s1836
        %v1838 = vmul.f32 %v1827, %v1837
        %v1839 = vmul.f32 %v1828, %v1837
        %1842 = vrot.lane.b32.xlu0 %v1838, 127
        %v1843 = vpop.permute.xlu0 %1842
        %1844 = vrot.lane.b32.xlu0 %v1839, 127
        %v1845 = vpop.permute.xlu0 %1844
        %v1848 = vadd.f32 %v1834, %v1843
        %v1849 = vadd.f32 %v1835, %v1845
        %s1850 = sld [smem:[#allocation3 + $0x41]]
        %v1851 = vstv %s1850
        %v1852 = vmul.f32 %v1827, %v1851
        %v1853 = vmul.f32 %v1828, %v1851
        %1856 = vrot.lane.b32.xlu0 %v1852, 126
        %v1857 = vpop.permute.xlu0 %1856
        %1858 = vrot.lane.b32.xlu0 %v1853, 126
        %v1859 = vpop.permute.xlu0 %1858
        %v1862 = vadd.f32 %v1848, %v1857
        %v1863 = vadd.f32 %v1849, %v1859
        %s1864 = sld [smem:[#allocation3 + $0x42]]
        %v1865 = vstv %s1864
        %v1866 = vmul.f32 %v1827, %v1865
        %v1867 = vmul.f32 %v1828, %v1865
        %v1868 = vmul.f32 %v1829, %v1865
        %v1872 = vrot.slane %v1866, 1
        %v1873 = vrot.slane %v1867, 1
        %v1874 = vsel %vm372, %v1872, %v1873
        %v1875 = vrot.slane %v1868, 1
        %v1876 = vsel %vm372, %v1873, %v1875
        %v1879 = vadd.f32 %v1862, %v1874
        %v1880 = vadd.f32 %v1863, %v1876
        %s1881 = sld [smem:[#allocation3 + $0x43]]
        %v1882 = vstv %s1881
        %v1883 = vmul.f32 %v1827, %v1882
        %v1884 = vmul.f32 %v1828, %v1882
        %v1885 = vmul.f32 %v1829, %v1882
        %v1889 = vrot.slane %v1883, 1
        %v1890 = vrot.slane %v1884, 1
        %v1891 = vsel %vm372, %v1889, %v1890
        %v1892 = vrot.slane %v1885, 1
        %v1893 = vsel %vm372, %v1890, %v1892
        %1894 = vrot.lane.b32.xlu0 %v1891, 127
        %v1895 = vpop.permute.xlu0 %1894
        %1896 = vrot.lane.b32.xlu0 %v1893, 127
        %v1897 = vpop.permute.xlu0 %1896
        %v1900 = vadd.f32 %v1879, %v1895
        %v1901 = vadd.f32 %v1880, %v1897
        %s1902 = sld [smem:[#allocation3 + $0x44]]
        %v1903 = vstv %s1902
        %v1904 = vmul.f32 %v1827, %v1903
        %v1905 = vmul.f32 %v1828, %v1903
        %v1906 = vmul.f32 %v1829, %v1903
        %v1910 = vrot.slane %v1904, 1
        %v1911 = vrot.slane %v1905, 1
        %v1912 = vsel %vm372, %v1910, %v1911
        %v1913 = vrot.slane %v1906, 1
        %v1914 = vsel %vm372, %v1911, %v1913
        %1915 = vrot.lane.b32.xlu0 %v1912, 126
        %v1916 = vpop.permute.xlu0 %1915
        %1917 = vrot.lane.b32.xlu0 %v1914, 126
        %v1918 = vpop.permute.xlu0 %1917
        %v1921 = vadd.f32 %v1900, %v1916
        %v1922 = vadd.f32 %v1901, %v1918
        %s1923 = sld [smem:[#allocation3 + $0x45]]
        %v1924 = vstv %s1923
        %v1925 = vmul.f32 %v1827, %v1924
        %v1926 = vmul.f32 %v1828, %v1924
        %v1927 = vmul.f32 %v1829, %v1924
        %v1931 = vrot.slane %v1925, 2
        %v1932 = vrot.slane %v1926, 2
        %v1933 = vsel %vm432, %v1931, %v1932
        %v1934 = vrot.slane %v1927, 2
        %v1935 = vsel %vm432, %v1932, %v1934
        %v1938 = vadd.f32 %v1921, %v1933
        %v1939 = vadd.f32 %v1922, %v1935
        %s1940 = sld [smem:[#allocation3 + $0x46]]
        %v1941 = vstv %s1940
        %v1942 = vmul.f32 %v1827, %v1941
        %v1943 = vmul.f32 %v1828, %v1941
        %v1944 = vmul.f32 %v1829, %v1941
        %v1948 = vrot.slane %v1942, 2
        %v1949 = vrot.slane %v1943, 2
        %v1950 = vsel %vm432, %v1948, %v1949
        %v1951 = vrot.slane %v1944, 2
        %v1952 = vsel %vm432, %v1949, %v1951
        %1953 = vrot.lane.b32.xlu0 %v1950, 127
        %v1954 = vpop.permute.xlu0 %1953
        %1955 = vrot.lane.b32.xlu0 %v1952, 127
        %v1956 = vpop.permute.xlu0 %1955
        %v1959 = vadd.f32 %v1938, %v1954
        %v1960 = vadd.f32 %v1939, %v1956
        %s1961 = sld [smem:[#allocation3 + $0x47]]
        %v1962 = vstv %s1961
        %v1963 = vmul.f32 %v1827, %v1962
        %v1964 = vmul.f32 %v1828, %v1962
        %v1965 = vmul.f32 %v1829, %v1962
        %v1969 = vrot.slane %v1963, 2
        %v1970 = vrot.slane %v1964, 2
        %v1971 = vsel %vm432, %v1969, %v1970
        %v1972 = vrot.slane %v1965, 2
        %v1973 = vsel %vm432, %v1970, %v1972
        %1974 = vrot.lane.b32.xlu0 %v1971, 126
        %v1975 = vpop.permute.xlu0 %1974
        %1976 = vrot.lane.b32.xlu0 %v1973, 126
        %v1977 = vpop.permute.xlu0 %1976
        %v1980 = vadd.f32 %v1959, %v1975
        %v1981 = vadd.f32 %v1960, %v1977
        %v1982 = vmax.f32 %v1980, 0.0
        %v1983 = vmax.f32 %v1981, 0.0
        %v1984 = vld [vmem:[%s324] sm:$0xff]
        %v1985 = vld [vmem:[%s324 + $0x8] sm:$0xff]
        %v1986 = vld [vmem:[%s324 + $0x10] sm:$0x3]
        %s1987 = sld [smem:[#allocation3 + $0x48]]
        %v1988 = vstv %s1987
        %v1989 = vmul.f32 %v1984, %v1988
        %v1990 = vmul.f32 %v1985, %v1988
        %v1991 = vadd.f32 %v1989, 0.0
        %v1992 = vadd.f32 %v1990, 0.0
        %s1993 = sld [smem:[#allocation3 + $0x49]]
        %v1994 = vstv %s1993
        %v1995 = vmul.f32 %v1984, %v1994
        %v1996 = vmul.f32 %v1985, %v1994
        %1999 = vrot.lane.b32.xlu0 %v1995, 127
        %v2000 = vpop.permute.xlu0 %1999
        %2001 = vrot.lane.b32.xlu0 %v1996, 127
        %v2002 = vpop.permute.xlu0 %2001
        %v2005 = vadd.f32 %v1991, %v2000
        %v2006 = vadd.f32 %v1992, %v2002
        %s2007 = sld [smem:[#allocation3 + $0x4a]]
        %v2008 = vstv %s2007
        %v2009 = vmul.f32 %v1984, %v2008
        %v2010 = vmul.f32 %v1985, %v2008
        %2013 = vrot.lane.b32.xlu0 %v2009, 126
        %v2014 = vpop.permute.xlu0 %2013
        %2015 = vrot.lane.b32.xlu0 %v2010, 126
        %v2016 = vpop.permute.xlu0 %2015
        %v2019 = vadd.f32 %v2005, %v2014
        %v2020 = vadd.f32 %v2006, %v2016
        %s2021 = sld [smem:[#allocation3 + $0x4b]]
        %v2022 = vstv %s2021
        %v2023 = vmul.f32 %v1984, %v2022
        %v2024 = vmul.f32 %v1985, %v2022
        %v2025 = vmul.f32 %v1986, %v2022
        %v2029 = vrot.slane %v2023, 1
        %v2030 = vrot.slane %v2024, 1
        %v2031 = vsel %vm372, %v2029, %v2030
        %v2032 = vrot.slane %v2025, 1
        %v2033 = vsel %vm372, %v2030, %v2032
        %v2036 = vadd.f32 %v2019, %v2031
        %v2037 = vadd.f32 %v2020, %v2033
        %s2038 = sld [smem:[#allocation3 + $0x4c]]
        %v2039 = vstv %s2038
        %v2040 = vmul.f32 %v1984, %v2039
        %v2041 = vmul.f32 %v1985, %v2039
        %v2042 = vmul.f32 %v1986, %v2039
        %v2046 = vrot.slane %v2040, 1
        %v2047 = vrot.slane %v2041, 1
        %v2048 = vsel %vm372, %v2046, %v2047
        %v2049 = vrot.slane %v2042, 1
        %v2050 = vsel %vm372, %v2047, %v2049
        %2051 = vrot.lane.b32.xlu0 %v2048, 127
        %v2052 = vpop.permute.xlu0 %2051
        %2053 = vrot.lane.b32.xlu0 %v2050, 127
        %v2054 = vpop.permute.xlu0 %2053
        %v2057 = vadd.f32 %v2036, %v2052
        %v2058 = vadd.f32 %v2037, %v2054
        %s2059 = sld [smem:[#allocation3 + $0x4d]]
        %v2060 = vstv %s2059
        %v2061 = vmul.f32 %v1984, %v2060
        %v2062 = vmul.f32 %v1985, %v2060
        %v2063 = vmul.f32 %v1986, %v2060
        %v2067 = vrot.slane %v2061, 1
        %v2068 = vrot.slane %v2062, 1
        %v2069 = vsel %vm372, %v2067, %v2068
        %v2070 = vrot.slane %v2063, 1
        %v2071 = vsel %vm372, %v2068, %v2070
        %2072 = vrot.lane.b32.xlu0 %v2069, 126
        %v2073 = vpop.permute.xlu0 %2072
        %2074 = vrot.lane.b32.xlu0 %v2071, 126
        %v2075 = vpop.permute.xlu0 %2074
        %v2078 = vadd.f32 %v2057, %v2073
        %v2079 = vadd.f32 %v2058, %v2075
        %s2080 = sld [smem:[#allocation3 + $0x4e]]
        %v2081 = vstv %s2080
        %v2082 = vmul.f32 %v1984, %v2081
        %v2083 = vmul.f32 %v1985, %v2081
        %v2084 = vmul.f32 %v1986, %v2081
        %v2088 = vrot.slane %v2082, 2
        %v2089 = vrot.slane %v2083, 2
        %v2090 = vsel %vm432, %v2088, %v2089
        %v2091 = vrot.slane %v2084, 2
        %v2092 = vsel %vm432, %v2089, %v2091
        %v2095 = vadd.f32 %v2078, %v2090
        %v2096 = vadd.f32 %v2079, %v2092
        %s2097 = sld [smem:[#allocation3 + $0x4f]]
        %v2098 = vstv %s2097
        %v2099 = vmul.f32 %v1984, %v2098
        %v2100 = vmul.f32 %v1985, %v2098
        %v2101 = vmul.f32 %v1986, %v2098
        %v2105 = vrot.slane %v2099, 2
        %v2106 = vrot.slane %v2100, 2
        %v2107 = vsel %vm432, %v2105, %v2106
        %v2108 = vrot.slane %v2101, 2
        %v2109 = vsel %vm432, %v2106, %v2108
        %2110 = vrot.lane.b32.xlu0 %v2107, 127
        %v2111 = vpop.permute.xlu0 %2110
        %2112 = vrot.lane.b32.xlu0 %v2109, 127
        %v2113 = vpop.permute.xlu0 %2112
        %v2116 = vadd.f32 %v2095, %v2111
        %v2117 = vadd.f32 %v2096, %v2113
        %s2118 = sld [smem:[#allocation3 + $0x50]]
        %v2119 = vstv %s2118
        %v2120 = vmul.f32 %v1984, %v2119
        %v2121 = vmul.f32 %v1985, %v2119
        %v2122 = vmul.f32 %v1986, %v2119
        %v2126 = vrot.slane %v2120, 2
        %v2127 = vrot.slane %v2121, 2
        %v2128 = vsel %vm432, %v2126, %v2127
        %v2129 = vrot.slane %v2122, 2
        %v2130 = vsel %vm432, %v2127, %v2129
        %2131 = vrot.lane.b32.xlu0 %v2128, 126
        %v2132 = vpop.permute.xlu0 %2131
        %2133 = vrot.lane.b32.xlu0 %v2130, 126
        %v2134 = vpop.permute.xlu0 %2133
        %v2137 = vadd.f32 %v2116, %v2132
        %v2138 = vadd.f32 %v2117, %v2134
        %v2139 = vmax.f32 %v2137, 0.0
        %v2140 = vmax.f32 %v2138, 0.0
        %s2141 = sld [smem:[#allocation6 + $0x12]]
        %v2142 = vstv %s2141
        %v2143 = vmul.f32 %v1825, %v2142
        %v2144 = vmul.f32 %v1826, %v2142
        %v2147 = vrot.slane %v2143, 7
        %v2148 = vrot.slane %v2144, 7
        %v2149 = vsel %vm806, %v2147, %v2148
        %2150 = vrot.lane.b32.xlu0 %v2147, 1
        %v2151 = vpop.permute.xlu0 %2150
        %2152 = vrot.lane.b32.xlu0 %v2149, 1
        %v2153 = vpop.permute.xlu0 %2152
        %2154 = vrot.lane.b32.xlu0 %v2148, 1
        %v2155 = vpop.permute.xlu0 %2154
        %v2159 = vadd.f32 %v1670, %v2151
        %v2160 = vadd.f32 %v1671, %v2153
        %v2161 = vadd.f32 %v1672, %v2155
        %s2162 = sld [smem:[#allocation6 + $0x13]]
        %v2163 = vstv %s2162
        %v2164 = vmul.f32 %v1982, %v2163
        %v2165 = vmul.f32 %v1983, %v2163
        %v2168 = vrot.slane %v2164, 7
        %v2169 = vrot.slane %v2165, 7
        %v2170 = vsel %vm806, %v2168, %v2169
        %2171 = vrot.lane.b32.xlu0 %v2168, 1
        %v2172 = vpop.permute.xlu0 %2171
        %2173 = vrot.lane.b32.xlu0 %v2170, 1
        %v2174 = vpop.permute.xlu0 %2173
        %2175 = vrot.lane.b32.xlu0 %v2169, 1
        %v2176 = vpop.permute.xlu0 %2175
        %v2180 = vadd.f32 %v2159, %v2172
        %v2181 = vadd.f32 %v2160, %v2174
        %v2182 = vadd.f32 %v2161, %v2176
        %s2183 = sld [smem:[#allocation6 + $0x14]]
        %v2184 = vstv %s2183
        %v2185 = vmul.f32 %v2139, %v2184
        %v2186 = vmul.f32 %v2140, %v2184
        %v2189 = vrot.slane %v2185, 7
        %v2190 = vrot.slane %v2186, 7
        %v2191 = vsel %vm806, %v2189, %v2190
        %2192 = vrot.lane.b32.xlu0 %v2189, 1
        %v2193 = vpop.permute.xlu0 %2192
        %2194 = vrot.lane.b32.xlu0 %v2191, 1
        %v2195 = vpop.permute.xlu0 %2194
        %2196 = vrot.lane.b32.xlu0 %v2190, 1
        %v2197 = vpop.permute.xlu0 %2196
        %v2201 = vadd.f32 %v2180, %v2193
        %v2202 = vadd.f32 %v2181, %v2195
        %v2203 = vadd.f32 %v2182, %v2197
        %s2204 = sld [smem:[#allocation6 + $0x15]]
        %v2205 = vstv %s2204
        %v2206 = vmul.f32 %v1825, %v2205
        %v2207 = vmul.f32 %v1826, %v2205
        %v2210 = vrot.slane %v2206, 7
        %v2211 = vrot.slane %v2207, 7
        %v2212 = vsel %vm806, %v2210, %v2211
        %2213 = vrot.lane.b32.xlu0 %v2210, 1
        %v2214 = vpop.permute.xlu0 %2213
        %2215 = vrot.lane.b32.xlu0 %v2212, 1
        %v2216 = vpop.permute.xlu0 %2215
        %2217 = vrot.lane.b32.xlu0 %v2211, 1
        %v2218 = vpop.permute.xlu0 %2217
        %v2222 = vadd.f32 %v1827, %v2214
        %v2223 = vadd.f32 %v1828, %v2216
        %v2224 = vadd.f32 %v1829, %v2218
        %s2225 = sld [smem:[#allocation6 + $0x16]]
        %v2226 = vstv %s2225
        %v2227 = vmul.f32 %v1982, %v2226
        %v2228 = vmul.f32 %v1983, %v2226
        %v2231 = vrot.slane %v2227, 7
        %v2232 = vrot.slane %v2228, 7
        %v2233 = vsel %vm806, %v2231, %v2232
        %2234 = vrot.lane.b32.xlu0 %v2231, 1
        %v2235 = vpop.permute.xlu0 %2234
        %2236 = vrot.lane.b32.xlu0 %v2233, 1
        %v2237 = vpop.permute.xlu0 %2236
        %2238 = vrot.lane.b32.xlu0 %v2232, 1
        %v2239 = vpop.permute.xlu0 %2238
        %v2243 = vadd.f32 %v2222, %v2235
        %v2244 = vadd.f32 %v2223, %v2237
        %v2245 = vadd.f32 %v2224, %v2239
        %s2246 = sld [smem:[#allocation6 + $0x17]]
        %v2247 = vstv %s2246
        %v2248 = vmul.f32 %v2139, %v2247
        %v2249 = vmul.f32 %v2140, %v2247
        %v2252 = vrot.slane %v2248, 7
        %v2253 = vrot.slane %v2249, 7
        %v2254 = vsel %vm806, %v2252, %v2253
        %2255 = vrot.lane.b32.xlu0 %v2252, 1
        %v2256 = vpop.permute.xlu0 %2255
        %2257 = vrot.lane.b32.xlu0 %v2254, 1
        %v2258 = vpop.permute.xlu0 %2257
        %2259 = vrot.lane.b32.xlu0 %v2253, 1
        %v2260 = vpop.permute.xlu0 %2259
        %v2264 = vadd.f32 %v2243, %v2256
        %v2265 = vadd.f32 %v2244, %v2258
        %v2266 = vadd.f32 %v2245, %v2260
        %s2267 = sld [smem:[#allocation6 + $0x18]]
        %v2268 = vstv %s2267
        %v2269 = vmul.f32 %v1825, %v2268
        %v2270 = vmul.f32 %v1826, %v2268
        %v2273 = vrot.slane %v2269, 7
        %v2274 = vrot.slane %v2270, 7
        %v2275 = vsel %vm806, %v2273, %v2274
        %2276 = vrot.lane.b32.xlu0 %v2273, 1
        %v2277 = vpop.permute.xlu0 %2276
        %2278 = vrot.lane.b32.xlu0 %v2275, 1
        %v2279 = vpop.permute.xlu0 %2278
        %2280 = vrot.lane.b32.xlu0 %v2274, 1
        %v2281 = vpop.permute.xlu0 %2280
        %v2285 = vadd.f32 %v1984, %v2277
        %v2286 = vadd.f32 %v1985, %v2279
        %v2287 = vadd.f32 %v1986, %v2281
        %s2288 = sld [smem:[#allocation6 + $0x19]]
        %v2289 = vstv %s2288
        %v2290 = vmul.f32 %v1982, %v2289
        %v2291 = vmul.f32 %v1983, %v2289
        %v2294 = vrot.slane %v2290, 7
        %v2295 = vrot.slane %v2291, 7
        %v2296 = vsel %vm806, %v2294, %v2295
        %2297 = vrot.lane.b32.xlu0 %v2294, 1
        %v2298 = vpop.permute.xlu0 %2297
        %2299 = vrot.lane.b32.xlu0 %v2296, 1
        %v2300 = vpop.permute.xlu0 %2299
        %2301 = vrot.lane.b32.xlu0 %v2295, 1
        %v2302 = vpop.permute.xlu0 %2301
        %v2306 = vadd.f32 %v2285, %v2298
        %v2307 = vadd.f32 %v2286, %v2300
        %v2308 = vadd.f32 %v2287, %v2302
        %s2309 = sld [smem:[#allocation6 + $0x1a]]
        %v2310 = vstv %s2309
        %v2311 = vmul.f32 %v2139, %v2310
        %v2312 = vmul.f32 %v2140, %v2310
        %v2315 = vrot.slane %v2311, 7
        %v2316 = vrot.slane %v2312, 7
        %v2317 = vsel %vm806, %v2315, %v2316
        %2318 = vrot.lane.b32.xlu0 %v2315, 1
        %v2319 = vpop.permute.xlu0 %2318
        %2320 = vrot.lane.b32.xlu0 %v2317, 1
        %v2321 = vpop.permute.xlu0 %2320
        %2322 = vrot.lane.b32.xlu0 %v2316, 1
        %v2323 = vpop.permute.xlu0 %2322
        %v2327 = vadd.f32 %v2306, %v2319
        %v2328 = vadd.f32 %v2307, %v2321
        %v2329 = vadd.f32 %v2308, %v2323
        %2330 = vst.msk [vmem:[#allocation2] sm:$0xfe] %vm990, %v2201
        %2331 = vst.msk [vmem:[#allocation2 + $0x8] sm:$0xff] %vm296, %v2202
        %2332 = vst.msk [vmem:[#allocation2 + $0x10] sm:$0x1] %vm993, %v2203
        %2333 = vst.msk [vmem:[%s310] sm:$0xfe] %vm990, %v2264
        %2334 = vst.msk [vmem:[%s310 + $0x8] sm:$0xff] %vm296, %v2265
        %2335 = vst.msk [vmem:[%s310 + $0x10] sm:$0x1] %vm993, %v2266
        %2336 = vst.msk [vmem:[%s324] sm:$0xfe] %vm990, %v2327
        %2337 = vst.msk [vmem:[%s324 + $0x8] sm:$0xff] %vm296, %v2328
        %2338 = vst.msk [vmem:[%s324 + $0x10] sm:$0x1] %vm993, %v2329
        %v2339 = vld [vmem:[#allocation2] sm:$0xff]
        %v2340 = vld [vmem:[#allocation2 + $0x8] sm:$0xff]
        %v2341 = vld [vmem:[#allocation2 + $0x10] sm:$0x3]
        %s2342 = sld [smem:[#allocation3 + $0x51]]
        %v2343 = vstv %s2342
        %v2344 = vmul.f32 %v2339, %v2343
        %v2345 = vmul.f32 %v2340, %v2343
        %v2346 = vadd.f32 %v2344, 0.0
        %v2347 = vadd.f32 %v2345, 0.0
        %s2348 = sld [smem:[#allocation3 + $0x52]]
        %v2349 = vstv %s2348
        %v2350 = vmul.f32 %v2339, %v2349
        %v2351 = vmul.f32 %v2340, %v2349
        %2354 = vrot.lane.b32.xlu0 %v2350, 127
        %v2355 = vpop.permute.xlu0 %2354
        %2356 = vrot.lane.b32.xlu0 %v2351, 127
        %v2357 = vpop.permute.xlu0 %2356
        %v2360 = vadd.f32 %v2346, %v2355
        %v2361 = vadd.f32 %v2347, %v2357
        %s2362 = sld [smem:[#allocation3 + $0x53]]
        %v2363 = vstv %s2362
        %v2364 = vmul.f32 %v2339, %v2363
        %v2365 = vmul.f32 %v2340, %v2363
        %2368 = vrot.lane.b32.xlu0 %v2364, 126
        %v2369 = vpop.permute.xlu0 %2368
        %2370 = vrot.lane.b32.xlu0 %v2365, 126
        %v2371 = vpop.permute.xlu0 %2370
        %v2374 = vadd.f32 %v2360, %v2369
        %v2375 = vadd.f32 %v2361, %v2371
        %s2376 = sld [smem:[#allocation3 + $0x54]]
        %v2377 = vstv %s2376
        %v2378 = vmul.f32 %v2339, %v2377
        %v2379 = vmul.f32 %v2340, %v2377
        %v2380 = vmul.f32 %v2341, %v2377
        %v2384 = vrot.slane %v2378, 1
        %v2385 = vrot.slane %v2379, 1
        %v2386 = vsel %vm372, %v2384, %v2385
        %v2387 = vrot.slane %v2380, 1
        %v2388 = vsel %vm372, %v2385, %v2387
        %v2391 = vadd.f32 %v2374, %v2386
        %v2392 = vadd.f32 %v2375, %v2388
        %s2393 = sld [smem:[#allocation3 + $0x55]]
        %v2394 = vstv %s2393
        %v2395 = vmul.f32 %v2339, %v2394
        %v2396 = vmul.f32 %v2340, %v2394
        %v2397 = vmul.f32 %v2341, %v2394
        %v2401 = vrot.slane %v2395, 1
        %v2402 = vrot.slane %v2396, 1
        %v2403 = vsel %vm372, %v2401, %v2402
        %v2404 = vrot.slane %v2397, 1
        %v2405 = vsel %vm372, %v2402, %v2404
        %2406 = vrot.lane.b32.xlu0 %v2403, 127
        %v2407 = vpop.permute.xlu0 %2406
        %2408 = vrot.lane.b32.xlu0 %v2405, 127
        %v2409 = vpop.permute.xlu0 %2408
        %v2412 = vadd.f32 %v2391, %v2407
        %v2413 = vadd.f32 %v2392, %v2409
        %s2414 = sld [smem:[#allocation3 + $0x56]]
        %v2415 = vstv %s2414
        %v2416 = vmul.f32 %v2339, %v2415
        %v2417 = vmul.f32 %v2340, %v2415
        %v2418 = vmul.f32 %v2341, %v2415
        %v2422 = vrot.slane %v2416, 1
        %v2423 = vrot.slane %v2417, 1
        %v2424 = vsel %vm372, %v2422, %v2423
        %v2425 = vrot.slane %v2418, 1
        %v2426 = vsel %vm372, %v2423, %v2425
        %2427 = vrot.lane.b32.xlu0 %v2424, 126
        %v2428 = vpop.permute.xlu0 %2427
        %2429 = vrot.lane.b32.xlu0 %v2426, 126
        %v2430 = vpop.permute.xlu0 %2429
        %v2433 = vadd.f32 %v2412, %v2428
        %v2434 = vadd.f32 %v2413, %v2430
        %s2435 = sld [smem:[#allocation3 + $0x57]]
        %v2436 = vstv %s2435
        %v2437 = vmul.f32 %v2339, %v2436
        %v2438 = vmul.f32 %v2340, %v2436
        %v2439 = vmul.f32 %v2341, %v2436
        %v2443 = vrot.slane %v2437, 2
        %v2444 = vrot.slane %v2438, 2
        %v2445 = vsel %vm432, %v2443, %v2444
        %v2446 = vrot.slane %v2439, 2
        %v2447 = vsel %vm432, %v2444, %v2446
        %v2450 = vadd.f32 %v2433, %v2445
        %v2451 = vadd.f32 %v2434, %v2447
        %s2452 = sld [smem:[#allocation3 + $0x58]]
        %v2453 = vstv %s2452
        %v2454 = vmul.f32 %v2339, %v2453
        %v2455 = vmul.f32 %v2340, %v2453
        %v2456 = vmul.f32 %v2341, %v2453
        %v2460 = vrot.slane %v2454, 2
        %v2461 = vrot.slane %v2455, 2
        %v2462 = vsel %vm432, %v2460, %v2461
        %v2463 = vrot.slane %v2456, 2
        %v2464 = vsel %vm432, %v2461, %v2463
        %2465 = vrot.lane.b32.xlu0 %v2462, 127
        %v2466 = vpop.permute.xlu0 %2465
        %2467 = vrot.lane.b32.xlu0 %v2464, 127
        %v2468 = vpop.permute.xlu0 %2467
        %v2471 = vadd.f32 %v2450, %v2466
        %v2472 = vadd.f32 %v2451, %v2468
        %s2473 = sld [smem:[#allocation3 + $0x59]]
        %v2474 = vstv %s2473
        %v2475 = vmul.f32 %v2339, %v2474
        %v2476 = vmul.f32 %v2340, %v2474
        %v2477 = vmul.f32 %v2341, %v2474
        %v2481 = vrot.slane %v2475, 2
        %v2482 = vrot.slane %v2476, 2
        %v2483 = vsel %vm432, %v2481, %v2482
        %v2484 = vrot.slane %v2477, 2
        %v2485 = vsel %vm432, %v2482, %v2484
        %2486 = vrot.lane.b32.xlu0 %v2483, 126
        %v2487 = vpop.permute.xlu0 %2486
        %2488 = vrot.lane.b32.xlu0 %v2485, 126
        %v2489 = vpop.permute.xlu0 %2488
        %v2492 = vadd.f32 %v2471, %v2487
        %v2493 = vadd.f32 %v2472, %v2489
        %v2494 = vmax.f32 %v2492, 0.0
        %v2495 = vmax.f32 %v2493, 0.0
        %v2496 = vld [vmem:[%s310] sm:$0xff]
        %v2497 = vld [vmem:[%s310 + $0x8] sm:$0xff]
        %v2498 = vld [vmem:[%s310 + $0x10] sm:$0x3]
        %s2499 = sld [smem:[#allocation3 + $0x5a]]
        %v2500 = vstv %s2499
        %v2501 = vmul.f32 %v2496, %v2500
        %v2502 = vmul.f32 %v2497, %v2500
        %v2503 = vadd.f32 %v2501, 0.0
        %v2504 = vadd.f32 %v2502, 0.0
        %s2505 = sld [smem:[#allocation3 + $0x5b]]
        %v2506 = vstv %s2505
        %v2507 = vmul.f32 %v2496, %v2506
        %v2508 = vmul.f32 %v2497, %v2506
        %2511 = vrot.lane.b32.xlu0 %v2507, 127
        %v2512 = vpop.permute.xlu0 %2511
        %2513 = vrot.lane.b32.xlu0 %v2508, 127
        %v2514 = vpop.permute.xlu0 %2513
        %v2517 = vadd.f32 %v2503, %v2512
        %v2518 = vadd.f32 %v2504, %v2514
        %s2519 = sld [smem:[#allocation3 + $0x5c]]
        %v2520 = vstv %s2519
        %v2521 = vmul.f32 %v2496, %v2520
        %v2522 = vmul.f32 %v2497, %v2520
        %2525 = vrot.lane.b32.xlu0 %v2521, 126
        %v2526 = vpop.permute.xlu0 %2525
        %2527 = vrot.lane.b32.xlu0 %v2522, 126
        %v2528 = vpop.permute.xlu0 %2527
        %v2531 = vadd.f32 %v2517, %v2526
        %v2532 = vadd.f32 %v2518, %v2528
        %s2533 = sld [smem:[#allocation3 + $0x5d]]
        %v2534 = vstv %s2533
        %v2535 = vmul.f32 %v2496, %v2534
        %v2536 = vmul.f32 %v2497, %v2534
        %v2537 = vmul.f32 %v2498, %v2534
        %v2541 = vrot.slane %v2535, 1
        %v2542 = vrot.slane %v2536, 1
        %v2543 = vsel %vm372, %v2541, %v2542
        %v2544 = vrot.slane %v2537, 1
        %v2545 = vsel %vm372, %v2542, %v2544
        %v2548 = vadd.f32 %v2531, %v2543
        %v2549 = vadd.f32 %v2532, %v2545
        %s2550 = sld [smem:[#allocation3 + $0x5e]]
        %v2551 = vstv %s2550
        %v2552 = vmul.f32 %v2496, %v2551
        %v2553 = vmul.f32 %v2497, %v2551
        %v2554 = vmul.f32 %v2498, %v2551
        %v2558 = vrot.slane %v2552, 1
        %v2559 = vrot.slane %v2553, 1
        %v2560 = vsel %vm372, %v2558, %v2559
        %v2561 = vrot.slane %v2554, 1
        %v2562 = vsel %vm372, %v2559, %v2561
        %2563 = vrot.lane.b32.xlu0 %v2560, 127
        %v2564 = vpop.permute.xlu0 %2563
        %2565 = vrot.lane.b32.xlu0 %v2562, 127
        %v2566 = vpop.permute.xlu0 %2565
        %v2569 = vadd.f32 %v2548, %v2564
        %v2570 = vadd.f32 %v2549, %v2566
        %s2571 = sld [smem:[#allocation3 + $0x5f]]
        %v2572 = vstv %s2571
        %v2573 = vmul.f32 %v2496, %v2572
        %v2574 = vmul.f32 %v2497, %v2572
        %v2575 = vmul.f32 %v2498, %v2572
        %v2579 = vrot.slane %v2573, 1
        %v2580 = vrot.slane %v2574, 1
        %v2581 = vsel %vm372, %v2579, %v2580
        %v2582 = vrot.slane %v2575, 1
        %v2583 = vsel %vm372, %v2580, %v2582
        %2584 = vrot.lane.b32.xlu0 %v2581, 126
        %v2585 = vpop.permute.xlu0 %2584
        %2586 = vrot.lane.b32.xlu0 %v2583, 126
        %v2587 = vpop.permute.xlu0 %2586
        %v2590 = vadd.f32 %v2569, %v2585
        %v2591 = vadd.f32 %v2570, %v2587
        %s2592 = sld [smem:[#allocation3 + $0x60]]
        %v2593 = vstv %s2592
        %v2594 = vmul.f32 %v2496, %v2593
        %v2595 = vmul.f32 %v2497, %v2593
        %v2596 = vmul.f32 %v2498, %v2593
        %v2600 = vrot.slane %v2594, 2
        %v2601 = vrot.slane %v2595, 2
        %v2602 = vsel %vm432, %v2600, %v2601
        %v2603 = vrot.slane %v2596, 2
        %v2604 = vsel %vm432, %v2601, %v2603
        %v2607 = vadd.f32 %v2590, %v2602
        %v2608 = vadd.f32 %v2591, %v2604
        %s2609 = sld [smem:[#allocation3 + $0x61]]
        %v2610 = vstv %s2609
        %v2611 = vmul.f32 %v2496, %v2610
        %v2612 = vmul.f32 %v2497, %v2610
        %v2613 = vmul.f32 %v2498, %v2610
        %v2617 = vrot.slane %v2611, 2
        %v2618 = vrot.slane %v2612, 2
        %v2619 = vsel %vm432, %v2617, %v2618
        %v2620 = vrot.slane %v2613, 2
        %v2621 = vsel %vm432, %v2618, %v2620
        %2622 = vrot.lane.b32.xlu0 %v2619, 127
        %v2623 = vpop.permute.xlu0 %2622
        %2624 = vrot.lane.b32.xlu0 %v2621, 127
        %v2625 = vpop.permute.xlu0 %2624
        %v2628 = vadd.f32 %v2607, %v2623
        %v2629 = vadd.f32 %v2608, %v2625
        %s2630 = sld [smem:[#allocation3 + $0x62]]
        %v2631 = vstv %s2630
        %v2632 = vmul.f32 %v2496, %v2631
        %v2633 = vmul.f32 %v2497, %v2631
        %v2634 = vmul.f32 %v2498, %v2631
        %v2638 = vrot.slane %v2632, 2
        %v2639 = vrot.slane %v2633, 2
        %v2640 = vsel %vm432, %v2638, %v2639
        %v2641 = vrot.slane %v2634, 2
        %v2642 = vsel %vm432, %v2639, %v2641
        %2643 = vrot.lane.b32.xlu0 %v2640, 126
        %v2644 = vpop.permute.xlu0 %2643
        %2645 = vrot.lane.b32.xlu0 %v2642, 126
        %v2646 = vpop.permute.xlu0 %2645
        %v2649 = vadd.f32 %v2628, %v2644
        %v2650 = vadd.f32 %v2629, %v2646
        %v2651 = vmax.f32 %v2649, 0.0
        %v2652 = vmax.f32 %v2650, 0.0
        %v2653 = vld [vmem:[%s324] sm:$0xff]
        %v2654 = vld [vmem:[%s324 + $0x8] sm:$0xff]
        %v2655 = vld [vmem:[%s324 + $0x10] sm:$0x3]
        %s2656 = sld [smem:[#allocation3 + $0x63]]
        %v2657 = vstv %s2656
        %v2658 = vmul.f32 %v2653, %v2657
        %v2659 = vmul.f32 %v2654, %v2657
        %v2660 = vadd.f32 %v2658, 0.0
        %v2661 = vadd.f32 %v2659, 0.0
        %s2662 = sld [smem:[#allocation3 + $0x64]]
        %v2663 = vstv %s2662
        %v2664 = vmul.f32 %v2653, %v2663
        %v2665 = vmul.f32 %v2654, %v2663
        %2668 = vrot.lane.b32.xlu0 %v2664, 127
        %v2669 = vpop.permute.xlu0 %2668
        %2670 = vrot.lane.b32.xlu0 %v2665, 127
        %v2671 = vpop.permute.xlu0 %2670
        %v2674 = vadd.f32 %v2660, %v2669
        %v2675 = vadd.f32 %v2661, %v2671
        %s2676 = sld [smem:[#allocation3 + $0x65]]
        %v2677 = vstv %s2676
        %v2678 = vmul.f32 %v2653, %v2677
        %v2679 = vmul.f32 %v2654, %v2677
        %2682 = vrot.lane.b32.xlu0 %v2678, 126
        %v2683 = vpop.permute.xlu0 %2682
        %2684 = vrot.lane.b32.xlu0 %v2679, 126
        %v2685 = vpop.permute.xlu0 %2684
        %v2688 = vadd.f32 %v2674, %v2683
        %v2689 = vadd.f32 %v2675, %v2685
        %s2690 = sld [smem:[#allocation3 + $0x66]]
        %v2691 = vstv %s2690
        %v2692 = vmul.f32 %v2653, %v2691
        %v2693 = vmul.f32 %v2654, %v2691
        %v2694 = vmul.f32 %v2655, %v2691
        %v2698 = vrot.slane %v2692, 1
        %v2699 = vrot.slane %v2693, 1
        %v2700 = vsel %vm372, %v2698, %v2699
        %v2701 = vrot.slane %v2694, 1
        %v2702 = vsel %vm372, %v2699, %v2701
        %v2705 = vadd.f32 %v2688, %v2700
        %v2706 = vadd.f32 %v2689, %v2702
        %s2707 = sld [smem:[#allocation3 + $0x67]]
        %v2708 = vstv %s2707
        %v2709 = vmul.f32 %v2653, %v2708
        %v2710 = vmul.f32 %v2654, %v2708
        %v2711 = vmul.f32 %v2655, %v2708
        %v2715 = vrot.slane %v2709, 1
        %v2716 = vrot.slane %v2710, 1
        %v2717 = vsel %vm372, %v2715, %v2716
        %v2718 = vrot.slane %v2711, 1
        %v2719 = vsel %vm372, %v2716, %v2718
        %2720 = vrot.lane.b32.xlu0 %v2717, 127
        %v2721 = vpop.permute.xlu0 %2720
        %2722 = vrot.lane.b32.xlu0 %v2719, 127
        %v2723 = vpop.permute.xlu0 %2722
        %v2726 = vadd.f32 %v2705, %v2721
        %v2727 = vadd.f32 %v2706, %v2723
        %s2728 = sld [smem:[#allocation3 + $0x68]]
        %v2729 = vstv %s2728
        %v2730 = vmul.f32 %v2653, %v2729
        %v2731 = vmul.f32 %v2654, %v2729
        %v2732 = vmul.f32 %v2655, %v2729
        %v2736 = vrot.slane %v2730, 1
        %v2737 = vrot.slane %v2731, 1
        %v2738 = vsel %vm372, %v2736, %v2737
        %v2739 = vrot.slane %v2732, 1
        %v2740 = vsel %vm372, %v2737, %v2739
        %2741 = vrot.lane.b32.xlu0 %v2738, 126
        %v2742 = vpop.permute.xlu0 %2741
        %2743 = vrot.lane.b32.xlu0 %v2740, 126
        %v2744 = vpop.permute.xlu0 %2743
        %v2747 = vadd.f32 %v2726, %v2742
        %v2748 = vadd.f32 %v2727, %v2744
        %s2749 = sld [smem:[#allocation3 + $0x69]]
        %v2750 = vstv %s2749
        %v2751 = vmul.f32 %v2653, %v2750
        %v2752 = vmul.f32 %v2654, %v2750
        %v2753 = vmul.f32 %v2655, %v2750
        %v2757 = vrot.slane %v2751, 2
        %v2758 = vrot.slane %v2752, 2
        %v2759 = vsel %vm432, %v2757, %v2758
        %v2760 = vrot.slane %v2753, 2
        %v2761 = vsel %vm432, %v2758, %v2760
        %v2764 = vadd.f32 %v2747, %v2759
        %v2765 = vadd.f32 %v2748, %v2761
        %s2766 = sld [smem:[#allocation3 + $0x6a]]
        %v2767 = vstv %s2766
        %v2768 = vmul.f32 %v2653, %v2767
        %v2769 = vmul.f32 %v2654, %v2767
        %v2770 = vmul.f32 %v2655, %v2767
        %v2774 = vrot.slane %v2768, 2
        %v2775 = vrot.slane %v2769, 2
        %v2776 = vsel %vm432, %v2774, %v2775
        %v2777 = vrot.slane %v2770, 2
        %v2778 = vsel %vm432, %v2775, %v2777
        %2779 = vrot.lane.b32.xlu0 %v2776, 127
        %v2780 = vpop.permute.xlu0 %2779
        %2781 = vrot.lane.b32.xlu0 %v2778, 127
        %v2782 = vpop.permute.xlu0 %2781
        %v2785 = vadd.f32 %v2764, %v2780
        %v2786 = vadd.f32 %v2765, %v2782
        %s2787 = sld [smem:[#allocation3 + $0x6b]]
        %v2788 = vstv %s2787
        %v2789 = vmul.f32 %v2653, %v2788
        %v2790 = vmul.f32 %v2654, %v2788
        %v2791 = vmul.f32 %v2655, %v2788
        %v2795 = vrot.slane %v2789, 2
        %v2796 = vrot.slane %v2790, 2
        %v2797 = vsel %vm432, %v2795, %v2796
        %v2798 = vrot.slane %v2791, 2
        %v2799 = vsel %vm432, %v2796, %v2798
        %2800 = vrot.lane.b32.xlu0 %v2797, 126
        %v2801 = vpop.permute.xlu0 %2800
        %2802 = vrot.lane.b32.xlu0 %v2799, 126
        %v2803 = vpop.permute.xlu0 %2802
        %v2806 = vadd.f32 %v2785, %v2801
        %v2807 = vadd.f32 %v2786, %v2803
        %v2808 = vmax.f32 %v2806, 0.0
        %v2809 = vmax.f32 %v2807, 0.0
        %s2810 = sld [smem:[#allocation6 + $0x1b]]
        %v2811 = vstv %s2810
        %v2812 = vmul.f32 %v2494, %v2811
        %v2813 = vmul.f32 %v2495, %v2811
        %v2816 = vrot.slane %v2812, 7
        %v2817 = vrot.slane %v2813, 7
        %v2818 = vsel %vm806, %v2816, %v2817
        %2819 = vrot.lane.b32.xlu0 %v2816, 1
        %v2820 = vpop.permute.xlu0 %2819
        %2821 = vrot.lane.b32.xlu0 %v2818, 1
        %v2822 = vpop.permute.xlu0 %2821
        %2823 = vrot.lane.b32.xlu0 %v2817, 1
        %v2824 = vpop.permute.xlu0 %2823
        %v2828 = vadd.f32 %v2339, %v2820
        %v2829 = vadd.f32 %v2340, %v2822
        %v2830 = vadd.f32 %v2341, %v2824
        %s2831 = sld [smem:[#allocation6 + $0x1c]]
        %v2832 = vstv %s2831
        %v2833 = vmul.f32 %v2651, %v2832
        %v2834 = vmul.f32 %v2652, %v2832
        %v2837 = vrot.slane %v2833, 7
        %v2838 = vrot.slane %v2834, 7
        %v2839 = vsel %vm806, %v2837, %v2838
        %2840 = vrot.lane.b32.xlu0 %v2837, 1
        %v2841 = vpop.permute.xlu0 %2840
        %2842 = vrot.lane.b32.xlu0 %v2839, 1
        %v2843 = vpop.permute.xlu0 %2842
        %2844 = vrot.lane.b32.xlu0 %v2838, 1
        %v2845 = vpop.permute.xlu0 %2844
        %v2849 = vadd.f32 %v2828, %v2841
        %v2850 = vadd.f32 %v2829, %v2843
        %v2851 = vadd.f32 %v2830, %v2845
        %s2852 = sld [smem:[#allocation6 + $0x1d]]
        %v2853 = vstv %s2852
        %v2854 = vmul.f32 %v2808, %v2853
        %v2855 = vmul.f32 %v2809, %v2853
        %v2858 = vrot.slane %v2854, 7
        %v2859 = vrot.slane %v2855, 7
        %v2860 = vsel %vm806, %v2858, %v2859
        %2861 = vrot.lane.b32.xlu0 %v2858, 1
        %v2862 = vpop.permute.xlu0 %2861
        %2863 = vrot.lane.b32.xlu0 %v2860, 1
        %v2864 = vpop.permute.xlu0 %2863
        %2865 = vrot.lane.b32.xlu0 %v2859, 1
        %v2866 = vpop.permute.xlu0 %2865
        %v2870 = vadd.f32 %v2849, %v2862
        %v2871 = vadd.f32 %v2850, %v2864
        %v2872 = vadd.f32 %v2851, %v2866
        %s2873 = sld [smem:[#allocation6 + $0x1e]]
        %v2874 = vstv %s2873
        %v2875 = vmul.f32 %v2494, %v2874
        %v2876 = vmul.f32 %v2495, %v2874
        %v2879 = vrot.slane %v2875, 7
        %v2880 = vrot.slane %v2876, 7
        %v2881 = vsel %vm806, %v2879, %v2880
        %2882 = vrot.lane.b32.xlu0 %v2879, 1
        %v2883 = vpop.permute.xlu0 %2882
        %2884 = vrot.lane.b32.xlu0 %v2881, 1
        %v2885 = vpop.permute.xlu0 %2884
        %2886 = vrot.lane.b32.xlu0 %v2880, 1
        %v2887 = vpop.permute.xlu0 %2886
        %v2891 = vadd.f32 %v2496, %v2883
        %v2892 = vadd.f32 %v2497, %v2885
        %v2893 = vadd.f32 %v2498, %v2887
        %s2894 = sld [smem:[#allocation6 + $0x1f]]
        %v2895 = vstv %s2894
        %v2896 = vmul.f32 %v2651, %v2895
        %v2897 = vmul.f32 %v2652, %v2895
        %v2900 = vrot.slane %v2896, 7
        %v2901 = vrot.slane %v2897, 7
        %v2902 = vsel %vm806, %v2900, %v2901
        %2903 = vrot.lane.b32.xlu0 %v2900, 1
        %v2904 = vpop.permute.xlu0 %2903
        %2905 = vrot.lane.b32.xlu0 %v2902, 1
        %v2906 = vpop.permute.xlu0 %2905
        %2907 = vrot.lane.b32.xlu0 %v2901, 1
        %v2908 = vpop.permute.xlu0 %2907
        %v2912 = vadd.f32 %v2891, %v2904
        %v2913 = vadd.f32 %v2892, %v2906
        %v2914 = vadd.f32 %v2893, %v2908
        %s2915 = sld [smem:[#allocation6 + $0x20]]
        %v2916 = vstv %s2915
        %v2917 = vmul.f32 %v2808, %v2916
        %v2918 = vmul.f32 %v2809, %v2916
        %v2921 = vrot.slane %v2917, 7
        %v2922 = vrot.slane %v2918, 7
        %v2923 = vsel %vm806, %v2921, %v2922
        %2924 = vrot.lane.b32.xlu0 %v2921, 1
        %v2925 = vpop.permute.xlu0 %2924
        %2926 = vrot.lane.b32.xlu0 %v2923, 1
        %v2927 = vpop.permute.xlu0 %2926
        %2928 = vrot.lane.b32.xlu0 %v2922, 1
        %v2929 = vpop.permute.xlu0 %2928
        %v2933 = vadd.f32 %v2912, %v2925
        %v2934 = vadd.f32 %v2913, %v2927
        %v2935 = vadd.f32 %v2914, %v2929
        %s2936 = sld [smem:[#allocation6 + $0x21]]
        %v2937 = vstv %s2936
        %v2938 = vmul.f32 %v2494, %v2937
        %v2939 = vmul.f32 %v2495, %v2937
        %v2942 = vrot.slane %v2938, 7
        %v2943 = vrot.slane %v2939, 7
        %v2944 = vsel %vm806, %v2942, %v2943
        %2945 = vrot.lane.b32.xlu0 %v2942, 1
        %v2946 = vpop.permute.xlu0 %2945
        %2947 = vrot.lane.b32.xlu0 %v2944, 1
        %v2948 = vpop.permute.xlu0 %2947
        %2949 = vrot.lane.b32.xlu0 %v2943, 1
        %v2950 = vpop.permute.xlu0 %2949
        %v2954 = vadd.f32 %v2653, %v2946
        %v2955 = vadd.f32 %v2654, %v2948
        %v2956 = vadd.f32 %v2655, %v2950
        %s2957 = sld [smem:[#allocation6 + $0x22]]
        %v2958 = vstv %s2957
        %v2959 = vmul.f32 %v2651, %v2958
        %v2960 = vmul.f32 %v2652, %v2958
        %v2963 = vrot.slane %v2959, 7
        %v2964 = vrot.slane %v2960, 7
        %v2965 = vsel %vm806, %v2963, %v2964
        %2966 = vrot.lane.b32.xlu0 %v2963, 1
        %v2967 = vpop.permute.xlu0 %2966
        %2968 = vrot.lane.b32.xlu0 %v2965, 1
        %v2969 = vpop.permute.xlu0 %2968
        %2970 = vrot.lane.b32.xlu0 %v2964, 1
        %v2971 = vpop.permute.xlu0 %2970
        %v2975 = vadd.f32 %v2954, %v2967
        %v2976 = vadd.f32 %v2955, %v2969
        %v2977 = vadd.f32 %v2956, %v2971
        %s2978 = sld [smem:[#allocation6 + $0x23]]
        %v2979 = vstv %s2978
        %v2980 = vmul.f32 %v2808, %v2979
        %v2981 = vmul.f32 %v2809, %v2979
        %v2984 = vrot.slane %v2980, 7
        %v2985 = vrot.slane %v2981, 7
        %v2986 = vsel %vm806, %v2984, %v2985
        %2987 = vrot.lane.b32.xlu0 %v2984, 1
        %v2988 = vpop.permute.xlu0 %2987
        %2989 = vrot.lane.b32.xlu0 %v2986, 1
        %v2990 = vpop.permute.xlu0 %2989
        %2991 = vrot.lane.b32.xlu0 %v2985, 1
        %v2992 = vpop.permute.xlu0 %2991
        %v2996 = vadd.f32 %v2975, %v2988
        %v2997 = vadd.f32 %v2976, %v2990
        %v2998 = vadd.f32 %v2977, %v2992
        %2999 = vst.msk [vmem:[#allocation2] sm:$0xfe] %vm990, %v2870
        %3000 = vst.msk [vmem:[#allocation2 + $0x8] sm:$0xff] %vm296, %v2871
        %3001 = vst.msk [vmem:[#allocation2 + $0x10] sm:$0x1] %vm993, %v2872
        %3002 = vst.msk [vmem:[%s310] sm:$0xfe] %vm990, %v2933
        %3003 = vst.msk [vmem:[%s310 + $0x8] sm:$0xff] %vm296, %v2934
        %3004 = vst.msk [vmem:[%s310 + $0x10] sm:$0x1] %vm993, %v2935
        %3005 = vst.msk [vmem:[%s324] sm:$0xfe] %vm990, %v2996
        %3006 = vst.msk [vmem:[%s324 + $0x8] sm:$0xff] %vm296, %v2997
        %3007 = vst.msk [vmem:[%s324 + $0x10] sm:$0x1] %vm993, %v2998
        %v3008 = vld [vmem:[#allocation2] sm:$0xff]
        %v3009 = vld [vmem:[#allocation2 + $0x8] sm:$0xff]
        %v3010 = vld [vmem:[#allocation2 + $0x10] sm:$0x3]
        %s3011 = sld [smem:[#allocation8]]
        %v3012 = vstv %s3011
        %v3013 = vmul.f32 %v3008, %v3012
        %v3014 = vmul.f32 %v3009, %v3012
        %v3015 = vadd.f32 %v3013, 0.0
        %v3016 = vadd.f32 %v3014, 0.0
        %s3017 = sld [smem:[#allocation8 + $0x1]]
        %v3018 = vstv %s3017
        %v3019 = vmul.f32 %v3008, %v3018
        %v3020 = vmul.f32 %v3009, %v3018
        %3023 = vrot.lane.b32.xlu0 %v3019, 127
        %v3024 = vpop.permute.xlu0 %3023
        %3025 = vrot.lane.b32.xlu0 %v3020, 127
        %v3026 = vpop.permute.xlu0 %3025
        %v3029 = vadd.f32 %v3015, %v3024
        %v3030 = vadd.f32 %v3016, %v3026
        %s3031 = sld [smem:[#allocation8 + $0x2]]
        %v3032 = vstv %s3031
        %v3033 = vmul.f32 %v3008, %v3032
        %v3034 = vmul.f32 %v3009, %v3032
        %3037 = vrot.lane.b32.xlu0 %v3033, 126
        %v3038 = vpop.permute.xlu0 %3037
        %3039 = vrot.lane.b32.xlu0 %v3034, 126
        %v3040 = vpop.permute.xlu0 %3039
        %v3043 = vadd.f32 %v3029, %v3038
        %v3044 = vadd.f32 %v3030, %v3040
        %s3045 = sld [smem:[#allocation8 + $0x3]]
        %v3046 = vstv %s3045
        %v3047 = vmul.f32 %v3008, %v3046
        %v3048 = vmul.f32 %v3009, %v3046
        %v3049 = vmul.f32 %v3010, %v3046
        %v3053 = vrot.slane %v3047, 1
        %v3054 = vrot.slane %v3048, 1
        %v3055 = vsel %vm372, %v3053, %v3054
        %v3056 = vrot.slane %v3049, 1
        %v3057 = vsel %vm372, %v3054, %v3056
        %v3060 = vadd.f32 %v3043, %v3055
        %v3061 = vadd.f32 %v3044, %v3057
        %s3062 = sld [smem:[#allocation8 + $0x4]]
        %v3063 = vstv %s3062
        %v3064 = vmul.f32 %v3008, %v3063
        %v3065 = vmul.f32 %v3009, %v3063
        %v3066 = vmul.f32 %v3010, %v3063
        %v3070 = vrot.slane %v3064, 1
        %v3071 = vrot.slane %v3065, 1
        %v3072 = vsel %vm372, %v3070, %v3071
        %v3073 = vrot.slane %v3066, 1
        %v3074 = vsel %vm372, %v3071, %v3073
        %3075 = vrot.lane.b32.xlu0 %v3072, 127
        %v3076 = vpop.permute.xlu0 %3075
        %3077 = vrot.lane.b32.xlu0 %v3074, 127
        %v3078 = vpop.permute.xlu0 %3077
        %v3081 = vadd.f32 %v3060, %v3076
        %v3082 = vadd.f32 %v3061, %v3078
        %s3083 = sld [smem:[#allocation8 + $0x5]]
        %v3084 = vstv %s3083
        %v3085 = vmul.f32 %v3008, %v3084
        %v3086 = vmul.f32 %v3009, %v3084
        %v3087 = vmul.f32 %v3010, %v3084
        %v3091 = vrot.slane %v3085, 1
        %v3092 = vrot.slane %v3086, 1
        %v3093 = vsel %vm372, %v3091, %v3092
        %v3094 = vrot.slane %v3087, 1
        %v3095 = vsel %vm372, %v3092, %v3094
        %3096 = vrot.lane.b32.xlu0 %v3093, 126
        %v3097 = vpop.permute.xlu0 %3096
        %3098 = vrot.lane.b32.xlu0 %v3095, 126
        %v3099 = vpop.permute.xlu0 %3098
        %v3102 = vadd.f32 %v3081, %v3097
        %v3103 = vadd.f32 %v3082, %v3099
        %s3104 = sld [smem:[#allocation8 + $0x6]]
        %v3105 = vstv %s3104
        %v3106 = vmul.f32 %v3008, %v3105
        %v3107 = vmul.f32 %v3009, %v3105
        %v3108 = vmul.f32 %v3010, %v3105
        %v3112 = vrot.slane %v3106, 2
        %v3113 = vrot.slane %v3107, 2
        %v3114 = vsel %vm432, %v3112, %v3113
        %v3115 = vrot.slane %v3108, 2
        %v3116 = vsel %vm432, %v3113, %v3115
        %v3119 = vadd.f32 %v3102, %v3114
        %v3120 = vadd.f32 %v3103, %v3116
        %s3121 = sld [smem:[#allocation8 + $0x7]]
        %v3122 = vstv %s3121
        %v3123 = vmul.f32 %v3008, %v3122
        %v3124 = vmul.f32 %v3009, %v3122
        %v3125 = vmul.f32 %v3010, %v3122
        %v3129 = vrot.slane %v3123, 2
        %v3130 = vrot.slane %v3124, 2
        %v3131 = vsel %vm432, %v3129, %v3130
        %v3132 = vrot.slane %v3125, 2
        %v3133 = vsel %vm432, %v3130, %v3132
        %3134 = vrot.lane.b32.xlu0 %v3131, 127
        %v3135 = vpop.permute.xlu0 %3134
        %3136 = vrot.lane.b32.xlu0 %v3133, 127
        %v3137 = vpop.permute.xlu0 %3136
        %v3140 = vadd.f32 %v3119, %v3135
        %v3141 = vadd.f32 %v3120, %v3137
        %s3142 = sld [smem:[#allocation8 + $0x8]]
        %v3143 = vstv %s3142
        %v3144 = vmul.f32 %v3008, %v3143
        %v3145 = vmul.f32 %v3009, %v3143
        %v3146 = vmul.f32 %v3010, %v3143
        %v3150 = vrot.slane %v3144, 2
        %v3151 = vrot.slane %v3145, 2
        %v3152 = vsel %vm432, %v3150, %v3151
        %v3153 = vrot.slane %v3146, 2
        %v3154 = vsel %vm432, %v3151, %v3153
        %3155 = vrot.lane.b32.xlu0 %v3152, 126
        %v3156 = vpop.permute.xlu0 %3155
        %3157 = vrot.lane.b32.xlu0 %v3154, 126
        %v3158 = vpop.permute.xlu0 %3157
        %v3161 = vadd.f32 %v3140, %v3156
        %v3162 = vadd.f32 %v3141, %v3158
        %v3163 = vld [vmem:[%s310] sm:$0xff]
        %v3164 = vld [vmem:[%s310 + $0x8] sm:$0xff]
        %v3165 = vld [vmem:[%s310 + $0x10] sm:$0x3]
        %s3166 = sld [smem:[#allocation8 + $0x9]]
        %v3167 = vstv %s3166
        %v3168 = vmul.f32 %v3163, %v3167
        %v3169 = vmul.f32 %v3164, %v3167
        %v3170 = vadd.f32 %v3161, %v3168
        %v3171 = vadd.f32 %v3162, %v3169
        %s3172 = sld [smem:[#allocation8 + $0xa]]
        %v3173 = vstv %s3172
        %v3174 = vmul.f32 %v3163, %v3173
        %v3175 = vmul.f32 %v3164, %v3173
        %3178 = vrot.lane.b32.xlu0 %v3174, 127
        %v3179 = vpop.permute.xlu0 %3178
        %3180 = vrot.lane.b32.xlu0 %v3175, 127
        %v3181 = vpop.permute.xlu0 %3180
        %v3184 = vadd.f32 %v3170, %v3179
        %v3185 = vadd.f32 %v3171, %v3181
        %s3186 = sld [smem:[#allocation8 + $0xb]]
        %v3187 = vstv %s3186
        %v3188 = vmul.f32 %v3163, %v3187
        %v3189 = vmul.f32 %v3164, %v3187
        %3192 = vrot.lane.b32.xlu0 %v3188, 126
        %v3193 = vpop.permute.xlu0 %3192
        %3194 = vrot.lane.b32.xlu0 %v3189, 126
        %v3195 = vpop.permute.xlu0 %3194
        %v3198 = vadd.f32 %v3184, %v3193
        %v3199 = vadd.f32 %v3185, %v3195
        %s3200 = sld [smem:[#allocation8 + $0xc]]
        %v3201 = vstv %s3200
        %v3202 = vmul.f32 %v3163, %v3201
        %v3203 = vmul.f32 %v3164, %v3201
        %v3204 = vmul.f32 %v3165, %v3201
        %v3208 = vrot.slane %v3202, 1
        %v3209 = vrot.slane %v3203, 1
        %v3210 = vsel %vm372, %v3208, %v3209
        %v3211 = vrot.slane %v3204, 1
        %v3212 = vsel %vm372, %v3209, %v3211
        %v3215 = vadd.f32 %v3198, %v3210
        %v3216 = vadd.f32 %v3199, %v3212
        %s3217 = sld [smem:[#allocation8 + $0xd]]
        %v3218 = vstv %s3217
        %v3219 = vmul.f32 %v3163, %v3218
        %v3220 = vmul.f32 %v3164, %v3218
        %v3221 = vmul.f32 %v3165, %v3218
        %v3225 = vrot.slane %v3219, 1
        %v3226 = vrot.slane %v3220, 1
        %v3227 = vsel %vm372, %v3225, %v3226
        %v3228 = vrot.slane %v3221, 1
        %v3229 = vsel %vm372, %v3226, %v3228
        %3230 = vrot.lane.b32.xlu0 %v3227, 127
        %v3231 = vpop.permute.xlu0 %3230
        %3232 = vrot.lane.b32.xlu0 %v3229, 127
        %v3233 = vpop.permute.xlu0 %3232
        %v3236 = vadd.f32 %v3215, %v3231
        %v3237 = vadd.f32 %v3216, %v3233
        %s3238 = sld [smem:[#allocation8 + $0xe]]
        %v3239 = vstv %s3238
        %v3240 = vmul.f32 %v3163, %v3239
        %v3241 = vmul.f32 %v3164, %v3239
        %v3242 = vmul.f32 %v3165, %v3239
        %v3246 = vrot.slane %v3240, 1
        %v3247 = vrot.slane %v3241, 1
        %v3248 = vsel %vm372, %v3246, %v3247
        %v3249 = vrot.slane %v3242, 1
        %v3250 = vsel %vm372, %v3247, %v3249
        %3251 = vrot.lane.b32.xlu0 %v3248, 126
        %v3252 = vpop.permute.xlu0 %3251
        %3253 = vrot.lane.b32.xlu0 %v3250, 126
        %v3254 = vpop.permute.xlu0 %3253
        %v3257 = vadd.f32 %v3236, %v3252
        %v3258 = vadd.f32 %v3237, %v3254
        %s3259 = sld [smem:[#allocation8 + $0xf]]
        %v3260 = vstv %s3259
        %v3261 = vmul.f32 %v3163, %v3260
        %v3262 = vmul.f32 %v3164, %v3260
        %v3263 = vmul.f32 %v3165, %v3260
        %v3267 = vrot.slane %v3261, 2
        %v3268 = vrot.slane %v3262, 2
        %v3269 = vsel %vm432, %v3267, %v3268
        %v3270 = vrot.slane %v3263, 2
        %v3271 = vsel %vm432, %v3268, %v3270
        %v3274 = vadd.f32 %v3257, %v3269
        %v3275 = vadd.f32 %v3258, %v3271
        %s3276 = sld [smem:[#allocation8 + $0x10]]
        %v3277 = vstv %s3276
        %v3278 = vmul.f32 %v3163, %v3277
        %v3279 = vmul.f32 %v3164, %v3277
        %v3280 = vmul.f32 %v3165, %v3277
        %v3284 = vrot.slane %v3278, 2
        %v3285 = vrot.slane %v3279, 2
        %v3286 = vsel %vm432, %v3284, %v3285
        %v3287 = vrot.slane %v3280, 2
        %v3288 = vsel %vm432, %v3285, %v3287
        %3289 = vrot.lane.b32.xlu0 %v3286, 127
        %v3290 = vpop.permute.xlu0 %3289
        %3291 = vrot.lane.b32.xlu0 %v3288, 127
        %v3292 = vpop.permute.xlu0 %3291
        %v3295 = vadd.f32 %v3274, %v3290
        %v3296 = vadd.f32 %v3275, %v3292
        %s3297 = sld [smem:[#allocation8 + $0x11]]
        %v3298 = vstv %s3297
        %v3299 = vmul.f32 %v3163, %v3298
        %v3300 = vmul.f32 %v3164, %v3298
        %v3301 = vmul.f32 %v3165, %v3298
        %v3305 = vrot.slane %v3299, 2
        %v3306 = vrot.slane %v3300, 2
        %v3307 = vsel %vm432, %v3305, %v3306
        %v3308 = vrot.slane %v3301, 2
        %v3309 = vsel %vm432, %v3306, %v3308
        %3310 = vrot.lane.b32.xlu0 %v3307, 126
        %v3311 = vpop.permute.xlu0 %3310
        %3312 = vrot.lane.b32.xlu0 %v3309, 126
        %v3313 = vpop.permute.xlu0 %3312
        %v3316 = vadd.f32 %v3295, %v3311
        %v3317 = vadd.f32 %v3296, %v3313
        %v3318 = vld [vmem:[%s324] sm:$0xff]
        %v3319 = vld [vmem:[%s324 + $0x8] sm:$0xff]
        %v3320 = vld [vmem:[%s324 + $0x10] sm:$0x3]
        %s3321 = sld [smem:[#allocation8 + $0x12]]
        %v3322 = vstv %s3321
        %v3323 = vmul.f32 %v3318, %v3322
        %v3324 = vmul.f32 %v3319, %v3322
        %v3325 = vadd.f32 %v3316, %v3323
        %v3326 = vadd.f32 %v3317, %v3324
        %s3327 = sld [smem:[#allocation8 + $0x13]]
        %v3328 = vstv %s3327
        %v3329 = vmul.f32 %v3318, %v3328
        %v3330 = vmul.f32 %v3319, %v3328
        %3333 = vrot.lane.b32.xlu0 %v3329, 127
        %v3334 = vpop.permute.xlu0 %3333
        %3335 = vrot.lane.b32.xlu0 %v3330, 127
        %v3336 = vpop.permute.xlu0 %3335
        %v3339 = vadd.f32 %v3325, %v3334
        %v3340 = vadd.f32 %v3326, %v3336
        %s3341 = sld [smem:[#allocation8 + $0x14]]
        %v3342 = vstv %s3341
        %v3343 = vmul.f32 %v3318, %v3342
        %v3344 = vmul.f32 %v3319, %v3342
        %3347 = vrot.lane.b32.xlu0 %v3343, 126
        %v3348 = vpop.permute.xlu0 %3347
        %3349 = vrot.lane.b32.xlu0 %v3344, 126
        %v3350 = vpop.permute.xlu0 %3349
        %v3353 = vadd.f32 %v3339, %v3348
        %v3354 = vadd.f32 %v3340, %v3350
        %s3355 = sld [smem:[#allocation8 + $0x15]]
        %v3356 = vstv %s3355
        %v3357 = vmul.f32 %v3318, %v3356
        %v3358 = vmul.f32 %v3319, %v3356
        %v3359 = vmul.f32 %v3320, %v3356
        %v3363 = vrot.slane %v3357, 1
        %v3364 = vrot.slane %v3358, 1
        %v3365 = vsel %vm372, %v3363, %v3364
        %v3366 = vrot.slane %v3359, 1
        %v3367 = vsel %vm372, %v3364, %v3366
        %v3370 = vadd.f32 %v3353, %v3365
        %v3371 = vadd.f32 %v3354, %v3367
        %s3372 = sld [smem:[#allocation8 + $0x16]]
        %v3373 = vstv %s3372
        %v3374 = vmul.f32 %v3318, %v3373
        %v3375 = vmul.f32 %v3319, %v3373
        %v3376 = vmul.f32 %v3320, %v3373
        %v3380 = vrot.slane %v3374, 1
        %v3381 = vrot.slane %v3375, 1
        %v3382 = vsel %vm372, %v3380, %v3381
        %v3383 = vrot.slane %v3376, 1
        %v3384 = vsel %vm372, %v3381, %v3383
        %3385 = vrot.lane.b32.xlu0 %v3382, 127
        %v3386 = vpop.permute.xlu0 %3385
        %3387 = vrot.lane.b32.xlu0 %v3384, 127
        %v3388 = vpop.permute.xlu0 %3387
        %v3391 = vadd.f32 %v3370, %v3386
        %v3392 = vadd.f32 %v3371, %v3388
        %s3393 = sld [smem:[#allocation8 + $0x17]]
        %v3394 = vstv %s3393
        %v3395 = vmul.f32 %v3318, %v3394
        %v3396 = vmul.f32 %v3319, %v3394
        %v3397 = vmul.f32 %v3320, %v3394
        %v3401 = vrot.slane %v3395, 1
        %v3402 = vrot.slane %v3396, 1
        %v3403 = vsel %vm372, %v3401, %v3402
        %v3404 = vrot.slane %v3397, 1
        %v3405 = vsel %vm372, %v3402, %v3404
        %3406 = vrot.lane.b32.xlu0 %v3403, 126
        %v3407 = vpop.permute.xlu0 %3406
        %3408 = vrot.lane.b32.xlu0 %v3405, 126
        %v3409 = vpop.permute.xlu0 %3408
        %v3412 = vadd.f32 %v3391, %v3407
        %v3413 = vadd.f32 %v3392, %v3409
        %s3414 = sld [smem:[#allocation8 + $0x18]]
        %v3415 = vstv %s3414
        %v3416 = vmul.f32 %v3318, %v3415
        %v3417 = vmul.f32 %v3319, %v3415
        %v3418 = vmul.f32 %v3320, %v3415
        %v3422 = vrot.slane %v3416, 2
        %v3423 = vrot.slane %v3417, 2
        %v3424 = vsel %vm432, %v3422, %v3423
        %v3425 = vrot.slane %v3418, 2
        %v3426 = vsel %vm432, %v3423, %v3425
        %v3429 = vadd.f32 %v3412, %v3424
        %v3430 = vadd.f32 %v3413, %v3426
        %s3431 = sld [smem:[#allocation8 + $0x19]]
        %v3432 = vstv %s3431
        %v3433 = vmul.f32 %v3318, %v3432
        %v3434 = vmul.f32 %v3319, %v3432
        %v3435 = vmul.f32 %v3320, %v3432
        %v3439 = vrot.slane %v3433, 2
        %v3440 = vrot.slane %v3434, 2
        %v3441 = vsel %vm432, %v3439, %v3440
        %v3442 = vrot.slane %v3435, 2
        %v3443 = vsel %vm432, %v3440, %v3442
        %3444 = vrot.lane.b32.xlu0 %v3441, 127
        %v3445 = vpop.permute.xlu0 %3444
        %3446 = vrot.lane.b32.xlu0 %v3443, 127
        %v3447 = vpop.permute.xlu0 %3446
        %v3450 = vadd.f32 %v3429, %v3445
        %v3451 = vadd.f32 %v3430, %v3447
        %s3452 = sld [smem:[#allocation8 + $0x1a]]
        %v3453 = vstv %s3452
        %v3454 = vmul.f32 %v3318, %v3453
        %v3455 = vmul.f32 %v3319, %v3453
        %v3456 = vmul.f32 %v3320, %v3453
        %v3460 = vrot.slane %v3454, 2
        %v3461 = vrot.slane %v3455, 2
        %v3462 = vsel %vm432, %v3460, %v3461
        %v3463 = vrot.slane %v3456, 2
        %v3464 = vsel %vm432, %v3461, %v3463
        %3465 = vrot.lane.b32.xlu0 %v3462, 126
        %v3466 = vpop.permute.xlu0 %3465
        %3467 = vrot.lane.b32.xlu0 %v3464, 126
        %v3468 = vpop.permute.xlu0 %3467
        %v3471 = vadd.f32 %v3450, %v3466
        %v3472 = vadd.f32 %v3451, %v3468
        %s3473 = sld [smem:[#allocation9]]
        %v3474 = vstv %s3473
        %v3475 = vadd.f32 %v3471, %v3474
        %v3476 = vadd.f32 %v3472, %v3474
        %vm3477 = vcmask 130048
        %3478 = vst.msk [vmem:[%s269] sm:$0xff] %vm3477, %v3475
        %3479 = vst.msk [vmem:[%s269 + $0x8] sm:$0xff] %vm3477, %v3476
        %v3480 = vld [vmem:[#allocation2] sm:$0xff]
        %v3481 = vld [vmem:[#allocation2 + $0x8] sm:$0xff]
        %v3482 = vld [vmem:[#allocation2 + $0x10] sm:$0x3]
        %s3483 = sld [smem:[#allocation8 + $0x1b]]
        %v3484 = vstv %s3483
        %v3485 = vmul.f32 %v3480, %v3484
        %v3486 = vmul.f32 %v3481, %v3484
        %v3487 = vadd.f32 %v3485, 0.0
        %v3488 = vadd.f32 %v3486, 0.0
        %s3489 = sld [smem:[#allocation8 + $0x1c]]
        %v3490 = vstv %s3489
        %v3491 = vmul.f32 %v3480, %v3490
        %v3492 = vmul.f32 %v3481, %v3490
        %3495 = vrot.lane.b32.xlu0 %v3491, 127
        %v3496 = vpop.permute.xlu0 %3495
        %3497 = vrot.lane.b32.xlu0 %v3492, 127
        %v3498 = vpop.permute.xlu0 %3497
        %v3501 = vadd.f32 %v3487, %v3496
        %v3502 = vadd.f32 %v3488, %v3498
        %s3503 = sld [smem:[#allocation8 + $0x1d]]
        %v3504 = vstv %s3503
        %v3505 = vmul.f32 %v3480, %v3504
        %v3506 = vmul.f32 %v3481, %v3504
        %3509 = vrot.lane.b32.xlu0 %v3505, 126
        %v3510 = vpop.permute.xlu0 %3509
        %3511 = vrot.lane.b32.xlu0 %v3506, 126
        %v3512 = vpop.permute.xlu0 %3511
        %v3515 = vadd.f32 %v3501, %v3510
        %v3516 = vadd.f32 %v3502, %v3512
        %s3517 = sld [smem:[#allocation8 + $0x1e]]
        %v3518 = vstv %s3517
        %v3519 = vmul.f32 %v3480, %v3518
        %v3520 = vmul.f32 %v3481, %v3518
        %v3521 = vmul.f32 %v3482, %v3518
        %v3525 = vrot.slane %v3519, 1
        %v3526 = vrot.slane %v3520, 1
        %v3527 = vsel %vm372, %v3525, %v3526
        %v3528 = vrot.slane %v3521, 1
        %v3529 = vsel %vm372, %v3526, %v3528
        %v3532 = vadd.f32 %v3515, %v3527
        %v3533 = vadd.f32 %v3516, %v3529
        %s3534 = sld [smem:[#allocation8 + $0x1f]]
        %v3535 = vstv %s3534
        %v3536 = vmul.f32 %v3480, %v3535
        %v3537 = vmul.f32 %v3481, %v3535
        %v3538 = vmul.f32 %v3482, %v3535
        %v3542 = vrot.slane %v3536, 1
        %v3543 = vrot.slane %v3537, 1
        %v3544 = vsel %vm372, %v3542, %v3543
        %v3545 = vrot.slane %v3538, 1
        %v3546 = vsel %vm372, %v3543, %v3545
        %3547 = vrot.lane.b32.xlu0 %v3544, 127
        %v3548 = vpop.permute.xlu0 %3547
        %3549 = vrot.lane.b32.xlu0 %v3546, 127
        %v3550 = vpop.permute.xlu0 %3549
        %v3553 = vadd.f32 %v3532, %v3548
        %v3554 = vadd.f32 %v3533, %v3550
        %s3555 = sld [smem:[#allocation8 + $0x20]]
        %v3556 = vstv %s3555
        %v3557 = vmul.f32 %v3480, %v3556
        %v3558 = vmul.f32 %v3481, %v3556
        %v3559 = vmul.f32 %v3482, %v3556
        %v3563 = vrot.slane %v3557, 1
        %v3564 = vrot.slane %v3558, 1
        %v3565 = vsel %vm372, %v3563, %v3564
        %v3566 = vrot.slane %v3559, 1
        %v3567 = vsel %vm372, %v3564, %v3566
        %3568 = vrot.lane.b32.xlu0 %v3565, 126
        %v3569 = vpop.permute.xlu0 %3568
        %3570 = vrot.lane.b32.xlu0 %v3567, 126
        %v3571 = vpop.permute.xlu0 %3570
        %v3574 = vadd.f32 %v3553, %v3569
        %v3575 = vadd.f32 %v3554, %v3571
        %s3576 = sld [smem:[#allocation8 + $0x21]]
        %v3577 = vstv %s3576
        %v3578 = vmul.f32 %v3480, %v3577
        %v3579 = vmul.f32 %v3481, %v3577
        %v3580 = vmul.f32 %v3482, %v3577
        %v3584 = vrot.slane %v3578, 2
        %v3585 = vrot.slane %v3579, 2
        %v3586 = vsel %vm432, %v3584, %v3585
        %v3587 = vrot.slane %v3580, 2
        %v3588 = vsel %vm432, %v3585, %v3587
        %v3591 = vadd.f32 %v3574, %v3586
        %v3592 = vadd.f32 %v3575, %v3588
        %s3593 = sld [smem:[#allocation8 + $0x22]]
        %v3594 = vstv %s3593
        %v3595 = vmul.f32 %v3480, %v3594
        %v3596 = vmul.f32 %v3481, %v3594
        %v3597 = vmul.f32 %v3482, %v3594
        %v3601 = vrot.slane %v3595, 2
        %v3602 = vrot.slane %v3596, 2
        %v3603 = vsel %vm432, %v3601, %v3602
        %v3604 = vrot.slane %v3597, 2
        %v3605 = vsel %vm432, %v3602, %v3604
        %3606 = vrot.lane.b32.xlu0 %v3603, 127
        %v3607 = vpop.permute.xlu0 %3606
        %3608 = vrot.lane.b32.xlu0 %v3605, 127
        %v3609 = vpop.permute.xlu0 %3608
        %v3612 = vadd.f32 %v3591, %v3607
        %v3613 = vadd.f32 %v3592, %v3609
        %s3614 = sld [smem:[#allocation8 + $0x23]]
        %v3615 = vstv %s3614
        %v3616 = vmul.f32 %v3480, %v3615
        %v3617 = vmul.f32 %v3481, %v3615
        %v3618 = vmul.f32 %v3482, %v3615
        %v3622 = vrot.slane %v3616, 2
        %v3623 = vrot.slane %v3617, 2
        %v3624 = vsel %vm432, %v3622, %v3623
        %v3625 = vrot.slane %v3618, 2
        %v3626 = vsel %vm432, %v3623, %v3625
        %3627 = vrot.lane.b32.xlu0 %v3624, 126
        %v3628 = vpop.permute.xlu0 %3627
        %3629 = vrot.lane.b32.xlu0 %v3626, 126
        %v3630 = vpop.permute.xlu0 %3629
        %v3633 = vadd.f32 %v3612, %v3628
        %v3634 = vadd.f32 %v3613, %v3630
        %v3635 = vld [vmem:[%s310] sm:$0xff]
        %v3636 = vld [vmem:[%s310 + $0x8] sm:$0xff]
        %v3637 = vld [vmem:[%s310 + $0x10] sm:$0x3]
        %s3638 = sld [smem:[#allocation8 + $0x24]]
        %v3639 = vstv %s3638
        %v3640 = vmul.f32 %v3635, %v3639
        %v3641 = vmul.f32 %v3636, %v3639
        %v3642 = vadd.f32 %v3633, %v3640
        %v3643 = vadd.f32 %v3634, %v3641
        %s3644 = sld [smem:[#allocation8 + $0x25]]
        %v3645 = vstv %s3644
        %v3646 = vmul.f32 %v3635, %v3645
        %v3647 = vmul.f32 %v3636, %v3645
        %3650 = vrot.lane.b32.xlu0 %v3646, 127
        %v3651 = vpop.permute.xlu0 %3650
        %3652 = vrot.lane.b32.xlu0 %v3647, 127
        %v3653 = vpop.permute.xlu0 %3652
        %v3656 = vadd.f32 %v3642, %v3651
        %v3657 = vadd.f32 %v3643, %v3653
        %s3658 = sld [smem:[#allocation8 + $0x26]]
        %v3659 = vstv %s3658
        %v3660 = vmul.f32 %v3635, %v3659
        %v3661 = vmul.f32 %v3636, %v3659
        %3664 = vrot.lane.b32.xlu0 %v3660, 126
        %v3665 = vpop.permute.xlu0 %3664
        %3666 = vrot.lane.b32.xlu0 %v3661, 126
        %v3667 = vpop.permute.xlu0 %3666
        %v3670 = vadd.f32 %v3656, %v3665
        %v3671 = vadd.f32 %v3657, %v3667
        %s3672 = sld [smem:[#allocation8 + $0x27]]
        %v3673 = vstv %s3672
        %v3674 = vmul.f32 %v3635, %v3673
        %v3675 = vmul.f32 %v3636, %v3673
        %v3676 = vmul.f32 %v3637, %v3673
        %v3680 = vrot.slane %v3674, 1
        %v3681 = vrot.slane %v3675, 1
        %v3682 = vsel %vm372, %v3680, %v3681
        %v3683 = vrot.slane %v3676, 1
        %v3684 = vsel %vm372, %v3681, %v3683
        %v3687 = vadd.f32 %v3670, %v3682
        %v3688 = vadd.f32 %v3671, %v3684
        %s3689 = sld [smem:[#allocation8 + $0x28]]
        %v3690 = vstv %s3689
        %v3691 = vmul.f32 %v3635, %v3690
        %v3692 = vmul.f32 %v3636, %v3690
        %v3693 = vmul.f32 %v3637, %v3690
        %v3697 = vrot.slane %v3691, 1
        %v3698 = vrot.slane %v3692, 1
        %v3699 = vsel %vm372, %v3697, %v3698
        %v3700 = vrot.slane %v3693, 1
        %v3701 = vsel %vm372, %v3698, %v3700
        %3702 = vrot.lane.b32.xlu0 %v3699, 127
        %v3703 = vpop.permute.xlu0 %3702
        %3704 = vrot.lane.b32.xlu0 %v3701, 127
        %v3705 = vpop.permute.xlu0 %3704
        %v3708 = vadd.f32 %v3687, %v3703
        %v3709 = vadd.f32 %v3688, %v3705
        %s3710 = sld [smem:[#allocation8 + $0x29]]
        %v3711 = vstv %s3710
        %v3712 = vmul.f32 %v3635, %v3711
        %v3713 = vmul.f32 %v3636, %v3711
        %v3714 = vmul.f32 %v3637, %v3711
        %v3718 = vrot.slane %v3712, 1
        %v3719 = vrot.slane %v3713, 1
        %v3720 = vsel %vm372, %v3718, %v3719
        %v3721 = vrot.slane %v3714, 1
        %v3722 = vsel %vm372, %v3719, %v3721
        %3723 = vrot.lane.b32.xlu0 %v3720, 126
        %v3724 = vpop.permute.xlu0 %3723
        %3725 = vrot.lane.b32.xlu0 %v3722, 126
        %v3726 = vpop.permute.xlu0 %3725
        %v3729 = vadd.f32 %v3708, %v3724
        %v3730 = vadd.f32 %v3709, %v3726
        %s3731 = sld [smem:[#allocation8 + $0x2a]]
        %v3732 = vstv %s3731
        %v3733 = vmul.f32 %v3635, %v3732
        %v3734 = vmul.f32 %v3636, %v3732
        %v3735 = vmul.f32 %v3637, %v3732
        %v3739 = vrot.slane %v3733, 2
        %v3740 = vrot.slane %v3734, 2
        %v3741 = vsel %vm432, %v3739, %v3740
        %v3742 = vrot.slane %v3735, 2
        %v3743 = vsel %vm432, %v3740, %v3742
        %v3746 = vadd.f32 %v3729, %v3741
        %v3747 = vadd.f32 %v3730, %v3743
        %s3748 = sld [smem:[#allocation8 + $0x2b]]
        %v3749 = vstv %s3748
        %v3750 = vmul.f32 %v3635, %v3749
        %v3751 = vmul.f32 %v3636, %v3749
        %v3752 = vmul.f32 %v3637, %v3749
        %v3756 = vrot.slane %v3750, 2
        %v3757 = vrot.slane %v3751, 2
        %v3758 = vsel %vm432, %v3756, %v3757
        %v3759 = vrot.slane %v3752, 2
        %v3760 = vsel %vm432, %v3757, %v3759
        %3761 = vrot.lane.b32.xlu0 %v3758, 127
        %v3762 = vpop.permute.xlu0 %3761
        %3763 = vrot.lane.b32.xlu0 %v3760, 127
        %v3764 = vpop.permute.xlu0 %3763
        %v3767 = vadd.f32 %v3746, %v3762
        %v3768 = vadd.f32 %v3747, %v3764
        %s3769 = sld [smem:[#allocation8 + $0x2c]]
        %v3770 = vstv %s3769
        %v3771 = vmul.f32 %v3635, %v3770
        %v3772 = vmul.f32 %v3636, %v3770
        %v3773 = vmul.f32 %v3637, %v3770
        %v3777 = vrot.slane %v3771, 2
        %v3778 = vrot.slane %v3772, 2
        %v3779 = vsel %vm432, %v3777, %v3778
        %v3780 = vrot.slane %v3773, 2
        %v3781 = vsel %vm432, %v3778, %v3780
        %3782 = vrot.lane.b32.xlu0 %v3779, 126
        %v3783 = vpop.permute.xlu0 %3782
        %3784 = vrot.lane.b32.xlu0 %v3781, 126
        %v3785 = vpop.permute.xlu0 %3784
        %v3788 = vadd.f32 %v3767, %v3783
        %v3789 = vadd.f32 %v3768, %v3785
        %v3790 = vld [vmem:[%s324] sm:$0xff]
        %v3791 = vld [vmem:[%s324 + $0x8] sm:$0xff]
        %v3792 = vld [vmem:[%s324 + $0x10] sm:$0x3]
        %s3793 = sld [smem:[#allocation8 + $0x2d]]
        %v3794 = vstv %s3793
        %v3795 = vmul.f32 %v3790, %v3794
        %v3796 = vmul.f32 %v3791, %v3794
        %v3797 = vadd.f32 %v3788, %v3795
        %v3798 = vadd.f32 %v3789, %v3796
        %s3799 = sld [smem:[#allocation8 + $0x2e]]
        %v3800 = vstv %s3799
        %v3801 = vmul.f32 %v3790, %v3800
        %v3802 = vmul.f32 %v3791, %v3800
        %3805 = vrot.lane.b32.xlu0 %v3801, 127
        %v3806 = vpop.permute.xlu0 %3805
        %3807 = vrot.lane.b32.xlu0 %v3802, 127
        %v3808 = vpop.permute.xlu0 %3807
        %v3811 = vadd.f32 %v3797, %v3806
        %v3812 = vadd.f32 %v3798, %v3808
        %s3813 = sld [smem:[#allocation8 + $0x2f]]
        %v3814 = vstv %s3813
        %v3815 = vmul.f32 %v3790, %v3814
        %v3816 = vmul.f32 %v3791, %v3814
        %3819 = vrot.lane.b32.xlu0 %v3815, 126
        %v3820 = vpop.permute.xlu0 %3819
        %3821 = vrot.lane.b32.xlu0 %v3816, 126
        %v3822 = vpop.permute.xlu0 %3821
        %v3825 = vadd.f32 %v3811, %v3820
        %v3826 = vadd.f32 %v3812, %v3822
        %s3827 = sld [smem:[#allocation8 + $0x30]]
        %v3828 = vstv %s3827
        %v3829 = vmul.f32 %v3790, %v3828
        %v3830 = vmul.f32 %v3791, %v3828
        %v3831 = vmul.f32 %v3792, %v3828
        %v3835 = vrot.slane %v3829, 1
        %v3836 = vrot.slane %v3830, 1
        %v3837 = vsel %vm372, %v3835, %v3836
        %v3838 = vrot.slane %v3831, 1
        %v3839 = vsel %vm372, %v3836, %v3838
        %v3842 = vadd.f32 %v3825, %v3837
        %v3843 = vadd.f32 %v3826, %v3839
        %s3844 = sld [smem:[#allocation8 + $0x31]]
        %v3845 = vstv %s3844
        %v3846 = vmul.f32 %v3790, %v3845
        %v3847 = vmul.f32 %v3791, %v3845
        %v3848 = vmul.f32 %v3792, %v3845
        %v3852 = vrot.slane %v3846, 1
        %v3853 = vrot.slane %v3847, 1
        %v3854 = vsel %vm372, %v3852, %v3853
        %v3855 = vrot.slane %v3848, 1
        %v3856 = vsel %vm372, %v3853, %v3855
        %3857 = vrot.lane.b32.xlu0 %v3854, 127
        %v3858 = vpop.permute.xlu0 %3857
        %3859 = vrot.lane.b32.xlu0 %v3856, 127
        %v3860 = vpop.permute.xlu0 %3859
        %v3863 = vadd.f32 %v3842, %v3858
        %v3864 = vadd.f32 %v3843, %v3860
        %s3865 = sld [smem:[#allocation8 + $0x32]]
        %v3866 = vstv %s3865
        %v3867 = vmul.f32 %v3790, %v3866
        %v3868 = vmul.f32 %v3791, %v3866
        %v3869 = vmul.f32 %v3792, %v3866
        %v3873 = vrot.slane %v3867, 1
        %v3874 = vrot.slane %v3868, 1
        %v3875 = vsel %vm372, %v3873, %v3874
        %v3876 = vrot.slane %v3869, 1
        %v3877 = vsel %vm372, %v3874, %v3876
        %3878 = vrot.lane.b32.xlu0 %v3875, 126
        %v3879 = vpop.permute.xlu0 %3878
        %3880 = vrot.lane.b32.xlu0 %v3877, 126
        %v3881 = vpop.permute.xlu0 %3880
        %v3884 = vadd.f32 %v3863, %v3879
        %v3885 = vadd.f32 %v3864, %v3881
        %s3886 = sld [smem:[#allocation8 + $0x33]]
        %v3887 = vstv %s3886
        %v3888 = vmul.f32 %v3790, %v3887
        %v3889 = vmul.f32 %v3791, %v3887
        %v3890 = vmul.f32 %v3792, %v3887
        %v3894 = vrot.slane %v3888, 2
        %v3895 = vrot.slane %v3889, 2
        %v3896 = vsel %vm432, %v3894, %v3895
        %v3897 = vrot.slane %v3890, 2
        %v3898 = vsel %vm432, %v3895, %v3897
        %v3901 = vadd.f32 %v3884, %v3896
        %v3902 = vadd.f32 %v3885, %v3898
        %s3903 = sld [smem:[#allocation8 + $0x34]]
        %v3904 = vstv %s3903
        %v3905 = vmul.f32 %v3790, %v3904
        %v3906 = vmul.f32 %v3791, %v3904
        %v3907 = vmul.f32 %v3792, %v3904
        %v3911 = vrot.slane %v3905, 2
        %v3912 = vrot.slane %v3906, 2
        %v3913 = vsel %vm432, %v3911, %v3912
        %v3914 = vrot.slane %v3907, 2
        %v3915 = vsel %vm432, %v3912, %v3914
        %3916 = vrot.lane.b32.xlu0 %v3913, 127
        %v3917 = vpop.permute.xlu0 %3916
        %3918 = vrot.lane.b32.xlu0 %v3915, 127
        %v3919 = vpop.permute.xlu0 %3918
        %v3922 = vadd.f32 %v3901, %v3917
        %v3923 = vadd.f32 %v3902, %v3919
        %s3924 = sld [smem:[#allocation8 + $0x35]]
        %v3925 = vstv %s3924
        %v3926 = vmul.f32 %v3790, %v3925
        %v3927 = vmul.f32 %v3791, %v3925
        %v3928 = vmul.f32 %v3792, %v3925
        %v3932 = vrot.slane %v3926, 2
        %v3933 = vrot.slane %v3927, 2
        %v3934 = vsel %vm432, %v3932, %v3933
        %v3935 = vrot.slane %v3928, 2
        %v3936 = vsel %vm432, %v3933, %v3935
        %3937 = vrot.lane.b32.xlu0 %v3934, 126
        %v3938 = vpop.permute.xlu0 %3937
        %3939 = vrot.lane.b32.xlu0 %v3936, 126
        %v3940 = vpop.permute.xlu0 %3939
        %v3943 = vadd.f32 %v3922, %v3938
        %v3944 = vadd.f32 %v3923, %v3940
        %s3945 = sld [smem:[#allocation9 + $0x1]]
        %v3946 = vstv %s3945
        %v3947 = vadd.f32 %v3943, %v3946
        %v3948 = vadd.f32 %v3944, %v3946
        %s3949 = scalar_lea.vmem %s269, 16 [#allocation11]
        %3950 = vst.msk [vmem:[%s3949] sm:$0xff] %vm3477, %v3947
        %3951 = vst.msk [vmem:[%s3949 + $0x8] sm:$0xff] %vm3477, %v3948
        %v3952 = vld [vmem:[#allocation2] sm:$0xff]
        %v3953 = vld [vmem:[#allocation2 + $0x8] sm:$0xff]
        %v3954 = vld [vmem:[#allocation2 + $0x10] sm:$0x3]
        %s3955 = sld [smem:[#allocation8 + $0x36]]
        %v3956 = vstv %s3955
        %v3957 = vmul.f32 %v3952, %v3956
        %v3958 = vmul.f32 %v3953, %v3956
        %v3959 = vadd.f32 %v3957, 0.0
        %v3960 = vadd.f32 %v3958, 0.0
        %s3961 = sld [smem:[#allocation8 + $0x37]]
        %v3962 = vstv %s3961
        %v3963 = vmul.f32 %v3952, %v3962
        %v3964 = vmul.f32 %v3953, %v3962
        %3967 = vrot.lane.b32.xlu0 %v3963, 127
        %v3968 = vpop.permute.xlu0 %3967
        %3969 = vrot.lane.b32.xlu0 %v3964, 127
        %v3970 = vpop.permute.xlu0 %3969
        %v3973 = vadd.f32 %v3959, %v3968
        %v3974 = vadd.f32 %v3960, %v3970
        %s3975 = sld [smem:[#allocation8 + $0x38]]
        %v3976 = vstv %s3975
        %v3977 = vmul.f32 %v3952, %v3976
        %v3978 = vmul.f32 %v3953, %v3976
        %3981 = vrot.lane.b32.xlu0 %v3977, 126
        %v3982 = vpop.permute.xlu0 %3981
        %3983 = vrot.lane.b32.xlu0 %v3978, 126
        %v3984 = vpop.permute.xlu0 %3983
        %v3987 = vadd.f32 %v3973, %v3982
        %v3988 = vadd.f32 %v3974, %v3984
        %s3989 = sld [smem:[#allocation8 + $0x39]]
        %v3990 = vstv %s3989
        %v3991 = vmul.f32 %v3952, %v3990
        %v3992 = vmul.f32 %v3953, %v3990
        %v3993 = vmul.f32 %v3954, %v3990
        %v3997 = vrot.slane %v3991, 1
        %v3998 = vrot.slane %v3992, 1
        %v3999 = vsel %vm372, %v3997, %v3998
        %v4000 = vrot.slane %v3993, 1
        %v4001 = vsel %vm372, %v3998, %v4000
        %v4004 = vadd.f32 %v3987, %v3999
        %v4005 = vadd.f32 %v3988, %v4001
        %s4006 = sld [smem:[#allocation8 + $0x3a]]
        %v4007 = vstv %s4006
        %v4008 = vmul.f32 %v3952, %v4007
        %v4009 = vmul.f32 %v3953, %v4007
        %v4010 = vmul.f32 %v3954, %v4007
        %v4014 = vrot.slane %v4008, 1
        %v4015 = vrot.slane %v4009, 1
        %v4016 = vsel %vm372, %v4014, %v4015
        %v4017 = vrot.slane %v4010, 1
        %v4018 = vsel %vm372, %v4015, %v4017
        %4019 = vrot.lane.b32.xlu0 %v4016, 127
        %v4020 = vpop.permute.xlu0 %4019
        %4021 = vrot.lane.b32.xlu0 %v4018, 127
        %v4022 = vpop.permute.xlu0 %4021
        %v4025 = vadd.f32 %v4004, %v4020
        %v4026 = vadd.f32 %v4005, %v4022
        %s4027 = sld [smem:[#allocation8 + $0x3b]]
        %v4028 = vstv %s4027
        %v4029 = vmul.f32 %v3952, %v4028
        %v4030 = vmul.f32 %v3953, %v4028
        %v4031 = vmul.f32 %v3954, %v4028
        %v4035 = vrot.slane %v4029, 1
        %v4036 = vrot.slane %v4030, 1
        %v4037 = vsel %vm372, %v4035, %v4036
        %v4038 = vrot.slane %v4031, 1
        %v4039 = vsel %vm372, %v4036, %v4038
        %4040 = vrot.lane.b32.xlu0 %v4037, 126
        %v4041 = vpop.permute.xlu0 %4040
        %4042 = vrot.lane.b32.xlu0 %v4039, 126
        %v4043 = vpop.permute.xlu0 %4042
        %v4046 = vadd.f32 %v4025, %v4041
        %v4047 = vadd.f32 %v4026, %v4043
        %s4048 = sld [smem:[#allocation8 + $0x3c]]
        %v4049 = vstv %s4048
        %v4050 = vmul.f32 %v3952, %v4049
        %v4051 = vmul.f32 %v3953, %v4049
        %v4052 = vmul.f32 %v3954, %v4049
        %v4056 = vrot.slane %v4050, 2
        %v4057 = vrot.slane %v4051, 2
        %v4058 = vsel %vm432, %v4056, %v4057
        %v4059 = vrot.slane %v4052, 2
        %v4060 = vsel %vm432, %v4057, %v4059
        %v4063 = vadd.f32 %v4046, %v4058
        %v4064 = vadd.f32 %v4047, %v4060
        %s4065 = sld [smem:[#allocation8 + $0x3d]]
        %v4066 = vstv %s4065
        %v4067 = vmul.f32 %v3952, %v4066
        %v4068 = vmul.f32 %v3953, %v4066
        %v4069 = vmul.f32 %v3954, %v4066
        %v4073 = vrot.slane %v4067, 2
        %v4074 = vrot.slane %v4068, 2
        %v4075 = vsel %vm432, %v4073, %v4074
        %v4076 = vrot.slane %v4069, 2
        %v4077 = vsel %vm432, %v4074, %v4076
        %4078 = vrot.lane.b32.xlu0 %v4075, 127
        %v4079 = vpop.permute.xlu0 %4078
        %4080 = vrot.lane.b32.xlu0 %v4077, 127
        %v4081 = vpop.permute.xlu0 %4080
        %v4084 = vadd.f32 %v4063, %v4079
        %v4085 = vadd.f32 %v4064, %v4081
        %s4086 = sld [smem:[#allocation8 + $0x3e]]
        %v4087 = vstv %s4086
        %v4088 = vmul.f32 %v3952, %v4087
        %v4089 = vmul.f32 %v3953, %v4087
        %v4090 = vmul.f32 %v3954, %v4087
        %v4094 = vrot.slane %v4088, 2
        %v4095 = vrot.slane %v4089, 2
        %v4096 = vsel %vm432, %v4094, %v4095
        %v4097 = vrot.slane %v4090, 2
        %v4098 = vsel %vm432, %v4095, %v4097
        %4099 = vrot.lane.b32.xlu0 %v4096, 126
        %v4100 = vpop.permute.xlu0 %4099
        %4101 = vrot.lane.b32.xlu0 %v4098, 126
        %v4102 = vpop.permute.xlu0 %4101
        %v4105 = vadd.f32 %v4084, %v4100
        %v4106 = vadd.f32 %v4085, %v4102
        %v4107 = vld [vmem:[%s310] sm:$0xff]
        %v4108 = vld [vmem:[%s310 + $0x8] sm:$0xff]
        %v4109 = vld [vmem:[%s310 + $0x10] sm:$0x3]
        %s4110 = sld [smem:[#allocation8 + $0x3f]]
        %v4111 = vstv %s4110
        %v4112 = vmul.f32 %v4107, %v4111
        %v4113 = vmul.f32 %v4108, %v4111
        %v4114 = vadd.f32 %v4105, %v4112
        %v4115 = vadd.f32 %v4106, %v4113
        %s4116 = sld [smem:[#allocation8 + $0x40]]
        %v4117 = vstv %s4116
        %v4118 = vmul.f32 %v4107, %v4117
        %v4119 = vmul.f32 %v4108, %v4117
        %4122 = vrot.lane.b32.xlu0 %v4118, 127
        %v4123 = vpop.permute.xlu0 %4122
        %4124 = vrot.lane.b32.xlu0 %v4119, 127
        %v4125 = vpop.permute.xlu0 %4124
        %v4128 = vadd.f32 %v4114, %v4123
        %v4129 = vadd.f32 %v4115, %v4125
        %s4130 = sld [smem:[#allocation8 + $0x41]]
        %v4131 = vstv %s4130
        %v4132 = vmul.f32 %v4107, %v4131
        %v4133 = vmul.f32 %v4108, %v4131
        %4136 = vrot.lane.b32.xlu0 %v4132, 126
        %v4137 = vpop.permute.xlu0 %4136
        %4138 = vrot.lane.b32.xlu0 %v4133, 126
        %v4139 = vpop.permute.xlu0 %4138
        %v4142 = vadd.f32 %v4128, %v4137
        %v4143 = vadd.f32 %v4129, %v4139
        %s4144 = sld [smem:[#allocation8 + $0x42]]
        %v4145 = vstv %s4144
        %v4146 = vmul.f32 %v4107, %v4145
        %v4147 = vmul.f32 %v4108, %v4145
        %v4148 = vmul.f32 %v4109, %v4145
        %v4152 = vrot.slane %v4146, 1
        %v4153 = vrot.slane %v4147, 1
        %v4154 = vsel %vm372, %v4152, %v4153
        %v4155 = vrot.slane %v4148, 1
        %v4156 = vsel %vm372, %v4153, %v4155
        %v4159 = vadd.f32 %v4142, %v4154
        %v4160 = vadd.f32 %v4143, %v4156
        %s4161 = sld [smem:[#allocation8 + $0x43]]
        %v4162 = vstv %s4161
        %v4163 = vmul.f32 %v4107, %v4162
        %v4164 = vmul.f32 %v4108, %v4162
        %v4165 = vmul.f32 %v4109, %v4162
        %v4169 = vrot.slane %v4163, 1
        %v4170 = vrot.slane %v4164, 1
        %v4171 = vsel %vm372, %v4169, %v4170
        %v4172 = vrot.slane %v4165, 1
        %v4173 = vsel %vm372, %v4170, %v4172
        %4174 = vrot.lane.b32.xlu0 %v4171, 127
        %v4175 = vpop.permute.xlu0 %4174
        %4176 = vrot.lane.b32.xlu0 %v4173, 127
        %v4177 = vpop.permute.xlu0 %4176
        %v4180 = vadd.f32 %v4159, %v4175
        %v4181 = vadd.f32 %v4160, %v4177
        %s4182 = sld [smem:[#allocation8 + $0x44]]
        %v4183 = vstv %s4182
        %v4184 = vmul.f32 %v4107, %v4183
        %v4185 = vmul.f32 %v4108, %v4183
        %v4186 = vmul.f32 %v4109, %v4183
        %v4190 = vrot.slane %v4184, 1
        %v4191 = vrot.slane %v4185, 1
        %v4192 = vsel %vm372, %v4190, %v4191
        %v4193 = vrot.slane %v4186, 1
        %v4194 = vsel %vm372, %v4191, %v4193
        %4195 = vrot.lane.b32.xlu0 %v4192, 126
        %v4196 = vpop.permute.xlu0 %4195
        %4197 = vrot.lane.b32.xlu0 %v4194, 126
        %v4198 = vpop.permute.xlu0 %4197
        %v4201 = vadd.f32 %v4180, %v4196
        %v4202 = vadd.f32 %v4181, %v4198
        %s4203 = sld [smem:[#allocation8 + $0x45]]
        %v4204 = vstv %s4203
        %v4205 = vmul.f32 %v4107, %v4204
        %v4206 = vmul.f32 %v4108, %v4204
        %v4207 = vmul.f32 %v4109, %v4204
        %v4211 = vrot.slane %v4205, 2
        %v4212 = vrot.slane %v4206, 2
        %v4213 = vsel %vm432, %v4211, %v4212
        %v4214 = vrot.slane %v4207, 2
        %v4215 = vsel %vm432, %v4212, %v4214
        %v4218 = vadd.f32 %v4201, %v4213
        %v4219 = vadd.f32 %v4202, %v4215
        %s4220 = sld [smem:[#allocation8 + $0x46]]
        %v4221 = vstv %s4220
        %v4222 = vmul.f32 %v4107, %v4221
        %v4223 = vmul.f32 %v4108, %v4221
        %v4224 = vmul.f32 %v4109, %v4221
        %v4228 = vrot.slane %v4222, 2
        %v4229 = vrot.slane %v4223, 2
        %v4230 = vsel %vm432, %v4228, %v4229
        %v4231 = vrot.slane %v4224, 2
        %v4232 = vsel %vm432, %v4229, %v4231
        %4233 = vrot.lane.b32.xlu0 %v4230, 127
        %v4234 = vpop.permute.xlu0 %4233
        %4235 = vrot.lane.b32.xlu0 %v4232, 127
        %v4236 = vpop.permute.xlu0 %4235
        %v4239 = vadd.f32 %v4218, %v4234
        %v4240 = vadd.f32 %v4219, %v4236
        %s4241 = sld [smem:[#allocation8 + $0x47]]
        %v4242 = vstv %s4241
        %v4243 = vmul.f32 %v4107, %v4242
        %v4244 = vmul.f32 %v4108, %v4242
        %v4245 = vmul.f32 %v4109, %v4242
        %v4249 = vrot.slane %v4243, 2
        %v4250 = vrot.slane %v4244, 2
        %v4251 = vsel %vm432, %v4249, %v4250
        %v4252 = vrot.slane %v4245, 2
        %v4253 = vsel %vm432, %v4250, %v4252
        %4254 = vrot.lane.b32.xlu0 %v4251, 126
        %v4255 = vpop.permute.xlu0 %4254
        %4256 = vrot.lane.b32.xlu0 %v4253, 126
        %v4257 = vpop.permute.xlu0 %4256
        %v4260 = vadd.f32 %v4239, %v4255
        %v4261 = vadd.f32 %v4240, %v4257
        %v4262 = vld [vmem:[%s324] sm:$0xff]
        %v4263 = vld [vmem:[%s324 + $0x8] sm:$0xff]
        %v4264 = vld [vmem:[%s324 + $0x10] sm:$0x3]
        %s4265 = sld [smem:[#allocation8 + $0x48]]
        %v4266 = vstv %s4265
        %v4267 = vmul.f32 %v4262, %v4266
        %v4268 = vmul.f32 %v4263, %v4266
        %v4269 = vadd.f32 %v4260, %v4267
        %v4270 = vadd.f32 %v4261, %v4268
        %s4271 = sld [smem:[#allocation8 + $0x49]]
        %v4272 = vstv %s4271
        %v4273 = vmul.f32 %v4262, %v4272
        %v4274 = vmul.f32 %v4263, %v4272
        %4277 = vrot.lane.b32.xlu0 %v4273, 127
        %v4278 = vpop.permute.xlu0 %4277
        %4279 = vrot.lane.b32.xlu0 %v4274, 127
        %v4280 = vpop.permute.xlu0 %4279
        %v4283 = vadd.f32 %v4269, %v4278
        %v4284 = vadd.f32 %v4270, %v4280
        %s4285 = sld [smem:[#allocation8 + $0x4a]]
        %v4286 = vstv %s4285
        %v4287 = vmul.f32 %v4262, %v4286
        %v4288 = vmul.f32 %v4263, %v4286
        %4291 = vrot.lane.b32.xlu0 %v4287, 126
        %v4292 = vpop.permute.xlu0 %4291
        %4293 = vrot.lane.b32.xlu0 %v4288, 126
        %v4294 = vpop.permute.xlu0 %4293
        %v4297 = vadd.f32 %v4283, %v4292
        %v4298 = vadd.f32 %v4284, %v4294
        %s4299 = sld [smem:[#allocation8 + $0x4b]]
        %v4300 = vstv %s4299
        %v4301 = vmul.f32 %v4262, %v4300
        %v4302 = vmul.f32 %v4263, %v4300
        %v4303 = vmul.f32 %v4264, %v4300
        %v4307 = vrot.slane %v4301, 1
        %v4308 = vrot.slane %v4302, 1
        %v4309 = vsel %vm372, %v4307, %v4308
        %v4310 = vrot.slane %v4303, 1
        %v4311 = vsel %vm372, %v4308, %v4310
        %v4314 = vadd.f32 %v4297, %v4309
        %v4315 = vadd.f32 %v4298, %v4311
        %s4316 = sld [smem:[#allocation8 + $0x4c]]
        %v4317 = vstv %s4316
        %v4318 = vmul.f32 %v4262, %v4317
        %v4319 = vmul.f32 %v4263, %v4317
        %v4320 = vmul.f32 %v4264, %v4317
        %v4324 = vrot.slane %v4318, 1
        %v4325 = vrot.slane %v4319, 1
        %v4326 = vsel %vm372, %v4324, %v4325
        %v4327 = vrot.slane %v4320, 1
        %v4328 = vsel %vm372, %v4325, %v4327
        %4329 = vrot.lane.b32.xlu0 %v4326, 127
        %v4330 = vpop.permute.xlu0 %4329
        %4331 = vrot.lane.b32.xlu0 %v4328, 127
        %v4332 = vpop.permute.xlu0 %4331
        %v4335 = vadd.f32 %v4314, %v4330
        %v4336 = vadd.f32 %v4315, %v4332
        %s4337 = sld [smem:[#allocation8 + $0x4d]]
        %v4338 = vstv %s4337
        %v4339 = vmul.f32 %v4262, %v4338
        %v4340 = vmul.f32 %v4263, %v4338
        %v4341 = vmul.f32 %v4264, %v4338
        %v4345 = vrot.slane %v4339, 1
        %v4346 = vrot.slane %v4340, 1
        %v4347 = vsel %vm372, %v4345, %v4346
        %v4348 = vrot.slane %v4341, 1
        %v4349 = vsel %vm372, %v4346, %v4348
        %4350 = vrot.lane.b32.xlu0 %v4347, 126
        %v4351 = vpop.permute.xlu0 %4350
        %4352 = vrot.lane.b32.xlu0 %v4349, 126
        %v4353 = vpop.permute.xlu0 %4352
        %v4356 = vadd.f32 %v4335, %v4351
        %v4357 = vadd.f32 %v4336, %v4353
        %s4358 = sld [smem:[#allocation8 + $0x4e]]
        %v4359 = vstv %s4358
        %v4360 = vmul.f32 %v4262, %v4359
        %v4361 = vmul.f32 %v4263, %v4359
        %v4362 = vmul.f32 %v4264, %v4359
        %v4366 = vrot.slane %v4360, 2
        %v4367 = vrot.slane %v4361, 2
        %v4368 = vsel %vm432, %v4366, %v4367
        %v4369 = vrot.slane %v4362, 2
        %v4370 = vsel %vm432, %v4367, %v4369
        %v4373 = vadd.f32 %v4356, %v4368
        %v4374 = vadd.f32 %v4357, %v4370
        %s4375 = sld [smem:[#allocation8 + $0x4f]]
        %v4376 = vstv %s4375
        %v4377 = vmul.f32 %v4262, %v4376
        %v4378 = vmul.f32 %v4263, %v4376
        %v4379 = vmul.f32 %v4264, %v4376
        %v4383 = vrot.slane %v4377, 2
        %v4384 = vrot.slane %v4378, 2
        %v4385 = vsel %vm432, %v4383, %v4384
        %v4386 = vrot.slane %v4379, 2
        %v4387 = vsel %vm432, %v4384, %v4386
        %4388 = vrot.lane.b32.xlu0 %v4385, 127
        %v4389 = vpop.permute.xlu0 %4388
        %4390 = vrot.lane.b32.xlu0 %v4387, 127
        %v4391 = vpop.permute.xlu0 %4390
        %v4394 = vadd.f32 %v4373, %v4389
        %v4395 = vadd.f32 %v4374, %v4391
        %s4396 = sld [smem:[#allocation8 + $0x50]]
        %v4397 = vstv %s4396
        %v4398 = vmul.f32 %v4262, %v4397
        %v4399 = vmul.f32 %v4263, %v4397
        %v4400 = vmul.f32 %v4264, %v4397
        %v4404 = vrot.slane %v4398, 2
        %v4405 = vrot.slane %v4399, 2
        %v4406 = vsel %vm432, %v4404, %v4405
        %v4407 = vrot.slane %v4400, 2
        %v4408 = vsel %vm432, %v4405, %v4407
        %4409 = vrot.lane.b32.xlu0 %v4406, 126
        %v4410 = vpop.permute.xlu0 %4409
        %4411 = vrot.lane.b32.xlu0 %v4408, 126
        %v4412 = vpop.permute.xlu0 %4411
        %v4415 = vadd.f32 %v4394, %v4410
        %v4416 = vadd.f32 %v4395, %v4412
        %s4417 = sld [smem:[#allocation9 + $0x2]]
        %v4418 = vstv %s4417
        %v4419 = vadd.f32 %v4415, %v4418
        %v4420 = vadd.f32 %v4416, %v4418
        %s4421 = scalar_lea.vmem %s269, 32 [#allocation11]
        %4422 = vst.msk [vmem:[%s4421] sm:$0xff] %vm3477, %v4419
        %4423 = vst.msk [vmem:[%s4421 + $0x8] sm:$0xff] %vm3477, %v4420
        %s4424 = sand.u32 %s140, 1
        %s4425 = scalar_lea.sflag [#allocation4], %s4424
        %s4426 = sand.u32 %s140, 1
        %s4427 = smul.addr %s4426, 48
        %s4428 = scalar_lea.vmem [#allocation11], %s4427
        // Predicated region
        $region57: #{net_forward.1} parent=39 // pred_check
          %p4429 = pneg %p150
        $region58: #{net_forward.1} parent=39 // pred_check_branch
          %4431 = sbr.rel (%p4429) target = $region60
        $region59: #{net_forward.1} parent=39 // pred_region
          %s4433 = ssub.s32 768, 768
          %4434 = vsyncadd %s4425, %s4433
          %s4435 = smul.addr %s22, 6
          %s4436 = smul.addr %s4435, 128
          %s4437 = scalar_lea.hbm %s5, %s4436
          %s4438 = sshll.u32 %s4428, 4
          %s4439 = int_to_ptr.vmem [resolvable:$true] %s4438
          %4444 = dma.vmem_to_hbm [thread:$0]  %s4439, 768, %s4437, %s4425, 128, 128, 8
        $region60: #{net_forward.1} parent=39 // pred_fallthru
          _
      $region40: #{net_forward.1} parent=5 // pred_fallthru
        _
      %p4445 = scmp.le.s32.totalorder 2, %s17
      // Predicated region
      $region61: #{net_forward.1} parent=5 // pred_check
        %p4446 = pneg %p4445
      $region62: #{net_forward.1} parent=5 // pred_check_branch
        %4448 = sbr.rel (%p4446) target = $region64
      $region63: #{net_forward.1} parent=5 // pred_region
        %s4449 = ssub.s32 %s17, 2
        // Predicated region
        $region65: #{net_forward.1} parent=63 // pred_check
          %p4450 = pneg %p156
        $region66: #{net_forward.1} parent=63 // pred_check_branch
          %4452 = sbr.rel (%p4450) target = $region68
        $region67: #{net_forward.1} parent=63 // pred_region
          %s4453 = sand.u32 %s141, 1
          %s4454 = scalar_lea.sflag [#allocation4], %s4453
          %s4455 = sand.u32 %s141, 1
          %s4456 = smul.addr %s4455, 48
          %s4457 = scalar_lea.vmem [#allocation11], %s4456
          %4458 = dma.done %s4454, 768
        $region68: #{net_forward.1} parent=63 // pred_fallthru
          _
      $region64: #{net_forward.1} parent=5 // pred_fallthru
        _
    $region6: #{net_forward.1} parent=1 // loop_footer
      %s21 = sadd.s32 1, %s17
    $region7: #{net_forward.1} parent=1 // loop_footer_branch
      %16 = sbr.rel target = $region3
    $region8: #{net_forward.1} parent=1 // loop_exit
      _
    %4459 = vsyncpa [#allocation4], 1
    %s4460 = scalar_lea.sflag [#allocation4], 1
    %4461 = vsyncpa %s4460, 1
    %4462 = vsyncpa [#allocation5], 1
    %s4463 = scalar_lea.sflag [#allocation5], 1
    %4464 = vsyncpa %s4463, 1
    %4465 = vsyncpa [#allocation7], 1
    %4466 = vsyncpa [#allocation10], 1

</llo_original>
